<compile_context>
chip_gen: v7x
topology: tpu7x:2x2x1
jax: 0.10.0
libtpu: 0.0.40
codegen_flags: <defaults>
</compile_context>

<pallas_src>
import functools

import jax
import jax.numpy as jnp
from jax.experimental import pallas as pl
from jax.experimental.pallas import tpu as pltpu

_EPS = 1e-5


def _mish(x):
    # mish(x) = x * tanh(softplus(x)), numerically stable softplus (elementwise, f32, EUP ops)
    sp = jnp.maximum(x, 0.0) + jnp.log1p(jnp.exp(-jnp.abs(x)))
    return x * jnp.tanh(sp)


def _pad_to(n, m):
    return ((n + m - 1) // m) * m


def _fold_bn(gamma, beta, mean, var, eps=_EPS):
    scale = gamma / jnp.sqrt(var + eps)
    bias = beta - mean * scale
    return scale, bias


def _fold_pad_w(w, gamma, beta, mean, var, cin_p, cout_p):
    """Fold BN scale into a [cin, cout] 1x1-conv weight, zero-pad to lane multiples, cast bf16."""
    scale, bias = _fold_bn(gamma, beta, mean, var)
    wf = w * scale[None, :]
    wf = jnp.pad(wf, ((0, cin_p - w.shape[0]), (0, cout_p - w.shape[1])))
    bf = jnp.pad(bias, (0, cout_p - bias.shape[0]))
    return wf.astype(jnp.bfloat16), bf.reshape(1, -1).astype(jnp.float32)


def _fold_pad_wk(wk, gamma, beta, mean, var, cin_p, cout_p):
    """Same for the [9, cin, cout] 3x3-conv weight (tap index = dh*3+dw)."""
    scale, bias = _fold_bn(gamma, beta, mean, var)
    wf = wk * scale[None, None, :]
    wf = jnp.pad(wf, ((0, 0), (0, cin_p - wk.shape[1]), (0, cout_p - wk.shape[2])))
    bf = jnp.pad(bias, (0, cout_p - bias.shape[0]))
    return wf.astype(jnp.bfloat16), bf.reshape(1, -1).astype(jnp.float32)


def _pick_row_tile(H, W, max_rows=2048, min_tiles=4):
    """Largest divisor of H giving >= min_tiles row tiles and <= max_rows flattened rows."""
    want = min(min_tiles, H)
    best = 1
    for cand in range(1, H + 1):
        if H % cand == 0 and cand * W <= max_rows and H // cand >= want:
            best = cand
    return best


# ---------------------------------------------------------------------------
# Fully fused BottleneckCSP kernel (one grid step = one (batch, row-tile) block)
# ---------------------------------------------------------------------------
def _csp_fused_kernel(th, W, shortcut,
                      xt_ref, xc_ref, xb_ref,
                      w1_ref, b1_ref, w2_ref, b2_ref,
                      wk_ref, bk_ref, wp_ref, bp_ref,
                      w3a_ref, w3b_ref, b3_ref,
                      o_ref, apad_ref):
    j = pl.program_id(1)
    nj = pl.num_programs(1)
    c1p = xc_ref.shape[-1]
    cm = w1_ref.shape[-1]

    w1 = w1_ref[...]
    b1 = b1_ref[...]

    # ---- branch activations on the current row tile, flattened to [th*W, C] (x is bf16) ----
    xc = xc_ref[0].reshape(th * W, c1p)
    a_mid = _mish(jnp.dot(xc, w1, preferred_element_type=jnp.float32) + b1)
    d = _mish(jnp.dot(xc, w2_ref[...], preferred_element_type=jnp.float32) + b2_ref[...])

    # ---- halo rows of `a`, zeroed outside the image (== the 3x3 conv's zero padding) ----
    xt = xt_ref[0, 0]
    xb = xb_ref[0, 0]
    a_top = _mish(jnp.dot(xt, w1, preferred_element_type=jnp.float32) + b1)
    a_bot = _mish(jnp.dot(xb, w1, preferred_element_type=jnp.float32) + b1)
    a_top = a_top * (j > 0).astype(jnp.float32)
    a_bot = a_bot * (j < nj - 1).astype(jnp.float32)

    # ---- assemble zero-padded (th+2, W+2, Cm) activation tile in VMEM scratch ----
    apad_ref[:, 0:1, :] = jnp.zeros((th + 2, 1, cm), jnp.float32)
    apad_ref[:, W + 1:W + 2, :] = jnp.zeros((th + 2, 1, cm), jnp.float32)
    apad_ref[0:1, 1:W + 1, :] = a_top.reshape(1, W, cm)
    apad_ref[1:th + 1, 1:W + 1, :] = a_mid.reshape(th, W, cm)
    apad_ref[th + 1:th + 2, 1:W + 1, :] = a_bot.reshape(1, W, cm)

    # ---- dense 3x3 conv (BN scale pre-folded) ----
    # Column shifts hoisted into one lane-axis concat -> 3 K-stacked matmuls
    # [th*W, 3*Cm] x [3*Cm, Cm] (one per row tap) instead of 9 small dots.
    wins = [apad_ref[:, dw:dw + W, :].astype(jnp.bfloat16) for dw in range(3)]
    big = jnp.concatenate(wins, axis=-1)                   # (th+2, W, 3*Cm) bf16
    acc = jnp.zeros((th * W, cm), jnp.float32)
    for dh in range(3):
        slab = big[dh:dh + th].reshape(th * W, 3 * cm)
        acc = acc + jnp.dot(slab, wk_ref[dh], preferred_element_type=jnp.float32)
    b_act = _mish(acc + bk_ref[...])

    # ---- PWConv (act=None) + shortcut + Mish  -> FusedBottleneck output ----
    c_lin = jnp.dot(b_act.astype(jnp.bfloat16), wp_ref[...],
                    preferred_element_type=jnp.float32) + bp_ref[...]
    m = _mish(a_mid + c_lin) if shortcut else _mish(c_lin)

    # ---- conv3 over concat([m, d]) as a split matmul (concat never materialized) ----
    out = jnp.dot(m.astype(jnp.bfloat16), w3a_ref[...], preferred_element_type=jnp.float32)
    out = out + jnp.dot(d.astype(jnp.bfloat16), w3b_ref[...], preferred_element_type=jnp.float32)
    out = _mish(out + b3_ref[...])
    o_ref[0] = out.reshape(th, W, out.shape[-1]).astype(o_ref.dtype)


# ---------------------------------------------------------------------------
# Wrapper: NCHW in/out, channel padding, BN folding, grid setup
# ---------------------------------------------------------------------------
def bottleneck_csp_pallas(x_nchw, p, *, shortcut=True, row_tile=None):
    x = jnp.transpose(x_nchw, (0, 2, 3, 1)).astype(jnp.float32)      # NCHW -> NHWC
    N, H, W, c1 = x.shape
    c_mid = p["w1"].shape[1]
    c2 = p["w3"].shape[1]

    lane = 128
    c1p = _pad_to(c1, lane)
    cmp_ = _pad_to(c_mid, lane)
    c2p = _pad_to(c2, lane)

    th = row_tile if row_tile is not None else _pick_row_tile(H, W)
    assert H % th == 0, f"row tile {th} must divide H={H}"
    rt = H // th

    # Channel-pad and store the feature map in HBM as bf16: halves the per-tile input DMA,
    # matmul operand precision is unchanged (bf16 x bf16 -> f32 accumulate).
    x_p = jnp.pad(x, ((0, 0), (0, 0), (0, 0), (0, c1p - c1))).astype(jnp.bfloat16)

    # Fold BN scales into the weights (bias-only add stays in-kernel), pad + cast to bf16.
    w1f, b1 = _fold_pad_w(p["w1"], p["bn1_g"], p["bn1_b"], p["bn1_m"], p["bn1_v"], c1p, cmp_)
    w2f, b2 = _fold_pad_w(p["w2"], p["bn2_g"], p["bn2_b"], p["bn2_m"], p["bn2_v"], c1p, cmp_)
    wkf, bk = _fold_pad_wk(p["wk"], p["bnk_g"], p["bnk_b"], p["bnk_m"], p["bnk_v"], cmp_, cmp_)
    # Stack the three column taps of each row tap along the contraction axis:
    # wk3[dh][dw*Cm + r, :] == wk[dh*3+dw][r, :]   -> 3 K-stacked matmuls in-kernel.
    wk3 = wkf.reshape(3, 3 * cmp_, cmp_)
    wpf, bp = _fold_pad_w(p["wp"], p["bnp_g"], p["bnp_b"], p["bnp_m"], p["bnp_v"], cmp_, cmp_)
    # conv3 acts on concat([m, d]); split its weight rows so the concat never materializes.
    w3af, b3 = _fold_pad_w(p["w3"][:c_mid], p["bn3_g"], p["bn3_b"], p["bn3_m"], p["bn3_v"],
                           cmp_, c2p)
    w3bf, _ = _fold_pad_w(p["w3"][c_mid:], p["bn3_g"], p["bn3_b"], p["bn3_m"], p["bn3_v"],
                          cmp_, c2p)

    def _const_spec(shape):
        return pl.BlockSpec(shape, lambda n, j: (0,) * len(shape))

    kern = functools.partial(_csp_fused_kernel, th, W, bool(shortcut))

    out = pl.pallas_call(
        kern,
        out_shape=jax.ShapeDtypeStruct((N, H, W, c2p), jnp.float32),
        grid_spec=pltpu.PrefetchScalarGridSpec(
            num_scalar_prefetch=0,
            grid=(N, rt),
            in_specs=[
                # 1-row halo above / current row tile / 1-row halo below (clamped at borders,
                # masked to zero inside the kernel)
                pl.BlockSpec((1, 1, W, c1p),
                             lambda n, j: (n, jnp.maximum(j * th - 1, 0), 0, 0)),
                pl.BlockSpec((1, th, W, c1p), lambda n, j: (n, j, 0, 0)),
                pl.BlockSpec((1, 1, W, c1p),
                             lambda n, j: (n, jnp.minimum((j + 1) * th, H - 1), 0, 0)),
                _const_spec((c1p, cmp_)), _const_spec((1, cmp_)),          # w1, b1
                _const_spec((c1p, cmp_)), _const_spec((1, cmp_)),          # w2, b2
                _const_spec((3, 3 * cmp_, cmp_)), _const_spec((1, cmp_)),  # wk (K-stacked), bk
                _const_spec((cmp_, cmp_)), _const_spec((1, cmp_)),         # wp, bp
                _const_spec((cmp_, c2p)), _const_spec((cmp_, c2p)),        # w3a, w3b
                _const_spec((1, c2p)),                                     # b3
            ],
            out_specs=pl.BlockSpec((1, th, W, c2p), lambda n, j: (n, j, 0, 0)),
            scratch_shapes=[pltpu.VMEM((th + 2, W + 2, cmp_), jnp.float32)],
        ),
        compiler_params=pltpu.CompilerParams(
            dimension_semantics=("parallel", "parallel"),
            vmem_limit_bytes=32 * 1024 * 1024),
    )(x_p, x_p, x_p, w1f, b1, w2f, b2, wk3, bk, wpf, bp, w3af, w3bf, b3)

    out = out[..., :c2]
    return jnp.transpose(out, (0, 3, 1, 2))                           # back to NCHW


# ---------------------------------------------------------------------------
# Pure-JAX reference (inference-mode BN, full f32), for correctness checking only.
# ---------------------------------------------------------------------------
def bottleneck_csp_reference(x_nchw, p, shortcut=True, eps=_EPS):
    x = jnp.transpose(x_nchw, (0, 2, 3, 1)).astype(jnp.float32)
    hp = jax.lax.Precision.HIGHEST

    def bn(v, g, b, m, var):
        return (v - m) / jnp.sqrt(var + eps) * g + b

    def pw(v, w):
        return jnp.einsum("nhwc,cd->nhwd", v, w, precision=hp)

    a = _mish(bn(pw(x, p["w1"]), p["bn1_g"], p["bn1_b"], p["bn1_m"], p["bn1_v"]))
    d = _mish(bn(pw(x, p["w2"]), p["bn2_g"], p["bn2_b"], p["bn2_m"], p["bn2_v"]))

    N, H, W, _ = a.shape
    ap = jnp.pad(a, ((0, 0), (1, 1), (1, 1), (0, 0)))
    acc = jnp.zeros_like(a)
    for dh in range(3):
        for dw in range(3):
            acc = acc + pw(ap[:, dh:dh + H, dw:dw + W, :], p["wk"][dh * 3 + dw])
    bq = _mish(bn(acc, p["bnk_g"], p["bnk_b"], p["bnk_m"], p["bnk_v"]))
    c = bn(pw(bq, p["wp"]), p["bnp_g"], p["bnp_b"], p["bnp_m"], p["bnp_v"])
    m = _mish(a + c) if shortcut else _mish(c)

    cat = jnp.concatenate([m, d], axis=-1)
    out = _mish(bn(pw(cat, p["w3"]), p["bn3_g"], p["bn3_b"], p["bn3_m"], p["bn3_v"]))
    return jnp.transpose(out, (0, 3, 1, 2))


# ---------------------------------------------------------------------------
# Deterministic parameter init (shapes follow BottleneckCSP.__init__, n=1, fused=True)
# ---------------------------------------------------------------------------
def init_bottleneck_csp_params(key, c1, c2, b_e=0.5):
    c_mid = int(c2 * b_e)
    ks = iter(jax.random.split(key, 40))
    nrm = lambda sh, sc=0.25: jax.random.normal(next(ks), sh, jnp.float32) * sc
    uni = lambda sh: 0.8 + 0.5 * jax.random.uniform(next(ks), sh, jnp.float32)

    def bn(c, prefix):
        return {prefix + "_g": 1.0 + nrm((c,), 0.05), prefix + "_b": nrm((c,), 0.1),
                prefix + "_m": nrm((c,), 0.1), prefix + "_v": uni((c,))}

    p = {
        "w1": nrm((c1, c_mid)),                 # conv1 1x1
        "w2": nrm((c1, c_mid)),                 # conv2 1x1
        "wk": nrm((9, c_mid, c_mid)),           # FusedBottleneck 3x3 (tap dh*3+dw == torch w[:,:,dh,dw].T)
        "wp": nrm((c_mid, c_mid)),              # FusedBottleneck PWConv (act=None)
        "w3": nrm((2 * c_mid, c2)),             # conv3 1x1 over concat([m, d])
    }
    p.update(bn(c_mid, "bn1"))
    p.update(bn(c_mid, "bn2"))
    p.update(bn(c_mid, "bnk"))
    p.update(bn(c_mid, "bnp"))
    p.update(bn(c2, "bn3"))
    return p


if __name__ == "__main__":
    key = jax.random.PRNGKey(0)
    kx, kp = jax.random.split(key)

    c1, c2 = 4, 8                                  # b_e=0.5 -> c_mid = 4; n=1, fused=True
    x = jax.random.normal(kx, (2, c1, 16, 16), jnp.float32)   # NCHW input
    params = init_bottleneck_csp_params(kp, c1, c2)

    out = jax.jit(bottleneck_csp_pallas)(x, params)
    out = jax.block_until_ready(out)

    ref = bottleneck_csp_reference(x, params)
    assert out.shape == (2, c2, 16, 16), out.shape
    # kernel runs bf16-operand / f32-accumulate matmuls; reference is full f32 (HIGHEST)
    rel_err = float(jnp.max(jnp.abs(out - ref) / (1.0 + jnp.abs(ref))))
    assert rel_err < 5e-2, f"mismatch vs reference: {rel_err}"

    print("KERNEL_OK")
</pallas_src>

<mosaic_0001>
module attributes {stable_mosaic.version = 11 : i64} {
  func.func @_csp_fused_kernel(%arg0: i32, %arg1: i32, %arg2: memref<1x1x16x128xbf16, #tpu.memory_space<vmem>>, %arg3: memref<1x4x16x128xbf16, #tpu.memory_space<vmem>>, %arg4: memref<1x1x16x128xbf16, #tpu.memory_space<vmem>>, %arg5: memref<128x128xbf16, #tpu.memory_space<vmem>>, %arg6: memref<1x128xf32, #tpu.memory_space<vmem>>, %arg7: memref<128x128xbf16, #tpu.memory_space<vmem>>, %arg8: memref<1x128xf32, #tpu.memory_space<vmem>>, %arg9: memref<3x384x128xbf16, #tpu.memory_space<vmem>>, %arg10: memref<1x128xf32, #tpu.memory_space<vmem>>, %arg11: memref<128x128xbf16, #tpu.memory_space<vmem>>, %arg12: memref<1x128xf32, #tpu.memory_space<vmem>>, %arg13: memref<128x128xbf16, #tpu.memory_space<vmem>>, %arg14: memref<128x128xbf16, #tpu.memory_space<vmem>>, %arg15: memref<1x128xf32, #tpu.memory_space<vmem>>, %arg16: memref<1x4x16x128xf32, #tpu.memory_space<vmem>>, %arg17: memref<6x18x128xf32, #tpu.memory_space<vmem>>) attributes {dimension_semantics = [#tpu.dimension_semantics<parallel>, #tpu.dimension_semantics<parallel>], iteration_bounds = array<i64: 2, 4>, scalar_prefetch = 0 : i64, scratch_operands = 1 : i64, tpu.core_type = #tpu.core_type<tc>, window_params = [{transform_indices = @transform_0, window_bounds = array<i64: 1, 1, 16, 128>}, {transform_indices = @transform_1, window_bounds = array<i64: 1, 4, 16, 128>}, {transform_indices = @transform_2, window_bounds = array<i64: 1, 1, 16, 128>}, {pipeline_mode = #tpu.pipeline_mode<synchronous>, transform_indices = @transform_3, window_bounds = array<i64: 128, 128>}, {pipeline_mode = #tpu.pipeline_mode<synchronous>, transform_indices = @transform_4, window_bounds = array<i64: 1, 128>}, {pipeline_mode = #tpu.pipeline_mode<synchronous>, transform_indices = @transform_5, window_bounds = array<i64: 128, 128>}, {pipeline_mode = #tpu.pipeline_mode<synchronous>, transform_indices = @transform_6, window_bounds = array<i64: 1, 128>}, {pipeline_mode = #tpu.pipeline_mode<synchronous>, transform_indices = @transform_7, window_bounds = array<i64: 3, 384, 128>}, {pipeline_mode = #tpu.pipeline_mode<synchronous>, transform_indices = @transform_8, window_bounds = array<i64: 1, 128>}, {pipeline_mode = #tpu.pipeline_mode<synchronous>, transform_indices = @transform_9, window_bounds = array<i64: 128, 128>}, {pipeline_mode = #tpu.pipeline_mode<synchronous>, transform_indices = @transform_10, window_bounds = array<i64: 1, 128>}, {pipeline_mode = #tpu.pipeline_mode<synchronous>, transform_indices = @transform_11, window_bounds = array<i64: 128, 128>}, {pipeline_mode = #tpu.pipeline_mode<synchronous>, transform_indices = @transform_12, window_bounds = array<i64: 128, 128>}, {pipeline_mode = #tpu.pipeline_mode<synchronous>, transform_indices = @transform_13, window_bounds = array<i64: 1, 128>}, {transform_indices = @transform_14, window_bounds = array<i64: 1, 4, 16, 128>}]} {
    %c0 = arith.constant 0 : index
    %c0_0 = arith.constant 0 : index
    %0 = vector.load %arg5[%c0, %c0_0] : memref<128x128xbf16, #tpu.memory_space<vmem>>, vector<128x128xbf16>
    %c0_1 = arith.constant 0 : index
    %c0_2 = arith.constant 0 : index
    %1 = vector.load %arg6[%c0_1, %c0_2] : memref<1x128xf32, #tpu.memory_space<vmem>>, vector<1x128xf32>
    %c0_3 = arith.constant 0 : index
    %c0_4 = arith.constant 0 : index
    %c0_5 = arith.constant 0 : index
    %c0_6 = arith.constant 0 : index
    %2 = vector.load %arg3[%c0_3, %c0_4, %c0_5, %c0_6] : memref<1x4x16x128xbf16, #tpu.memory_space<vmem>>, vector<1x4x16x128xbf16>
    %3 = vector.shape_cast %2 : vector<1x4x16x128xbf16> to vector<4x16x128xbf16>
    %4 = vector.shape_cast %3 : vector<4x16x128xbf16> to vector<64x128xbf16>
    %cst = arith.constant dense<0.000000e+00> : vector<64x128xf32>
    %5 = tpu.matmul %4, %0, %cst {dimension_numbers = #tpu.dot_dimension_numbers<[1], [0], [0], [1], [0, 0, 1, 1], [], []>} : vector<64x128xbf16>, vector<128x128xbf16>, vector<64x128xf32> -> vector<64x128xf32>
    %6 = vector.broadcast %1 : vector<1x128xf32> to vector<64x128xf32>
    %7 = arith.addf %5, %6 : vector<64x128xf32>
    %cst_7 = arith.constant 0.000000e+00 : f32
    %8 = vector.broadcast %cst_7 : f32 to vector<64x128xf32>
    %9 = arith.maximumf %7, %8 : vector<64x128xf32>
    %10 = math.absf %7 : vector<64x128xf32>
    %cst_8 = arith.constant 0.000000e+00 : f32
    %11 = vector.broadcast %cst_8 : f32 to vector<64x128xf32>
    %12 = arith.subf %11, %10 : vector<64x128xf32>
    %13 = math.exp %12 : vector<64x128xf32>
    %14 = math.log1p %13 : vector<64x128xf32>
    %15 = arith.addf %9, %14 : vector<64x128xf32>
    %16 = math.tanh %15 : vector<64x128xf32>
    %17 = arith.mulf %7, %16 : vector<64x128xf32>
    %c0_9 = arith.constant 0 : index
    %c0_10 = arith.constant 0 : index
    %18 = vector.load %arg7[%c0_9, %c0_10] : memref<128x128xbf16, #tpu.memory_space<vmem>>, vector<128x128xbf16>
    %cst_11 = arith.constant dense<0.000000e+00> : vector<64x128xf32>
    %19 = tpu.matmul %4, %18, %cst_11 {dimension_numbers = #tpu.dot_dimension_numbers<[1], [0], [0], [1], [0, 0, 1, 1], [], []>} : vector<64x128xbf16>, vector<128x128xbf16>, vector<64x128xf32> -> vector<64x128xf32>
    %c0_12 = arith.constant 0 : index
    %c0_13 = arith.constant 0 : index
    %20 = vector.load %arg8[%c0_12, %c0_13] : memref<1x128xf32, #tpu.memory_space<vmem>>, vector<1x128xf32>
    %21 = vector.broadcast %20 : vector<1x128xf32> to vector<64x128xf32>
    %22 = arith.addf %19, %21 : vector<64x128xf32>
    %cst_14 = arith.constant 0.000000e+00 : f32
    %23 = vector.broadcast %cst_14 : f32 to vector<64x128xf32>
    %24 = arith.maximumf %22, %23 : vector<64x128xf32>
    %25 = math.absf %22 : vector<64x128xf32>
    %cst_15 = arith.constant 0.000000e+00 : f32
    %26 = vector.broadcast %cst_15 : f32 to vector<64x128xf32>
    %27 = arith.subf %26, %25 : vector<64x128xf32>
    %28 = math.exp %27 : vector<64x128xf32>
    %29 = math.log1p %28 : vector<64x128xf32>
    %30 = arith.addf %24, %29 : vector<64x128xf32>
    %31 = math.tanh %30 : vector<64x128xf32>
    %32 = arith.mulf %22, %31 : vector<64x128xf32>
    %c0_16 = arith.constant 0 : index
    %c0_17 = arith.constant 0 : index
    %c0_18 = arith.constant 0 : index
    %c0_19 = arith.constant 0 : index
    %33 = vector.load %arg2[%c0_16, %c0_17, %c0_18, %c0_19] : memref<1x1x16x128xbf16, #tpu.memory_space<vmem>>, vector<1x1x16x128xbf16>
    %34 = vector.shape_cast %33 : vector<1x1x16x128xbf16> to vector<16x128xbf16>
    %c0_20 = arith.constant 0 : index
    %c0_21 = arith.constant 0 : index
    %c0_22 = arith.constant 0 : index
    %c0_23 = arith.constant 0 : index
    %35 = vector.load %arg4[%c0_20, %c0_21, %c0_22, %c0_23] : memref<1x1x16x128xbf16, #tpu.memory_space<vmem>>, vector<1x1x16x128xbf16>
    %36 = vector.shape_cast %35 : vector<1x1x16x128xbf16> to vector<16x128xbf16>
    %cst_24 = arith.constant dense<0.000000e+00> : vector<16x128xf32>
    %37 = tpu.matmul %34, %0, %cst_24 {dimension_numbers = #tpu.dot_dimension_numbers<[1], [0], [0], [1], [0, 0, 1, 1], [], []>} : vector<16x128xbf16>, vector<128x128xbf16>, vector<16x128xf32> -> vector<16x128xf32>
    %38 = vector.broadcast %1 : vector<1x128xf32> to vector<16x128xf32>
    %39 = arith.addf %37, %38 : vector<16x128xf32>
    %cst_25 = arith.constant 0.000000e+00 : f32
    %40 = vector.broadcast %cst_25 : f32 to vector<16x128xf32>
    %41 = arith.maximumf %39, %40 : vector<16x128xf32>
    %42 = math.absf %39 : vector<16x128xf32>
    %cst_26 = arith.constant 0.000000e+00 : f32
    %43 = vector.broadcast %cst_26 : f32 to vector<16x128xf32>
    %44 = arith.subf %43, %42 : vector<16x128xf32>
    %45 = math.exp %44 : vector<16x128xf32>
    %46 = math.log1p %45 : vector<16x128xf32>
    %47 = arith.addf %41, %46 : vector<16x128xf32>
    %48 = math.tanh %47 : vector<16x128xf32>
    %49 = arith.mulf %39, %48 : vector<16x128xf32>
    %cst_27 = arith.constant dense<0.000000e+00> : vector<16x128xf32>
    %50 = tpu.matmul %36, %0, %cst_27 {dimension_numbers = #tpu.dot_dimension_numbers<[1], [0], [0], [1], [0, 0, 1, 1], [], []>} : vector<16x128xbf16>, vector<128x128xbf16>, vector<16x128xf32> -> vector<16x128xf32>
    %51 = vector.broadcast %1 : vector<1x128xf32> to vector<16x128xf32>
    %52 = arith.addf %50, %51 : vector<16x128xf32>
    %cst_28 = arith.constant 0.000000e+00 : f32
    %53 = vector.broadcast %cst_28 : f32 to vector<16x128xf32>
    %54 = arith.maximumf %52, %53 : vector<16x128xf32>
    %55 = math.absf %52 : vector<16x128xf32>
    %cst_29 = arith.constant 0.000000e+00 : f32
    %56 = vector.broadcast %cst_29 : f32 to vector<16x128xf32>
    %57 = arith.subf %56, %55 : vector<16x128xf32>
    %58 = math.exp %57 : vector<16x128xf32>
    %59 = math.log1p %58 : vector<16x128xf32>
    %60 = arith.addf %54, %59 : vector<16x128xf32>
    %61 = math.tanh %60 : vector<16x128xf32>
    %62 = arith.mulf %52, %61 : vector<16x128xf32>
    %c0_i32 = arith.constant 0 : i32
    %63 = arith.cmpi sgt, %arg1, %c0_i32 : i32
    %64 = arith.extui %63 : i1 to i32
    %65 = arith.sitofp %64 : i32 to f32
    %66 = vector.broadcast %65 : f32 to vector<16x128xf32>
    %67 = arith.mulf %49, %66 : vector<16x128xf32>
    %c3_i32 = arith.constant 3 : i32
    %68 = arith.cmpi slt, %arg1, %c3_i32 : i32
    %69 = arith.extui %68 : i1 to i32
    %70 = arith.sitofp %69 : i32 to f32
    %71 = vector.broadcast %70 : f32 to vector<16x128xf32>
    %72 = arith.mulf %62, %71 : vector<16x128xf32>
    %cst_30 = arith.constant 0.000000e+00 : f32
    %73 = vector.broadcast %cst_30 : f32 to vector<6x1x128xf32>
    %c0_31 = arith.constant 0 : index
    %c0_32 = arith.constant 0 : index
    %c0_33 = arith.constant 0 : index
    %74 = vector.load %arg17[%c0_31, %c0_32, %c0_33] : memref<6x18x128xf32, #tpu.memory_space<vmem>>, vector<6x1x128xf32>
    tpu.vector_store %arg17[%c0_31, %c0_32, %c0_33], %73 {strides = array<i32>} : memref<6x18x128xf32, #tpu.memory_space<vmem>>, vector<6x1x128xf32>,
    %cst_34 = arith.constant 0.000000e+00 : f32
    %75 = vector.broadcast %cst_34 : f32 to vector<6x1x128xf32>
    %c0_35 = arith.constant 0 : index
    %c17 = arith.constant 17 : index
    %c0_36 = arith.constant 0 : index
    %76 = vector.load %arg17[%c0_35, %c17, %c0_36] : memref<6x18x128xf32, #tpu.memory_space<vmem>>, vector<6x1x128xf32>
    tpu.vector_store %arg17[%c0_35, %c17, %c0_36], %75 {strides = array<i32>} : memref<6x18x128xf32, #tpu.memory_space<vmem>>, vector<6x1x128xf32>,
    %77 = vector.shape_cast %67 : vector<16x128xf32> to vector<1x16x128xf32>
    %c0_37 = arith.constant 0 : index
    %c1 = arith.constant 1 : index
    %c0_38 = arith.constant 0 : index
    %78 = vector.load %arg17[%c0_37, %c1, %c0_38] : memref<6x18x128xf32, #tpu.memory_space<vmem>>, vector<1x16x128xf32>
    tpu.vector_store %arg17[%c0_37, %c1, %c0_38], %77 {strides = array<i32>} : memref<6x18x128xf32, #tpu.memory_space<vmem>>, vector<1x16x128xf32>,
    %79 = vector.shape_cast %17 : vector<64x128xf32> to vector<4x16x128xf32>
    %c1_39 = arith.constant 1 : index
    %c1_40 = arith.constant 1 : index
    %c0_41 = arith.constant 0 : index
    %80 = vector.load %arg17[%c1_39, %c1_40, %c0_41] : memref<6x18x128xf32, #tpu.memory_space<vmem>>, vector<4x16x128xf32>
    tpu.vector_store %arg17[%c1_39, %c1_40, %c0_41], %79 {strides = array<i32>} : memref<6x18x128xf32, #tpu.memory_space<vmem>>, vector<4x16x128xf32>,
    %81 = vector.shape_cast %72 : vector<16x128xf32> to vector<1x16x128xf32>
    %c5 = arith.constant 5 : index
    %c1_42 = arith.constant 1 : index
    %c0_43 = arith.constant 0 : index
    %82 = vector.load %arg17[%c5, %c1_42, %c0_43] : memref<6x18x128xf32, #tpu.memory_space<vmem>>, vector<1x16x128xf32>
    tpu.vector_store %arg17[%c5, %c1_42, %c0_43], %81 {strides = array<i32>} : memref<6x18x128xf32, #tpu.memory_space<vmem>>, vector<1x16x128xf32>,
    %c0_44 = arith.constant 0 : index
    %c0_45 = arith.constant 0 : index
    %c0_46 = arith.constant 0 : index
    %83 = vector.load %arg17[%c0_44, %c0_45, %c0_46] : memref<6x18x128xf32, #tpu.memory_space<vmem>>, vector<6x16x128xf32>
    %84 = arith.truncf %83 : vector<6x16x128xf32> to vector<6x16x128xbf16>
    %c0_47 = arith.constant 0 : index
    %c1_48 = arith.constant 1 : index
    %c0_49 = arith.constant 0 : index
    %85 = vector.load %arg17[%c0_47, %c1_48, %c0_49] : memref<6x18x128xf32, #tpu.memory_space<vmem>>, vector<6x16x128xf32>
    %86 = arith.truncf %85 : vector<6x16x128xf32> to vector<6x16x128xbf16>
    %c0_50 = arith.constant 0 : index
    %c2 = arith.constant 2 : index
    %c0_51 = arith.constant 0 : index
    %87 = vector.load %arg17[%c0_50, %c2, %c0_51] : memref<6x18x128xf32, #tpu.memory_space<vmem>>, vector<6x16x128xf32>
    %88 = arith.truncf %87 : vector<6x16x128xf32> to vector<6x16x128xbf16>
    %89 = tpu.concatenate %84, %86, %88 in 2 : vector<6x16x128xbf16>, vector<6x16x128xbf16>, vector<6x16x128xbf16> -> vector<6x16x384xbf16>
    %cst_52 = arith.constant 0.000000e+00 : f32
    %90 = vector.broadcast %cst_52 : f32 to vector<64x128xf32>
    %91 = vector.extract_strided_slice %89 {offsets = [0, 0, 0], sizes = [4, 16, 384], strides = [1, 1, 1]} : vector<6x16x384xbf16> to vector<4x16x384xbf16>
    %92 = vector.shape_cast %91 : vector<4x16x384xbf16> to vector<64x384xbf16>
    %c0_53 = arith.constant 0 : index
    %c0_54 = arith.constant 0 : index
    %c0_55 = arith.constant 0 : index
    %93 = vector.load %arg9[%c0_53, %c0_54, %c0_55] : memref<3x384x128xbf16, #tpu.memory_space<vmem>>, vector<1x384x128xbf16>
    %94 = vector.shape_cast %93 : vector<1x384x128xbf16> to vector<384x128xbf16>
    %cst_56 = arith.constant dense<0.000000e+00> : vector<64x128xf32>
    %95 = tpu.matmul %92, %94, %cst_56 {dimension_numbers = #tpu.dot_dimension_numbers<[1], [0], [0], [1], [0, 0, 1, 1], [], []>} : vector<64x384xbf16>, vector<384x128xbf16>, vector<64x128xf32> -> vector<64x128xf32>
    %96 = arith.addf %90, %95 : vector<64x128xf32>
    %97 = vector.extract_strided_slice %89 {offsets = [1, 0, 0], sizes = [4, 16, 384], strides = [1, 1, 1]} : vector<6x16x384xbf16> to vector<4x16x384xbf16>
    %98 = vector.shape_cast %97 : vector<4x16x384xbf16> to vector<64x384xbf16>
    %c1_57 = arith.constant 1 : index
    %c0_58 = arith.constant 0 : index
    %c0_59 = arith.constant 0 : index
    %99 = vector.load %arg9[%c1_57, %c0_58, %c0_59] : memref<3x384x128xbf16, #tpu.memory_space<vmem>>, vector<1x384x128xbf16>
    %100 = vector.shape_cast %99 : vector<1x384x128xbf16> to vector<384x128xbf16>
    %cst_60 = arith.constant dense<0.000000e+00> : vector<64x128xf32>
    %101 = tpu.matmul %98, %100, %cst_60 {dimension_numbers = #tpu.dot_dimension_numbers<[1], [0], [0], [1], [0, 0, 1, 1], [], []>} : vector<64x384xbf16>, vector<384x128xbf16>, vector<64x128xf32> -> vector<64x128xf32>
    %102 = arith.addf %96, %101 : vector<64x128xf32>
    %103 = vector.extract_strided_slice %89 {offsets = [2, 0, 0], sizes = [4, 16, 384], strides = [1, 1, 1]} : vector<6x16x384xbf16> to vector<4x16x384xbf16>
    %104 = vector.shape_cast %103 : vector<4x16x384xbf16> to vector<64x384xbf16>
    %c2_61 = arith.constant 2 : index
    %c0_62 = arith.constant 0 : index
    %c0_63 = arith.constant 0 : index
    %105 = vector.load %arg9[%c2_61, %c0_62, %c0_63] : memref<3x384x128xbf16, #tpu.memory_space<vmem>>, vector<1x384x128xbf16>
    %106 = vector.shape_cast %105 : vector<1x384x128xbf16> to vector<384x128xbf16>
    %cst_64 = arith.constant dense<0.000000e+00> : vector<64x128xf32>
    %107 = tpu.matmul %104, %106, %cst_64 {dimension_numbers = #tpu.dot_dimension_numbers<[1], [0], [0], [1], [0, 0, 1, 1], [], []>} : vector<64x384xbf16>, vector<384x128xbf16>, vector<64x128xf32> -> vector<64x128xf32>
    %108 = arith.addf %102, %107 : vector<64x128xf32>
    %c0_65 = arith.constant 0 : index
    %c0_66 = arith.constant 0 : index
    %109 = vector.load %arg10[%c0_65, %c0_66] : memref<1x128xf32, #tpu.memory_space<vmem>>, vector<1x128xf32>
    %110 = vector.broadcast %109 : vector<1x128xf32> to vector<64x128xf32>
    %111 = arith.addf %108, %110 : vector<64x128xf32>
    %cst_67 = arith.constant 0.000000e+00 : f32
    %112 = vector.broadcast %cst_67 : f32 to vector<64x128xf32>
    %113 = arith.maximumf %111, %112 : vector<64x128xf32>
    %114 = math.absf %111 : vector<64x128xf32>
    %cst_68 = arith.constant 0.000000e+00 : f32
    %115 = vector.broadcast %cst_68 : f32 to vector<64x128xf32>
    %116 = arith.subf %115, %114 : vector<64x128xf32>
    %117 = math.exp %116 : vector<64x128xf32>
    %118 = math.log1p %117 : vector<64x128xf32>
    %119 = arith.addf %113, %118 : vector<64x128xf32>
    %120 = math.tanh %119 : vector<64x128xf32>
    %121 = arith.mulf %111, %120 : vector<64x128xf32>
    %122 = arith.truncf %121 : vector<64x128xf32> to vector<64x128xbf16>
    %c0_69 = arith.constant 0 : index
    %c0_70 = arith.constant 0 : index
    %123 = vector.load %arg11[%c0_69, %c0_70] : memref<128x128xbf16, #tpu.memory_space<vmem>>, vector<128x128xbf16>
    %cst_71 = arith.constant dense<0.000000e+00> : vector<64x128xf32>
    %124 = tpu.matmul %122, %123, %cst_71 {dimension_numbers = #tpu.dot_dimension_numbers<[1], [0], [0], [1], [0, 0, 1, 1], [], []>} : vector<64x128xbf16>, vector<128x128xbf16>, vector<64x128xf32> -> vector<64x128xf32>
    %c0_72 = arith.constant 0 : index
    %c0_73 = arith.constant 0 : index
    %125 = vector.load %arg12[%c0_72, %c0_73] : memref<1x128xf32, #tpu.memory_space<vmem>>, vector<1x128xf32>
    %126 = vector.broadcast %125 : vector<1x128xf32> to vector<64x128xf32>
    %127 = arith.addf %124, %126 : vector<64x128xf32>
    %128 = arith.addf %17, %127 : vector<64x128xf32>
    %cst_74 = arith.constant 0.000000e+00 : f32
    %129 = vector.broadcast %cst_74 : f32 to vector<64x128xf32>
    %130 = arith.maximumf %128, %129 : vector<64x128xf32>
    %131 = math.absf %128 : vector<64x128xf32>
    %cst_75 = arith.constant 0.000000e+00 : f32
    %132 = vector.broadcast %cst_75 : f32 to vector<64x128xf32>
    %133 = arith.subf %132, %131 : vector<64x128xf32>
    %134 = math.exp %133 : vector<64x128xf32>
    %135 = math.log1p %134 : vector<64x128xf32>
    %136 = arith.addf %130, %135 : vector<64x128xf32>
    %137 = math.tanh %136 : vector<64x128xf32>
    %138 = arith.mulf %128, %137 : vector<64x128xf32>
    %139 = arith.truncf %138 : vector<64x128xf32> to vector<64x128xbf16>
    %c0_76 = arith.constant 0 : index
    %c0_77 = arith.constant 0 : index
    %140 = vector.load %arg13[%c0_76, %c0_77] : memref<128x128xbf16, #tpu.memory_space<vmem>>, vector<128x128xbf16>
    %cst_78 = arith.constant dense<0.000000e+00> : vector<64x128xf32>
    %141 = tpu.matmul %139, %140, %cst_78 {dimension_numbers = #tpu.dot_dimension_numbers<[1], [0], [0], [1], [0, 0, 1, 1], [], []>} : vector<64x128xbf16>, vector<128x128xbf16>, vector<64x128xf32> -> vector<64x128xf32>
    %142 = arith.truncf %32 : vector<64x128xf32> to vector<64x128xbf16>
    %c0_79 = arith.constant 0 : index
    %c0_80 = arith.constant 0 : index
    %143 = vector.load %arg14[%c0_79, %c0_80] : memref<128x128xbf16, #tpu.memory_space<vmem>>, vector<128x128xbf16>
    %cst_81 = arith.constant dense<0.000000e+00> : vector<64x128xf32>
    %144 = tpu.matmul %142, %143, %cst_81 {dimension_numbers = #tpu.dot_dimension_numbers<[1], [0], [0], [1], [0, 0, 1, 1], [], []>} : vector<64x128xbf16>, vector<128x128xbf16>, vector<64x128xf32> -> vector<64x128xf32>
    %145 = arith.addf %141, %144 : vector<64x128xf32>
    %c0_82 = arith.constant 0 : index
    %c0_83 = arith.constant 0 : index
    %146 = vector.load %arg15[%c0_82, %c0_83] : memref<1x128xf32, #tpu.memory_space<vmem>>, vector<1x128xf32>
    %147 = vector.broadcast %146 : vector<1x128xf32> to vector<64x128xf32>
    %148 = arith.addf %145, %147 : vector<64x128xf32>
    %cst_84 = arith.constant 0.000000e+00 : f32
    %149 = vector.broadcast %cst_84 : f32 to vector<64x128xf32>
    %150 = arith.maximumf %148, %149 : vector<64x128xf32>
    %151 = math.absf %148 : vector<64x128xf32>
    %cst_85 = arith.constant 0.000000e+00 : f32
    %152 = vector.broadcast %cst_85 : f32 to vector<64x128xf32>
    %153 = arith.subf %152, %151 : vector<64x128xf32>
    %154 = math.exp %153 : vector<64x128xf32>
    %155 = math.log1p %154 : vector<64x128xf32>
    %156 = arith.addf %150, %155 : vector<64x128xf32>
    %157 = math.tanh %156 : vector<64x128xf32>
    %158 = arith.mulf %148, %157 : vector<64x128xf32>
    %159 = vector.shape_cast %158 : vector<64x128xf32> to vector<4x16x128xf32>
    %c0_86 = arith.constant 0 : index
    %c0_87 = arith.constant 0 : index
    %c0_88 = arith.constant 0 : index
    %c0_89 = arith.constant 0 : index
    %160 = vector.load %arg16[%c0_86, %c0_87, %c0_88, %c0_89] : memref<1x4x16x128xf32, #tpu.memory_space<vmem>>, vector<1x4x16x128xf32>
    %161 = vector.shape_cast %160 : vector<1x4x16x128xf32> to vector<4x16x128xf32>
    %162 = vector.shape_cast %159 : vector<4x16x128xf32> to vector<1x4x16x128xf32>
    tpu.vector_store %arg16[%c0_86, %c0_87, %c0_88, %c0_89], %162 {strides = array<i32>} : memref<1x4x16x128xf32, #tpu.memory_space<vmem>>, vector<1x4x16x128xf32>,
    return
  }
  func.func @transform_0(%arg0: i32, %arg1: i32) -> (i32, i32, i32, i32) {
    %c4_i32 = arith.constant 4 : i32
    %0 = arith.muli %arg1, %c4_i32 : i32
    %c1_i32 = arith.constant 1 : i32
    %1 = arith.subi %0, %c1_i32 : i32
    %c0_i32 = arith.constant 0 : i32
    %2 = arith.maxsi %1, %c0_i32 : i32
    %c0_i32_0 = arith.constant 0 : i32
    %c0_i32_1 = arith.constant 0 : i32
    %c0_i32_2 = arith.constant 0 : i32
    return %arg0, %2, %c0_i32_0, %c0_i32_1 : i32, i32, i32, i32
  }
  func.func @transform_1(%arg0: i32, %arg1: i32) -> (i32, i32, i32, i32) {
    %c0_i32 = arith.constant 0 : i32
    %c0_i32_0 = arith.constant 0 : i32
    %c0_i32_1 = arith.constant 0 : i32
    return %arg0, %arg1, %c0_i32, %c0_i32_0 : i32, i32, i32, i32
  }
  func.func @transform_2(%arg0: i32, %arg1: i32) -> (i32, i32, i32, i32) {
    %c1_i32 = arith.constant 1 : i32
    %0 = arith.addi %arg1, %c1_i32 : i32
    %c4_i32 = arith.constant 4 : i32
    %1 = arith.muli %0, %c4_i32 : i32
    %c15_i32 = arith.constant 15 : i32
    %2 = arith.minsi %1, %c15_i32 : i32
    %c0_i32 = arith.constant 0 : i32
    %c0_i32_0 = arith.constant 0 : i32
    %c0_i32_1 = arith.constant 0 : i32
    return %arg0, %2, %c0_i32, %c0_i32_0 : i32, i32, i32, i32
  }
  func.func @transform_3(%arg0: i32, %arg1: i32) -> (i32, i32) {
    %c0_i32 = arith.constant 0 : i32
    %c0_i32_0 = arith.constant 0 : i32
    %c0_i32_1 = arith.constant 0 : i32
    return %c0_i32, %c0_i32_0 : i32, i32
  }
  func.func @transform_4(%arg0: i32, %arg1: i32) -> (i32, i32) {
    %c0_i32 = arith.constant 0 : i32
    %c0_i32_0 = arith.constant 0 : i32
    %c0_i32_1 = arith.constant 0 : i32
    return %c0_i32, %c0_i32_0 : i32, i32
  }
  func.func @transform_5(%arg0: i32, %arg1: i32) -> (i32, i32) {
    %c0_i32 = arith.constant 0 : i32
    %c0_i32_0 = arith.constant 0 : i32
    %c0_i32_1 = arith.constant 0 : i32
    return %c0_i32, %c0_i32_0 : i32, i32
  }
  func.func @transform_6(%arg0: i32, %arg1: i32) -> (i32, i32) {
    %c0_i32 = arith.constant 0 : i32
    %c0_i32_0 = arith.constant 0 : i32
    %c0_i32_1 = arith.constant 0 : i32
    return %c0_i32, %c0_i32_0 : i32, i32
  }
  func.func @transform_7(%arg0: i32, %arg1: i32) -> (i32, i32, i32) {
    %c0_i32 = arith.constant 0 : i32
    %c0_i32_0 = arith.constant 0 : i32
    %c0_i32_1 = arith.constant 0 : i32
    %c0_i32_2 = arith.constant 0 : i32
    return %c0_i32, %c0_i32_0, %c0_i32_1 : i32, i32, i32
  }
  func.func @transform_8(%arg0: i32, %arg1: i32) -> (i32, i32) {
    %c0_i32 = arith.constant 0 : i32
    %c0_i32_0 = arith.constant 0 : i32
    %c0_i32_1 = arith.constant 0 : i32
    return %c0_i32, %c0_i32_0 : i32, i32
  }
  func.func @transform_9(%arg0: i32, %arg1: i32) -> (i32, i32) {
    %c0_i32 = arith.constant 0 : i32
    %c0_i32_0 = arith.constant 0 : i32
    %c0_i32_1 = arith.constant 0 : i32
    return %c0_i32, %c0_i32_0 : i32, i32
  }
  func.func @transform_10(%arg0: i32, %arg1: i32) -> (i32, i32) {
    %c0_i32 = arith.constant 0 : i32
    %c0_i32_0 = arith.constant 0 : i32
    %c0_i32_1 = arith.constant 0 : i32
    return %c0_i32, %c0_i32_0 : i32, i32
  }
  func.func @transform_11(%arg0: i32, %arg1: i32) -> (i32, i32) {
    %c0_i32 = arith.constant 0 : i32
    %c0_i32_0 = arith.constant 0 : i32
    %c0_i32_1 = arith.constant 0 : i32
    return %c0_i32, %c0_i32_0 : i32, i32
  }
  func.func @transform_12(%arg0: i32, %arg1: i32) -> (i32, i32) {
    %c0_i32 = arith.constant 0 : i32
    %c0_i32_0 = arith.constant 0 : i32
    %c0_i32_1 = arith.constant 0 : i32
    return %c0_i32, %c0_i32_0 : i32, i32
  }
  func.func @transform_13(%arg0: i32, %arg1: i32) -> (i32, i32) {
    %c0_i32 = arith.constant 0 : i32
    %c0_i32_0 = arith.constant 0 : i32
    %c0_i32_1 = arith.constant 0 : i32
    return %c0_i32, %c0_i32_0 : i32, i32
  }
  func.func @transform_14(%arg0: i32, %arg1: i32) -> (i32, i32, i32, i32) {
    %c0_i32 = arith.constant 0 : i32
    %c0_i32_0 = arith.constant 0 : i32
    %c0_i32_1 = arith.constant 0 : i32
    return %arg0, %arg1, %c0_i32, %c0_i32_0 : i32, i32, i32, i32
  }
}

</mosaic_0001>

<llo_original>
// kernel: bottleneck_csp_pallas.1
$region0: #{bottleneck_csp_pallas.1}
  #allocation0 [shape = 'u32[]', space=smem, size = 0x4, offset = 0x4, fixed_abs, tag = 'smem constant byte address 0x4 - core index']
  #allocation1 [shape = 'u32[144,128]{1,0:T(1,128)}', space=vmem, size = 0x12000, scoped, tag = 'internal scratch']
  #allocation2 [shape = 'f32[6,18,128]{2,1,0:T(8,128)}', space=vmem, size = 0x12000, scoped, tag = 'scratch operand']
  %s0 = inlined_call_operand.vmem [shape: bf16[2,16,16,128], index: 0, kind: input, shape index: {}, may-alias: {0,1,2}]
  %s1 = inlined_call_operand.vmem [shape: bf16[2,16,16,128], index: 1, kind: input, shape index: {}, may-alias: {0,1,2}]
  %s2 = inlined_call_operand.vmem [shape: bf16[2,16,16,128], index: 2, kind: input, shape index: {}, may-alias: {0,1,2}]
  %s3 = inlined_call_operand.vmem [shape: bf16[128,128], index: 3, kind: input, shape index: {}]
  %s4 = inlined_call_operand.vmem [shape: f32[1,128], index: 4, kind: input, shape index: {}]
  %s5 = inlined_call_operand.vmem [shape: bf16[128,128], index: 5, kind: input, shape index: {}]
  %s6 = inlined_call_operand.vmem [shape: f32[1,128], index: 6, kind: input, shape index: {}]
  %s7 = inlined_call_operand.vmem [shape: bf16[3,384,128], index: 7, kind: input, shape index: {}]
  %s8 = inlined_call_operand.vmem [shape: f32[1,128], index: 8, kind: input, shape index: {}]
  %s9 = inlined_call_operand.vmem [shape: bf16[128,128], index: 9, kind: input, shape index: {}]
  %s10 = inlined_call_operand.vmem [shape: f32[1,128], index: 10, kind: input, shape index: {}]
  %s11 = inlined_call_operand.vmem [shape: bf16[128,128], index: 11, kind: input, shape index: {}]
  %s12 = inlined_call_operand.vmem [shape: bf16[128,128], index: 12, kind: input, shape index: {}]
  %s13 = inlined_call_operand.vmem [shape: f32[1,128], index: 13, kind: input, shape index: {}]
  %s14 = inlined_call_operand.vmem [shape: f32[2,16,16,128], index: 14, kind: output, shape index: {}]
  %s15 = sld [smem:[#allocation0]]
  $region89: #{bottleneck_csp_pallas.1} parent=0
    _
  %s17 = ssub.s32 1, %s15
  %s18 = scalar_select 0, %s17, %s15
  loop: start=0, step=1, limit=10
  $region2: #{bottleneck_csp_pallas.1} parent=0 // loop_pre_header
    _
  $region3: #{bottleneck_csp_pallas.1} parent=0 // loop_header
    %s20 = sphi 0, %s24
    %p21 = scmp.ge.s32.totalorder %s20, 10
    %s27 = sphi 0, %s39
    %s28 = sphi 0, %s35
    %s29 = sphi 0, %s27
    %s30 = sphi 0, %s28
    %s31 = sphi 0, %s29
    %s32 = sphi 0, %s30
    %s52 = sphi 0, %s54
    %s55 = sphi 0, %s52
    %s56 = sphi 0, %s55
    %s72 = sphi 0, %s56
    %s80 = sphi 0, %s82
    %s83 = sphi 0, %s80
    %s84 = sphi 0, %s83
    %s100 = sphi 0, %s84
    %s116 = sphi 0, %s118
    %s119 = sphi 0, %s116
    %s120 = sphi 0, %s119
    %s136 = sphi 0, %s120
    %s140 = sphi 0, %s140
    %s142 = sphi 0, %s140
    %s143 = sphi 0, %s142
    %s157 = sphi 0, %s143
    %s161 = sphi 0, %s161
    %s163 = sphi 0, %s161
    %s164 = sphi 0, %s163
    %s178 = sphi 0, %s164
    %s182 = sphi 0, %s182
    %s184 = sphi 0, %s182
    %s185 = sphi 0, %s184
    %s199 = sphi 0, %s185
    %s203 = sphi 0, %s203
    %s205 = sphi 0, %s203
    %s206 = sphi 0, %s205
    %s220 = sphi 0, %s206
    %s224 = sphi 0, %s224
    %s226 = sphi 0, %s224
    %s227 = sphi 0, %s226
    %s241 = sphi 0, %s227
    %s245 = sphi 0, %s245
    %s247 = sphi 0, %s245
    %s248 = sphi 0, %s247
    %s262 = sphi 0, %s248
    %s266 = sphi 0, %s266
    %s268 = sphi 0, %s266
    %s269 = sphi 0, %s268
    %s283 = sphi 0, %s269
    %s287 = sphi 0, %s287
    %s289 = sphi 0, %s287
    %s290 = sphi 0, %s289
    %s304 = sphi 0, %s290
    %s308 = sphi 0, %s308
    %s310 = sphi 0, %s308
    %s311 = sphi 0, %s310
    %s325 = sphi 0, %s311
    %s329 = sphi 0, %s329
    %s331 = sphi 0, %s329
    %s332 = sphi 0, %s331
    %s346 = sphi 0, %s332
    %s350 = sphi 0, %s350
    %s352 = sphi 0, %s350
    %s353 = sphi 0, %s352
    %s367 = sphi 0, %s353
    %s375 = sphi 0, %s377
    %s378 = sphi 0, %s375
    %s379 = sphi 0, %s378
    %s395 = sphi 0, %s379
  $region4: #{bottleneck_csp_pallas.1} parent=0 // loop_header_branch
    %23 = sbr.rel (%p21) target = $region8
  $region5: #{bottleneck_csp_pallas.1} parent=0 // loop_body
    %s25 = ssub.s32 %s20, 1
    %s26 = ssub.s32 %s20, 2
    %s33 = sadd.s32 1, %s28
    %p34 = scmp.ge.s32.totalorder %s33, 4
    %s35 = scalar_select %p34, 0, %s33
    %s36 = sadd.s32 1, %s27
    %s37 = scalar_select %p34, %s36, %s27
    %p38 = scmp.ge.s32.totalorder %s37, 2
    %s39 = scalar_select %p38, 0, %s37
    %s40 = smul.u32 %s28, 4
    %s41 = ssub.s32 %s40, 1
    %p42 = scmp.gt.s32.totalorder %s41, 0
    %s43 = scalar_select %p42, %s41, 0
    %s44 = smul.u32 %s35, 4
    %s45 = ssub.s32 %s44, 1
    %p46 = scmp.gt.s32.totalorder %s45, 0
    %s47 = scalar_select %p46, %s45, 0
    %s48 = ssub.s32 %s27, %s39
    %s49 = ssub.s32 %s43, %s47
    %s50 = sor.u32 %s48, %s49
    %p51 = scmp.eq.s32.totalorder %s50, 0
    %s53 = sadd.s32 %s52, 1
    %s54 = scalar_select %p51, %s52, %s53
    %p57 = pneg %p51
    %p58 = scmp.eq.s32.totalorder %s20, 7
    %p59 = por %p57, %p58
    %p60 = scmp.ne.s32.totalorder %s52, %s55
    %p61 = scmp.eq.s32.totalorder %s20, 0
    %p62 = por %p60, %p61
    %p63 = scmp.ne.s32.totalorder %s52, %s55
    %p64 = scmp.eq.s32.totalorder %s25, 7
    %p65 = por %p63, %p64
    %p66 = scmp.ne.s32.totalorder %s55, %s56
    %p67 = scmp.eq.s32.totalorder %s25, 0
    %p68 = por %p66, %p67
    %p69 = scmp.ne.s32.totalorder %s55, %s56
    %p70 = scmp.eq.s32.totalorder %s26, 7
    %p71 = por %p69, %p70
    %p73 = scmp.ne.s32.totalorder %s56, %s72
    %p74 = scmp.eq.s32.totalorder %s26, 0
    %p75 = por %p73, %p74
    %s76 = ssub.s32 %s27, %s39
    %s77 = ssub.s32 %s28, %s35
    %s78 = sor.u32 %s76, %s77
    %p79 = scmp.eq.s32.totalorder %s78, 0
    %s81 = sadd.s32 %s80, 1
    %s82 = scalar_select %p79, %s80, %s81
    %p85 = pneg %p79
    %p86 = scmp.eq.s32.totalorder %s20, 7
    %p87 = por %p85, %p86
    %p88 = scmp.ne.s32.totalorder %s80, %s83
    %p89 = scmp.eq.s32.totalorder %s20, 0
    %p90 = por %p88, %p89
    %p91 = scmp.ne.s32.totalorder %s80, %s83
    %p92 = scmp.eq.s32.totalorder %s25, 7
    %p93 = por %p91, %p92
    %p94 = scmp.ne.s32.totalorder %s83, %s84
    %p95 = scmp.eq.s32.totalorder %s25, 0
    %p96 = por %p94, %p95
    %p97 = scmp.ne.s32.totalorder %s83, %s84
    %p98 = scmp.eq.s32.totalorder %s26, 7
    %p99 = por %p97, %p98
    %p101 = scmp.ne.s32.totalorder %s84, %s100
    %p102 = scmp.eq.s32.totalorder %s26, 0
    %p103 = por %p101, %p102
    %s104 = sadd.s32 %s28, 1
    %s105 = smul.u32 %s104, 4
    %p106 = scmp.lt.s32.totalorder %s105, 15
    %s107 = scalar_select %p106, %s105, 15
    %s108 = sadd.s32 %s35, 1
    %s109 = smul.u32 %s108, 4
    %p110 = scmp.lt.s32.totalorder %s109, 15
    %s111 = scalar_select %p110, %s109, 15
    %s112 = ssub.s32 %s27, %s39
    %s113 = ssub.s32 %s107, %s111
    %s114 = sor.u32 %s112, %s113
    %p115 = scmp.eq.s32.totalorder %s114, 0
    %s117 = sadd.s32 %s116, 1
    %s118 = scalar_select %p115, %s116, %s117
    %p121 = pneg %p115
    %p122 = scmp.eq.s32.totalorder %s20, 7
    %p123 = por %p121, %p122
    %p124 = scmp.ne.s32.totalorder %s116, %s119
    %p125 = scmp.eq.s32.totalorder %s20, 0
    %p126 = por %p124, %p125
    %p127 = scmp.ne.s32.totalorder %s116, %s119
    %p128 = scmp.eq.s32.totalorder %s25, 7
    %p129 = por %p127, %p128
    %p130 = scmp.ne.s32.totalorder %s119, %s120
    %p131 = scmp.eq.s32.totalorder %s25, 0
    %p132 = por %p130, %p131
    %p133 = scmp.ne.s32.totalorder %s119, %s120
    %p134 = scmp.eq.s32.totalorder %s26, 7
    %p135 = por %p133, %p134
    %p137 = scmp.ne.s32.totalorder %s120, %s136
    %p138 = scmp.eq.s32.totalorder %s26, 0
    %p139 = por %p137, %p138
    %s141 = sadd.s32 %s140, 1
    %p144 = scmp.eq.s32.totalorder %s20, 7
    %p145 = scmp.ne.s32.totalorder %s140, %s142
    %p146 = scmp.eq.s32.totalorder %s20, 0
    %p147 = por %p145, %p146
    %p148 = scmp.ne.s32.totalorder %s140, %s142
    %p149 = scmp.eq.s32.totalorder %s25, 7
    %p150 = por %p148, %p149
    %p151 = scmp.ne.s32.totalorder %s142, %s143
    %p152 = scmp.eq.s32.totalorder %s25, 0
    %p153 = por %p151, %p152
    %p154 = scmp.ne.s32.totalorder %s142, %s143
    %p155 = scmp.eq.s32.totalorder %s26, 7
    %p156 = por %p154, %p155
    %p158 = scmp.ne.s32.totalorder %s143, %s157
    %p159 = scmp.eq.s32.totalorder %s26, 0
    %p160 = por %p158, %p159
    %s162 = sadd.s32 %s161, 1
    %p165 = scmp.eq.s32.totalorder %s20, 7
    %p166 = scmp.ne.s32.totalorder %s161, %s163
    %p167 = scmp.eq.s32.totalorder %s20, 0
    %p168 = por %p166, %p167
    %p169 = scmp.ne.s32.totalorder %s161, %s163
    %p170 = scmp.eq.s32.totalorder %s25, 7
    %p171 = por %p169, %p170
    %p172 = scmp.ne.s32.totalorder %s163, %s164
    %p173 = scmp.eq.s32.totalorder %s25, 0
    %p174 = por %p172, %p173
    %p175 = scmp.ne.s32.totalorder %s163, %s164
    %p176 = scmp.eq.s32.totalorder %s26, 7
    %p177 = por %p175, %p176
    %p179 = scmp.ne.s32.totalorder %s164, %s178
    %p180 = scmp.eq.s32.totalorder %s26, 0
    %p181 = por %p179, %p180
    %s183 = sadd.s32 %s182, 1
    %p186 = scmp.eq.s32.totalorder %s20, 7
    %p187 = scmp.ne.s32.totalorder %s182, %s184
    %p188 = scmp.eq.s32.totalorder %s20, 0
    %p189 = por %p187, %p188
    %p190 = scmp.ne.s32.totalorder %s182, %s184
    %p191 = scmp.eq.s32.totalorder %s25, 7
    %p192 = por %p190, %p191
    %p193 = scmp.ne.s32.totalorder %s184, %s185
    %p194 = scmp.eq.s32.totalorder %s25, 0
    %p195 = por %p193, %p194
    %p196 = scmp.ne.s32.totalorder %s184, %s185
    %p197 = scmp.eq.s32.totalorder %s26, 7
    %p198 = por %p196, %p197
    %p200 = scmp.ne.s32.totalorder %s185, %s199
    %p201 = scmp.eq.s32.totalorder %s26, 0
    %p202 = por %p200, %p201
    %s204 = sadd.s32 %s203, 1
    %p207 = scmp.eq.s32.totalorder %s20, 7
    %p208 = scmp.ne.s32.totalorder %s203, %s205
    %p209 = scmp.eq.s32.totalorder %s20, 0
    %p210 = por %p208, %p209
    %p211 = scmp.ne.s32.totalorder %s203, %s205
    %p212 = scmp.eq.s32.totalorder %s25, 7
    %p213 = por %p211, %p212
    %p214 = scmp.ne.s32.totalorder %s205, %s206
    %p215 = scmp.eq.s32.totalorder %s25, 0
    %p216 = por %p214, %p215
    %p217 = scmp.ne.s32.totalorder %s205, %s206
    %p218 = scmp.eq.s32.totalorder %s26, 7
    %p219 = por %p217, %p218
    %p221 = scmp.ne.s32.totalorder %s206, %s220
    %p222 = scmp.eq.s32.totalorder %s26, 0
    %p223 = por %p221, %p222
    %s225 = sadd.s32 %s224, 1
    %p228 = scmp.eq.s32.totalorder %s20, 7
    %p229 = scmp.ne.s32.totalorder %s224, %s226
    %p230 = scmp.eq.s32.totalorder %s20, 0
    %p231 = por %p229, %p230
    %p232 = scmp.ne.s32.totalorder %s224, %s226
    %p233 = scmp.eq.s32.totalorder %s25, 7
    %p234 = por %p232, %p233
    %p235 = scmp.ne.s32.totalorder %s226, %s227
    %p236 = scmp.eq.s32.totalorder %s25, 0
    %p237 = por %p235, %p236
    %p238 = scmp.ne.s32.totalorder %s226, %s227
    %p239 = scmp.eq.s32.totalorder %s26, 7
    %p240 = por %p238, %p239
    %p242 = scmp.ne.s32.totalorder %s227, %s241
    %p243 = scmp.eq.s32.totalorder %s26, 0
    %p244 = por %p242, %p243
    %s246 = sadd.s32 %s245, 1
    %p249 = scmp.eq.s32.totalorder %s20, 7
    %p250 = scmp.ne.s32.totalorder %s245, %s247
    %p251 = scmp.eq.s32.totalorder %s20, 0
    %p252 = por %p250, %p251
    %p253 = scmp.ne.s32.totalorder %s245, %s247
    %p254 = scmp.eq.s32.totalorder %s25, 7
    %p255 = por %p253, %p254
    %p256 = scmp.ne.s32.totalorder %s247, %s248
    %p257 = scmp.eq.s32.totalorder %s25, 0
    %p258 = por %p256, %p257
    %p259 = scmp.ne.s32.totalorder %s247, %s248
    %p260 = scmp.eq.s32.totalorder %s26, 7
    %p261 = por %p259, %p260
    %p263 = scmp.ne.s32.totalorder %s248, %s262
    %p264 = scmp.eq.s32.totalorder %s26, 0
    %p265 = por %p263, %p264
    %s267 = sadd.s32 %s266, 1
    %p270 = scmp.eq.s32.totalorder %s20, 7
    %p271 = scmp.ne.s32.totalorder %s266, %s268
    %p272 = scmp.eq.s32.totalorder %s20, 0
    %p273 = por %p271, %p272
    %p274 = scmp.ne.s32.totalorder %s266, %s268
    %p275 = scmp.eq.s32.totalorder %s25, 7
    %p276 = por %p274, %p275
    %p277 = scmp.ne.s32.totalorder %s268, %s269
    %p278 = scmp.eq.s32.totalorder %s25, 0
    %p279 = por %p277, %p278
    %p280 = scmp.ne.s32.totalorder %s268, %s269
    %p281 = scmp.eq.s32.totalorder %s26, 7
    %p282 = por %p280, %p281
    %p284 = scmp.ne.s32.totalorder %s269, %s283
    %p285 = scmp.eq.s32.totalorder %s26, 0
    %p286 = por %p284, %p285
    %s288 = sadd.s32 %s287, 1
    %p291 = scmp.eq.s32.totalorder %s20, 7
    %p292 = scmp.ne.s32.totalorder %s287, %s289
    %p293 = scmp.eq.s32.totalorder %s20, 0
    %p294 = por %p292, %p293
    %p295 = scmp.ne.s32.totalorder %s287, %s289
    %p296 = scmp.eq.s32.totalorder %s25, 7
    %p297 = por %p295, %p296
    %p298 = scmp.ne.s32.totalorder %s289, %s290
    %p299 = scmp.eq.s32.totalorder %s25, 0
    %p300 = por %p298, %p299
    %p301 = scmp.ne.s32.totalorder %s289, %s290
    %p302 = scmp.eq.s32.totalorder %s26, 7
    %p303 = por %p301, %p302
    %p305 = scmp.ne.s32.totalorder %s290, %s304
    %p306 = scmp.eq.s32.totalorder %s26, 0
    %p307 = por %p305, %p306
    %s309 = sadd.s32 %s308, 1
    %p312 = scmp.eq.s32.totalorder %s20, 7
    %p313 = scmp.ne.s32.totalorder %s308, %s310
    %p314 = scmp.eq.s32.totalorder %s20, 0
    %p315 = por %p313, %p314
    %p316 = scmp.ne.s32.totalorder %s308, %s310
    %p317 = scmp.eq.s32.totalorder %s25, 7
    %p318 = por %p316, %p317
    %p319 = scmp.ne.s32.totalorder %s310, %s311
    %p320 = scmp.eq.s32.totalorder %s25, 0
    %p321 = por %p319, %p320
    %p322 = scmp.ne.s32.totalorder %s310, %s311
    %p323 = scmp.eq.s32.totalorder %s26, 7
    %p324 = por %p322, %p323
    %p326 = scmp.ne.s32.totalorder %s311, %s325
    %p327 = scmp.eq.s32.totalorder %s26, 0
    %p328 = por %p326, %p327
    %s330 = sadd.s32 %s329, 1
    %p333 = scmp.eq.s32.totalorder %s20, 7
    %p334 = scmp.ne.s32.totalorder %s329, %s331
    %p335 = scmp.eq.s32.totalorder %s20, 0
    %p336 = por %p334, %p335
    %p337 = scmp.ne.s32.totalorder %s329, %s331
    %p338 = scmp.eq.s32.totalorder %s25, 7
    %p339 = por %p337, %p338
    %p340 = scmp.ne.s32.totalorder %s331, %s332
    %p341 = scmp.eq.s32.totalorder %s25, 0
    %p342 = por %p340, %p341
    %p343 = scmp.ne.s32.totalorder %s331, %s332
    %p344 = scmp.eq.s32.totalorder %s26, 7
    %p345 = por %p343, %p344
    %p347 = scmp.ne.s32.totalorder %s332, %s346
    %p348 = scmp.eq.s32.totalorder %s26, 0
    %p349 = por %p347, %p348
    %s351 = sadd.s32 %s350, 1
    %p354 = scmp.eq.s32.totalorder %s20, 7
    %p355 = scmp.ne.s32.totalorder %s350, %s352
    %p356 = scmp.eq.s32.totalorder %s20, 0
    %p357 = por %p355, %p356
    %p358 = scmp.ne.s32.totalorder %s350, %s352
    %p359 = scmp.eq.s32.totalorder %s25, 7
    %p360 = por %p358, %p359
    %p361 = scmp.ne.s32.totalorder %s352, %s353
    %p362 = scmp.eq.s32.totalorder %s25, 0
    %p363 = por %p361, %p362
    %p364 = scmp.ne.s32.totalorder %s352, %s353
    %p365 = scmp.eq.s32.totalorder %s26, 7
    %p366 = por %p364, %p365
    %p368 = scmp.ne.s32.totalorder %s353, %s367
    %p369 = scmp.eq.s32.totalorder %s26, 0
    %p370 = por %p368, %p369
    %s371 = ssub.s32 %s27, %s39
    %s372 = ssub.s32 %s28, %s35
    %s373 = sor.u32 %s371, %s372
    %p374 = scmp.eq.s32.totalorder %s373, 0
    %s376 = sadd.s32 %s375, 1
    %s377 = scalar_select %p374, %s375, %s376
    %p380 = pneg %p374
    %p381 = scmp.eq.s32.totalorder %s20, 7
    %p382 = por %p380, %p381
    %p383 = scmp.ne.s32.totalorder %s375, %s378
    %p384 = scmp.eq.s32.totalorder %s20, 0
    %p385 = por %p383, %p384
    %p386 = scmp.ne.s32.totalorder %s375, %s378
    %p387 = scmp.eq.s32.totalorder %s25, 7
    %p388 = por %p386, %p387
    %p389 = scmp.ne.s32.totalorder %s378, %s379
    %p390 = scmp.eq.s32.totalorder %s25, 0
    %p391 = por %p389, %p390
    %p392 = scmp.ne.s32.totalorder %s378, %s379
    %p393 = scmp.eq.s32.totalorder %s26, 7
    %p394 = por %p392, %p393
    %p396 = scmp.ne.s32.totalorder %s379, %s395
    %p397 = scmp.eq.s32.totalorder %s26, 0
    %p398 = por %p396, %p397
    %p399 = scmp.le.s32.totalorder 1, %s20
    %p400 = scmp.lt.s32.totalorder %s20, 9
    %p401 = pnand %p399, %p400
    %p402 = pneg %p401
    // Predicated region
    $region9: #{bottleneck_csp_pallas.1} parent=5 // pred_check
      _
    $region10: #{bottleneck_csp_pallas.1} parent=5 // pred_check_branch
      %404 = sbr.rel (%p401) target = $region12
    $region11: #{bottleneck_csp_pallas.1} parent=5 // pred_region
      %s405 = ssub.s32 %s20, 1
      // Predicated region
      $region13: #{bottleneck_csp_pallas.1} parent=11 // pred_check
        %p406 = pneg %p153
      $region14: #{bottleneck_csp_pallas.1} parent=11 // pred_check_branch
        %408 = sbr.rel (%p406) target = $region16
      $region15: #{bottleneck_csp_pallas.1} parent=11 // pred_region
        _
      $region16: #{bottleneck_csp_pallas.1} parent=11 // pred_fallthru
        _
      // Predicated region
      $region17: #{bottleneck_csp_pallas.1} parent=11 // pred_check
        %p409 = pneg %p174
      $region18: #{bottleneck_csp_pallas.1} parent=11 // pred_check_branch
        %411 = sbr.rel (%p409) target = $region20
      $region19: #{bottleneck_csp_pallas.1} parent=11 // pred_region
        _
      $region20: #{bottleneck_csp_pallas.1} parent=11 // pred_fallthru
        _
      // Predicated region
      $region21: #{bottleneck_csp_pallas.1} parent=11 // pred_check
        %p412 = pneg %p195
      $region22: #{bottleneck_csp_pallas.1} parent=11 // pred_check_branch
        %414 = sbr.rel (%p412) target = $region24
      $region23: #{bottleneck_csp_pallas.1} parent=11 // pred_region
        _
      $region24: #{bottleneck_csp_pallas.1} parent=11 // pred_fallthru
        _
      // Predicated region
      $region25: #{bottleneck_csp_pallas.1} parent=11 // pred_check
        %p415 = pneg %p216
      $region26: #{bottleneck_csp_pallas.1} parent=11 // pred_check_branch
        %417 = sbr.rel (%p415) target = $region28
      $region27: #{bottleneck_csp_pallas.1} parent=11 // pred_region
        _
      $region28: #{bottleneck_csp_pallas.1} parent=11 // pred_fallthru
        _
      // Predicated region
      $region29: #{bottleneck_csp_pallas.1} parent=11 // pred_check
        %p418 = pneg %p237
      $region30: #{bottleneck_csp_pallas.1} parent=11 // pred_check_branch
        %420 = sbr.rel (%p418) target = $region32
      $region31: #{bottleneck_csp_pallas.1} parent=11 // pred_region
        _
      $region32: #{bottleneck_csp_pallas.1} parent=11 // pred_fallthru
        _
      // Predicated region
      $region33: #{bottleneck_csp_pallas.1} parent=11 // pred_check
        %p421 = pneg %p258
      $region34: #{bottleneck_csp_pallas.1} parent=11 // pred_check_branch
        %423 = sbr.rel (%p421) target = $region36
      $region35: #{bottleneck_csp_pallas.1} parent=11 // pred_region
        _
      $region36: #{bottleneck_csp_pallas.1} parent=11 // pred_fallthru
        _
      // Predicated region
      $region37: #{bottleneck_csp_pallas.1} parent=11 // pred_check
        %p424 = pneg %p279
      $region38: #{bottleneck_csp_pallas.1} parent=11 // pred_check_branch
        %426 = sbr.rel (%p424) target = $region40
      $region39: #{bottleneck_csp_pallas.1} parent=11 // pred_region
        _
      $region40: #{bottleneck_csp_pallas.1} parent=11 // pred_fallthru
        _
      // Predicated region
      $region41: #{bottleneck_csp_pallas.1} parent=11 // pred_check
        %p427 = pneg %p300
      $region42: #{bottleneck_csp_pallas.1} parent=11 // pred_check_branch
        %429 = sbr.rel (%p427) target = $region44
      $region43: #{bottleneck_csp_pallas.1} parent=11 // pred_region
        _
      $region44: #{bottleneck_csp_pallas.1} parent=11 // pred_fallthru
        _
      // Predicated region
      $region45: #{bottleneck_csp_pallas.1} parent=11 // pred_check
        %p430 = pneg %p321
      $region46: #{bottleneck_csp_pallas.1} parent=11 // pred_check_branch
        %432 = sbr.rel (%p430) target = $region48
      $region47: #{bottleneck_csp_pallas.1} parent=11 // pred_region
        _
      $region48: #{bottleneck_csp_pallas.1} parent=11 // pred_fallthru
        _
      // Predicated region
      $region49: #{bottleneck_csp_pallas.1} parent=11 // pred_check
        %p433 = pneg %p342
      $region50: #{bottleneck_csp_pallas.1} parent=11 // pred_check_branch
        %435 = sbr.rel (%p433) target = $region52
      $region51: #{bottleneck_csp_pallas.1} parent=11 // pred_region
        _
      $region52: #{bottleneck_csp_pallas.1} parent=11 // pred_fallthru
        _
      // Predicated region
      $region53: #{bottleneck_csp_pallas.1} parent=11 // pred_check
        %p436 = pneg %p363
      $region54: #{bottleneck_csp_pallas.1} parent=11 // pred_check_branch
        %438 = sbr.rel (%p436) target = $region56
      $region55: #{bottleneck_csp_pallas.1} parent=11 // pred_region
        _
      $region56: #{bottleneck_csp_pallas.1} parent=11 // pred_fallthru
        _
    $region12: #{bottleneck_csp_pallas.1} parent=5 // pred_fallthru
      _
    %p439 = scmp.lt.s32.totalorder %s20, 8
    // Predicated region
    $region57: #{bottleneck_csp_pallas.1} parent=5 // pred_check
      %p440 = pneg %p439
    $region58: #{bottleneck_csp_pallas.1} parent=5 // pred_check_branch
      %442 = sbr.rel (%p440) target = $region60
    $region59: #{bottleneck_csp_pallas.1} parent=5 // pred_region
      // Predicated region
      $region61: #{bottleneck_csp_pallas.1} parent=59 // pred_check
        %p443 = pneg %p62
      $region62: #{bottleneck_csp_pallas.1} parent=59 // pred_check_branch
        %445 = sbr.rel (%p443) target = $region64
      $region63: #{bottleneck_csp_pallas.1} parent=59 // pred_region
        %s446 = smul.u32 %s28, 4
        %s447 = ssub.s32 %s446, 1
        %p448 = scmp.gt.s32.totalorder %s447, 0
        %s449 = scalar_select %p448, %s447, 0
        %p450 = scmp.lt.s32.totalorder %s27, 1
        %s451 = scalar_select %p450, %s27, 1
        %p452 = scmp.lt.s32.totalorder %s449, 15
        %s453 = scalar_select %p452, %s449, 15
        %s454 = smul.addr %s453, 2
        %s455 = smul.addr %s451, 32
        %s456 = sadd.s32 %s454, %s455
        %s457 = smul.addr %s456, 4
        %s458 = scalar_lea.vmem %s0, %s457
        %s459 = smul.u32 %s28, 4
        %s460 = ssub.s32 %s459, 1
        %p461 = scmp.gt.s32.totalorder %s460, 0
        %s462 = scalar_select %p461, %s460, 0
      $region64: #{bottleneck_csp_pallas.1} parent=59 // pred_fallthru
        _
      // Predicated region
      $region65: #{bottleneck_csp_pallas.1} parent=59 // pred_check
        %p463 = pneg %p90
      $region66: #{bottleneck_csp_pallas.1} parent=59 // pred_check_branch
        %465 = sbr.rel (%p463) target = $region68
      $region67: #{bottleneck_csp_pallas.1} parent=59 // pred_region
        %s466 = smul.u32 4, %s28
        %p467 = scmp.lt.s32.totalorder %s27, 1
        %s468 = scalar_select %p467, %s27, 1
        %p469 = scmp.lt.s32.totalorder %s466, 15
        %s470 = scalar_select %p469, %s466, 15
        %s471 = smul.addr %s470, 2
        %s472 = smul.addr %s468, 32
        %s473 = sadd.s32 %s471, %s472
        %s474 = smul.addr %s473, 4
        %s475 = scalar_lea.vmem %s1, %s474
        %s476 = smul.u32 4, %s28
      $region68: #{bottleneck_csp_pallas.1} parent=59 // pred_fallthru
        _
      // Predicated region
      $region69: #{bottleneck_csp_pallas.1} parent=59 // pred_check
        %p477 = pneg %p126
      $region70: #{bottleneck_csp_pallas.1} parent=59 // pred_check_branch
        %479 = sbr.rel (%p477) target = $region72
      $region71: #{bottleneck_csp_pallas.1} parent=59 // pred_region
        %s480 = sadd.s32 %s28, 1
        %s481 = smul.u32 %s480, 4
        %p482 = scmp.lt.s32.totalorder %s481, 15
        %s483 = scalar_select %p482, %s481, 15
        %p484 = scmp.lt.s32.totalorder %s27, 1
        %s485 = scalar_select %p484, %s27, 1
        %p486 = scmp.lt.s32.totalorder %s483, 15
        %s487 = scalar_select %p486, %s483, 15
        %s488 = smul.addr %s487, 2
        %s489 = smul.addr %s485, 32
        %s490 = sadd.s32 %s488, %s489
        %s491 = smul.addr %s490, 4
        %s492 = scalar_lea.vmem %s2, %s491
        %s493 = sadd.s32 %s28, 1
        %s494 = smul.u32 %s493, 4
        %p495 = scmp.lt.s32.totalorder %s494, 15
        %s496 = scalar_select %p495, %s494, 15
      $region72: #{bottleneck_csp_pallas.1} parent=59 // pred_fallthru
        _
    $region60: #{bottleneck_csp_pallas.1} parent=5 // pred_fallthru
      _
    %p497 = scmp.le.s32.totalorder 1, %s20
    %p498 = scmp.lt.s32.totalorder %s20, 9
    %p499 = pnand %p497, %p498
    %p500 = pneg %p499
    // Predicated region
    $region73: #{bottleneck_csp_pallas.1} parent=5 // pred_check
      _
    $region74: #{bottleneck_csp_pallas.1} parent=5 // pred_check_branch
      %502 = sbr.rel (%p499) target = $region76
    $region75: #{bottleneck_csp_pallas.1} parent=5 // pred_region
      %s503 = ssub.s32 %s20, 1
      %s504 = smul.u32 %s30, 4
      %s505 = ssub.s32 %s504, 1
      %p506 = scmp.gt.s32.totalorder %s505, 0
      %s507 = scalar_select %p506, %s505, 0
      %p508 = scmp.lt.s32.totalorder %s29, 1
      %s509 = scalar_select %p508, %s29, 1
      %p510 = scmp.lt.s32.totalorder %s507, 15
      %s511 = scalar_select %p510, %s507, 15
      %s512 = smul.addr %s511, 2
      %s513 = smul.addr %s509, 32
      %s514 = sadd.s32 %s512, %s513
      %s515 = smul.addr %s514, 4
      %s516 = scalar_lea.vmem %s0, %s515
      %p517 = pneg %p68
      %p518 = pneg %p65
      %s519 = smul.u32 4, %s30
      %p520 = scmp.lt.s32.totalorder %s29, 1
      %s521 = scalar_select %p520, %s29, 1
      %p522 = scmp.lt.s32.totalorder %s519, 15
      %s523 = scalar_select %p522, %s519, 15
      %s524 = smul.addr %s523, 2
      %s525 = smul.addr %s521, 32
      %s526 = sadd.s32 %s524, %s525
      %s527 = smul.addr %s526, 4
      %s528 = scalar_lea.vmem %s1, %s527
      %p529 = pneg %p96
      %p530 = pneg %p93
      %s531 = sadd.s32 %s30, 1
      %s532 = smul.u32 %s531, 4
      %p533 = scmp.lt.s32.totalorder %s532, 15
      %s534 = scalar_select %p533, %s532, 15
      %p535 = scmp.lt.s32.totalorder %s29, 1
      %s536 = scalar_select %p535, %s29, 1
      %p537 = scmp.lt.s32.totalorder %s534, 15
      %s538 = scalar_select %p537, %s534, 15
      %s539 = smul.addr %s538, 2
      %s540 = smul.addr %s536, 32
      %s541 = sadd.s32 %s539, %s540
      %s542 = smul.addr %s541, 4
      %s543 = scalar_lea.vmem %s2, %s542
      %p544 = pneg %p132
      %p545 = pneg %p129
      %p546 = pneg %p153
      %p547 = pneg %p150
      %p548 = pneg %p174
      %p549 = pneg %p171
      %p550 = pneg %p195
      %p551 = pneg %p192
      %p552 = pneg %p216
      %p553 = pneg %p213
      %p554 = pneg %p237
      %p555 = pneg %p234
      %p556 = pneg %p258
      %p557 = pneg %p255
      %p558 = pneg %p279
      %p559 = pneg %p276
      %p560 = pneg %p300
      %p561 = pneg %p297
      %p562 = pneg %p321
      %p563 = pneg %p318
      %p564 = pneg %p342
      %p565 = pneg %p339
      %p566 = pneg %p363
      %p567 = pneg %p360
      %p568 = pneg %p391
      %p569 = pneg %p388
      %s570 = smul.u32 4, %s30
      %p571 = scmp.lt.s32.totalorder %s29, 1
      %s572 = scalar_select %p571, %s29, 1
      %p573 = scmp.lt.s32.totalorder %s570, 15
      %s574 = scalar_select %p573, %s570, 15
      %s575 = smul.addr %s574, 2
      %s576 = smul.addr %s572, 32
      %s577 = sadd.s32 %s575, %s576
      %s578 = smul.addr %s577, 8
      %s579 = scalar_lea.vmem %s14, %s578
      %s580 = smul.u32 %s30, 4
      %s581 = ssub.s32 %s580, 1
      %p582 = scmp.gt.s32.totalorder %s581, 0
      %s583 = scalar_select %p582, %s581, 0
      %p584 = scmp.lt.s32.totalorder %s29, 1
      %s585 = scalar_select %p584, %s29, 1
      %p586 = scmp.lt.s32.totalorder %s583, 15
      %s587 = scalar_select %p586, %s583, 15
      %s588 = smul.addr %s587, 2
      %s589 = smul.addr %s585, 32
      %s590 = sadd.s32 %s588, %s589
      %s591 = smul.addr %s590, 4
      %s592 = scalar_lea.vmem %s0, %s591
      %s593 = smul.u32 %s30, 4
      %s594 = ssub.s32 %s593, 1
      %p595 = scmp.gt.s32.totalorder %s594, 0
      %s596 = scalar_select %p595, %s594, 0
      %s597 = smul.u32 4, %s30
      %p598 = scmp.lt.s32.totalorder %s29, 1
      %s599 = scalar_select %p598, %s29, 1
      %p600 = scmp.lt.s32.totalorder %s597, 15
      %s601 = scalar_select %p600, %s597, 15
      %s602 = smul.addr %s601, 2
      %s603 = smul.addr %s599, 32
      %s604 = sadd.s32 %s602, %s603
      %s605 = smul.addr %s604, 4
      %s606 = scalar_lea.vmem %s1, %s605
      %s607 = smul.u32 4, %s30
      %s608 = sadd.s32 %s30, 1
      %s609 = smul.u32 %s608, 4
      %p610 = scmp.lt.s32.totalorder %s609, 15
      %s611 = scalar_select %p610, %s609, 15
      %p612 = scmp.lt.s32.totalorder %s29, 1
      %s613 = scalar_select %p612, %s29, 1
      %p614 = scmp.lt.s32.totalorder %s611, 15
      %s615 = scalar_select %p614, %s611, 15
      %s616 = smul.addr %s615, 2
      %s617 = smul.addr %s613, 32
      %s618 = sadd.s32 %s616, %s617
      %s619 = smul.addr %s618, 4
      %s620 = scalar_lea.vmem %s2, %s619
      %s621 = sadd.s32 %s30, 1
      %s622 = smul.u32 %s621, 4
      %p623 = scmp.lt.s32.totalorder %s622, 15
      %s624 = scalar_select %p623, %s622, 15
      %s625 = smul.u32 4, %s30
      %p626 = scmp.lt.s32.totalorder %s29, 1
      %s627 = scalar_select %p626, %s29, 1
      %p628 = scmp.lt.s32.totalorder %s625, 15
      %s629 = scalar_select %p628, %s625, 15
      %s630 = smul.addr %s629, 2
      %s631 = smul.addr %s627, 32
      %s632 = sadd.s32 %s630, %s631
      %s633 = smul.addr %s632, 8
      %s634 = scalar_lea.vmem %s14, %s633
      %s635 = smul.u32 4, %s30
      %v637 = vld [vmem:[%s3] sm:$0xf]
      %v638 = vld [vmem:[%s3 + $0x4] sm:$0xf]
      %v639 = vld [vmem:[%s3 + $0x8] sm:$0xf]
      %v640 = vld [vmem:[%s3 + $0xc] sm:$0xf]
      %v641 = vld [vmem:[%s3 + $0x10] sm:$0xf]
      %v642 = vld [vmem:[%s3 + $0x14] sm:$0xf]
      %v643 = vld [vmem:[%s3 + $0x18] sm:$0xf]
      %v644 = vld [vmem:[%s3 + $0x1c] sm:$0xf]
      %v645 = vld [vmem:[%s3 + $0x20] sm:$0xf]
      %v646 = vld [vmem:[%s3 + $0x24] sm:$0xf]
      %v647 = vld [vmem:[%s3 + $0x28] sm:$0xf]
      %v648 = vld [vmem:[%s3 + $0x2c] sm:$0xf]
      %v649 = vld [vmem:[%s3 + $0x30] sm:$0xf]
      %v650 = vld [vmem:[%s3 + $0x34] sm:$0xf]
      %v651 = vld [vmem:[%s3 + $0x38] sm:$0xf]
      %v652 = vld [vmem:[%s3 + $0x3c] sm:$0xf]
      %v653 = vld [vmem:[%s4] sm:$0x1]
      %v654 = vld [vmem:[%s606] sm:$0xf]
      %v655 = vld [vmem:[%s606 + $0x4] sm:$0xf]
      %v656 = vld [vmem:[%s606 + $0x8] sm:$0xf]
      %v657 = vld [vmem:[%s606 + $0xc] sm:$0xf]
      %v658 = vld [vmem:[%s606 + $0x10] sm:$0xf]
      %v659 = vld [vmem:[%s606 + $0x14] sm:$0xf]
      %v660 = vld [vmem:[%s606 + $0x18] sm:$0xf]
      %v661 = vld [vmem:[%s606 + $0x1c] sm:$0xf]
      %v663 = vlaneseq
      %v664 = vshrl.u32 %v663, 7
      %v665 = vsub.s32 0, %v664
      %v666 = vrot.slane %v653, %v665
      %v676 = vunpack.c.l.b16 %v654
      %v677 = vunpack.c.l.b16 %v655
      %v678 = vunpack.c.l.b16 %v656
      %v679 = vunpack.c.l.b16 %v657
      %v680 = vunpack.c.l.b16 %v658
      %v681 = vunpack.c.l.b16 %v659
      %v682 = vunpack.c.l.b16 %v660
      %v683 = vunpack.c.l.b16 %v661
      %v684 = vpack.c.b16 %v677, %v676
      %v685 = vpack.c.b16 %v679, %v678
      %v686 = vpack.c.b16 %v681, %v680
      %v687 = vpack.c.b16 %v683, %v682
      %v708 = vunpack.c.l.b16 %v637
      %v709 = vunpack.c.l.b16 %v638
      %v710 = vunpack.c.l.b16 %v639
      %v711 = vunpack.c.l.b16 %v640
      %v712 = vunpack.c.l.b16 %v641
      %v713 = vunpack.c.l.b16 %v642
      %v714 = vunpack.c.l.b16 %v643
      %v715 = vunpack.c.l.b16 %v644
      %v716 = vunpack.c.l.b16 %v645
      %v717 = vunpack.c.l.b16 %v646
      %v718 = vunpack.c.l.b16 %v647
      %v719 = vunpack.c.l.b16 %v648
      %v720 = vunpack.c.l.b16 %v649
      %v721 = vunpack.c.l.b16 %v650
      %v722 = vunpack.c.l.b16 %v651
      %v723 = vunpack.c.l.b16 %v652
      %v724 = vpack.c.b16 %v709, %v708
      %v725 = vpack.c.b16 %v711, %v710
      %v726 = vpack.c.b16 %v713, %v712
      %v727 = vpack.c.b16 %v715, %v714
      %v728 = vpack.c.b16 %v717, %v716
      %v729 = vpack.c.b16 %v719, %v718
      %v730 = vpack.c.b16 %v721, %v720
      %v731 = vpack.c.b16 %v723, %v722
      %740 = vmatprep.subr.bf16.mxu0 0
      %741 = vmatpush1.bf16.msra.mxu0 %v724
      %742 = vmatprep.subr.bf16.mxu0 0
      %743 = vmatpush1.bf16.msra.mxu0 %v725
      %744 = vmatprep.subr.bf16.mxu0 0
      %745 = vmatpush1.bf16.msra.mxu0 %v726
      %746 = vmatprep.subr.bf16.mxu0 0
      %747 = vmatpush1.bf16.msra.mxu0 %v727
      %748 = vmatprep.subr.bf16.mxu0 0
      %749 = vmatpush1.bf16.msra.mxu0 %v728
      %750 = vmatprep.subr.bf16.mxu0 0
      %751 = vmatpush1.bf16.msra.mxu0 %v729
      %752 = vmatprep.subr.bf16.mxu0 0
      %753 = vmatpush1.bf16.msra.mxu0 %v730
      %754 = vmatprep.subr.bf16.mxu0 0
      %755 = vmatpush1.bf16.msra.mxu0 %v731
      %756 = vmatprep.subr.bf16.mxu0 0
      %757 = vmatpush1.bf16.msra.mxu0 0
      %758 = vmatprep.subr.bf16.mxu0 0
      %759 = vmatpush1.bf16.msra.mxu0 0
      %760 = vmatprep.subr.bf16.mxu0 0
      %761 = vmatpush1.bf16.msra.mxu0 0
      %762 = vmatprep.subr.bf16.mxu0 0
      %763 = vmatpush1.bf16.msra.mxu0 0
      %764 = vmatprep.subr.bf16.mxu0 0
      %765 = vmatpush1.bf16.msra.mxu0 0
      %766 = vmatprep.subr.bf16.mxu0 0
      %767 = vmatpush1.bf16.msra.mxu0 0
      %768 = vmatprep.subr.bf16.mxu0 0
      %769 = vmatpush1.bf16.msra.mxu0 0
      %770 = vmatprep.subr.bf16.mxu0 0
      %771 = vmatpush1.bf16.msra.mxu0 0
      %772 = vmatprep.mubr.bf16.mxu0 0
      %773 = vmatmul.mubr.bf16.gmra.mrb[0].mxu0 %v684
      %v774 = vpop.f32.mrb[0].mxu0
      %v775 = vadd.f32 %v666, %v774
      %v776 = vpop.f32.mrb[0].mxu0
      %v777 = vpop.f32.mrb[0].mxu0
      %v778 = vadd.f32 %v666, %v777
      %v779 = vpop.f32.mrb[0].mxu0
      %780 = vmatprep.mubr.bf16.mxu0 0
      %781 = vmatmul.mubr.bf16.gmra.mrb[0].mxu0 %v685
      %v782 = vpop.f32.mrb[0].mxu0
      %v783 = vadd.f32 %v666, %v782
      %v784 = vpop.f32.mrb[0].mxu0
      %v785 = vpop.f32.mrb[0].mxu0
      %v786 = vadd.f32 %v666, %v785
      %v787 = vpop.f32.mrb[0].mxu0
      %788 = vmatprep.mubr.bf16.mxu0 0
      %789 = vmatmul.mubr.bf16.gmra.mrb[0].mxu0 %v686
      %v790 = vpop.f32.mrb[0].mxu0
      %v791 = vadd.f32 %v666, %v790
      %v792 = vpop.f32.mrb[0].mxu0
      %v793 = vpop.f32.mrb[0].mxu0
      %v794 = vadd.f32 %v666, %v793
      %v795 = vpop.f32.mrb[0].mxu0
      %796 = vmatprep.mubr.bf16.mxu0 0
      %797 = vmatmul.mubr.bf16.gmra.mrb[0].mxu0 %v687
      %v798 = vpop.f32.mrb[0].mxu0
      %v799 = vadd.f32 %v666, %v798
      %v800 = vpop.f32.mrb[0].mxu0
      %v801 = vpop.f32.mrb[0].mxu0
      %v802 = vadd.f32 %v666, %v801
      %v803 = vpop.f32.mrb[0].mxu0
      %804 = vdwg.mxu0
      %v805 = vmax.f32 %v775, 0.0
      %v806 = vmax.f32 %v778, 0.0
      %v807 = vmax.f32 %v783, 0.0
      %v808 = vmax.f32 %v786, 0.0
      %v809 = vmax.f32 %v791, 0.0
      %v810 = vmax.f32 %v794, 0.0
      %v811 = vmax.f32 %v799, 0.0
      %v812 = vmax.f32 %v802, 0.0
      %v813 = vand.u32 2147483647, %v775
      %v814 = vand.u32 2147483647, %v778
      %v815 = vand.u32 2147483647, %v783
      %v816 = vand.u32 2147483647, %v786
      %v817 = vand.u32 2147483647, %v791
      %v818 = vand.u32 2147483647, %v794
      %v819 = vand.u32 2147483647, %v799
      %v820 = vand.u32 2147483647, %v802
      %v821 = vsub.f32 0.0, %v813
      %v822 = vsub.f32 0.0, %v814
      %v823 = vsub.f32 0.0, %v815
      %v824 = vsub.f32 0.0, %v816
      %v825 = vsub.f32 0.0, %v817
      %v826 = vsub.f32 0.0, %v818
      %v827 = vsub.f32 0.0, %v819
      %v828 = vsub.f32 0.0, %v820
      %v829 = vmul.f32 %v821, 1.442695
      %v830 = vpow.pop %v829
      %v831 = vmul.f32 %v822, 1.442695
      %v832 = vpow.pop %v831
      %v833 = vmul.f32 %v823, 1.442695
      %v834 = vpow.pop %v833
      %v835 = vmul.f32 %v824, 1.442695
      %v836 = vpow.pop %v835
      %v837 = vmul.f32 %v825, 1.442695
      %v838 = vpow.pop %v837
      %v839 = vmul.f32 %v826, 1.442695
      %v840 = vpow.pop %v839
      %v841 = vmul.f32 %v827, 1.442695
      %v842 = vpow.pop %v841
      %v843 = vmul.f32 %v828, 1.442695
      %v844 = vpow.pop %v843
      %v845 = vadd.f32 %v830, 1.0
      %v846 = vlog2.pop %v845
      %v847 = vmul.f32 %v846, 0.6931472
      %v848 = vmul.f32 -0.5, %v830
      %v849 = vadd.f32 %v848, 1.0
      %v850 = vmul.f32 %v849, %v830
      %v851 = vand.u32 2147483647, %v830
      %vm852 = vcmp.lt.f32.partialorder %v851, 0.0004427343
      %v853 = vsel %vm852, %v850, %v847
      %v854 = vadd.f32 %v832, 1.0
      %v855 = vlog2.pop %v854
      %v856 = vmul.f32 %v855, 0.6931472
      %v857 = vmul.f32 -0.5, %v832
      %v858 = vadd.f32 %v857, 1.0
      %v859 = vmul.f32 %v858, %v832
      %v860 = vand.u32 2147483647, %v832
      %vm861 = vcmp.lt.f32.partialorder %v860, 0.0004427343
      %v862 = vsel %vm861, %v859, %v856
      %v863 = vadd.f32 %v834, 1.0
      %v864 = vlog2.pop %v863
      %v865 = vmul.f32 %v864, 0.6931472
      %v866 = vmul.f32 -0.5, %v834
      %v867 = vadd.f32 %v866, 1.0
      %v868 = vmul.f32 %v867, %v834
      %v869 = vand.u32 2147483647, %v834
      %vm870 = vcmp.lt.f32.partialorder %v869, 0.0004427343
      %v871 = vsel %vm870, %v868, %v865
      %v872 = vadd.f32 %v836, 1.0
      %v873 = vlog2.pop %v872
      %v874 = vmul.f32 %v873, 0.6931472
      %v875 = vmul.f32 -0.5, %v836
      %v876 = vadd.f32 %v875, 1.0
      %v877 = vmul.f32 %v876, %v836
      %v878 = vand.u32 2147483647, %v836
      %vm879 = vcmp.lt.f32.partialorder %v878, 0.0004427343
      %v880 = vsel %vm879, %v877, %v874
      %v881 = vadd.f32 %v838, 1.0
      %v882 = vlog2.pop %v881
      %v883 = vmul.f32 %v882, 0.6931472
      %v884 = vmul.f32 -0.5, %v838
      %v885 = vadd.f32 %v884, 1.0
      %v886 = vmul.f32 %v885, %v838
      %v887 = vand.u32 2147483647, %v838
      %vm888 = vcmp.lt.f32.partialorder %v887, 0.0004427343
      %v889 = vsel %vm888, %v886, %v883
      %v890 = vadd.f32 %v840, 1.0
      %v891 = vlog2.pop %v890
      %v892 = vmul.f32 %v891, 0.6931472
      %v893 = vmul.f32 -0.5, %v840
      %v894 = vadd.f32 %v893, 1.0
      %v895 = vmul.f32 %v894, %v840
      %v896 = vand.u32 2147483647, %v840
      %vm897 = vcmp.lt.f32.partialorder %v896, 0.0004427343
      %v898 = vsel %vm897, %v895, %v892
      %v899 = vadd.f32 %v842, 1.0
      %v900 = vlog2.pop %v899
      %v901 = vmul.f32 %v900, 0.6931472
      %v902 = vmul.f32 -0.5, %v842
      %v903 = vadd.f32 %v902, 1.0
      %v904 = vmul.f32 %v903, %v842
      %v905 = vand.u32 2147483647, %v842
      %vm906 = vcmp.lt.f32.partialorder %v905, 0.0004427343
      %v907 = vsel %vm906, %v904, %v901
      %v908 = vadd.f32 %v844, 1.0
      %v909 = vlog2.pop %v908
      %v910 = vmul.f32 %v909, 0.6931472
      %v911 = vmul.f32 -0.5, %v844
      %v912 = vadd.f32 %v911, 1.0
      %v913 = vmul.f32 %v912, %v844
      %v914 = vand.u32 2147483647, %v844
      %vm915 = vcmp.lt.f32.partialorder %v914, 0.0004427343
      %v916 = vsel %vm915, %v913, %v910
      %v917 = vadd.f32 %v805, %v853
      %v918 = vadd.f32 %v806, %v862
      %v919 = vadd.f32 %v807, %v871
      %v920 = vadd.f32 %v808, %v880
      %v921 = vadd.f32 %v809, %v889
      %v922 = vadd.f32 %v810, %v898
      %v923 = vadd.f32 %v811, %v907
      %v924 = vadd.f32 %v812, %v916
      %v925 = vtanh.pop %v917
      %v926 = vtanh.pop %v918
      %v927 = vtanh.pop %v919
      %v928 = vtanh.pop %v920
      %v929 = vtanh.pop %v921
      %v930 = vtanh.pop %v922
      %v931 = vtanh.pop %v923
      %v932 = vtanh.pop %v924
      %v933 = vmul.f32 %v775, %v925
      %v934 = vmul.f32 %v778, %v926
      %v935 = vmul.f32 %v783, %v927
      %v936 = vmul.f32 %v786, %v928
      %v937 = vmul.f32 %v791, %v929
      %v938 = vmul.f32 %v794, %v930
      %v939 = vmul.f32 %v799, %v931
      %v940 = vmul.f32 %v802, %v932
      %v941 = vld [vmem:[%s5] sm:$0xf]
      %v942 = vld [vmem:[%s5 + $0x4] sm:$0xf]
      %v943 = vld [vmem:[%s5 + $0x8] sm:$0xf]
      %v944 = vld [vmem:[%s5 + $0xc] sm:$0xf]
      %v945 = vld [vmem:[%s5 + $0x10] sm:$0xf]
      %v946 = vld [vmem:[%s5 + $0x14] sm:$0xf]
      %v947 = vld [vmem:[%s5 + $0x18] sm:$0xf]
      %v948 = vld [vmem:[%s5 + $0x1c] sm:$0xf]
      %v949 = vld [vmem:[%s5 + $0x20] sm:$0xf]
      %v950 = vld [vmem:[%s5 + $0x24] sm:$0xf]
      %v951 = vld [vmem:[%s5 + $0x28] sm:$0xf]
      %v952 = vld [vmem:[%s5 + $0x2c] sm:$0xf]
      %v953 = vld [vmem:[%s5 + $0x30] sm:$0xf]
      %v954 = vld [vmem:[%s5 + $0x34] sm:$0xf]
      %v955 = vld [vmem:[%s5 + $0x38] sm:$0xf]
      %v956 = vld [vmem:[%s5 + $0x3c] sm:$0xf]
      %v957 = vld [vmem:[%s6] sm:$0x1]
      %v959 = vlaneseq
      %v960 = vshrl.u32 %v959, 7
      %v961 = vsub.s32 0, %v960
      %v962 = vrot.slane %v957, %v961
      %v980 = vunpack.c.l.b16 %v941
      %v981 = vunpack.c.l.b16 %v942
      %v982 = vunpack.c.l.b16 %v943
      %v983 = vunpack.c.l.b16 %v944
      %v984 = vunpack.c.l.b16 %v945
      %v985 = vunpack.c.l.b16 %v946
      %v986 = vunpack.c.l.b16 %v947
      %v987 = vunpack.c.l.b16 %v948
      %v988 = vunpack.c.l.b16 %v949
      %v989 = vunpack.c.l.b16 %v950
      %v990 = vunpack.c.l.b16 %v951
      %v991 = vunpack.c.l.b16 %v952
      %v992 = vunpack.c.l.b16 %v953
      %v993 = vunpack.c.l.b16 %v954
      %v994 = vunpack.c.l.b16 %v955
      %v995 = vunpack.c.l.b16 %v956
      %v996 = vpack.c.b16 %v981, %v980
      %v997 = vpack.c.b16 %v983, %v982
      %v998 = vpack.c.b16 %v985, %v984
      %v999 = vpack.c.b16 %v987, %v986
      %v1000 = vpack.c.b16 %v989, %v988
      %v1001 = vpack.c.b16 %v991, %v990
      %v1002 = vpack.c.b16 %v993, %v992
      %v1003 = vpack.c.b16 %v995, %v994
      %1012 = vmatprep.subr.bf16.mxu0 0
      %1013 = vmatpush1.bf16.msra.mxu0 %v996
      %1014 = vmatprep.subr.bf16.mxu0 0
      %1015 = vmatpush1.bf16.msra.mxu0 %v997
      %1016 = vmatprep.subr.bf16.mxu0 0
      %1017 = vmatpush1.bf16.msra.mxu0 %v998
      %1018 = vmatprep.subr.bf16.mxu0 0
      %1019 = vmatpush1.bf16.msra.mxu0 %v999
      %1020 = vmatprep.subr.bf16.mxu0 0
      %1021 = vmatpush1.bf16.msra.mxu0 %v1000
      %1022 = vmatprep.subr.bf16.mxu0 0
      %1023 = vmatpush1.bf16.msra.mxu0 %v1001
      %1024 = vmatprep.subr.bf16.mxu0 0
      %1025 = vmatpush1.bf16.msra.mxu0 %v1002
      %1026 = vmatprep.subr.bf16.mxu0 0
      %1027 = vmatpush1.bf16.msra.mxu0 %v1003
      %1028 = vmatprep.subr.bf16.mxu0 0
      %1029 = vmatpush1.bf16.msra.mxu0 0
      %1030 = vmatprep.subr.bf16.mxu0 0
      %1031 = vmatpush1.bf16.msra.mxu0 0
      %1032 = vmatprep.subr.bf16.mxu0 0
      %1033 = vmatpush1.bf16.msra.mxu0 0
      %1034 = vmatprep.subr.bf16.mxu0 0
      %1035 = vmatpush1.bf16.msra.mxu0 0
      %1036 = vmatprep.subr.bf16.mxu0 0
      %1037 = vmatpush1.bf16.msra.mxu0 0
      %1038 = vmatprep.subr.bf16.mxu0 0
      %1039 = vmatpush1.bf16.msra.mxu0 0
      %1040 = vmatprep.subr.bf16.mxu0 0
      %1041 = vmatpush1.bf16.msra.mxu0 0
      %1042 = vmatprep.subr.bf16.mxu0 0
      %1043 = vmatpush1.bf16.msra.mxu0 0
      %1044 = vmatprep.mubr.bf16.mxu0 0
      %1045 = vmatmul.mubr.bf16.gmra.mrb[0].mxu0 %v684
      %v1046 = vpop.f32.mrb[0].mxu0
      %v1047 = vadd.f32 %v962, %v1046
      %v1048 = vpop.f32.mrb[0].mxu0
      %v1049 = vpop.f32.mrb[0].mxu0
      %v1050 = vadd.f32 %v962, %v1049
      %v1051 = vpop.f32.mrb[0].mxu0
      %1052 = vmatprep.mubr.bf16.mxu0 0
      %1053 = vmatmul.mubr.bf16.gmra.mrb[0].mxu0 %v685
      %v1054 = vpop.f32.mrb[0].mxu0
      %v1055 = vadd.f32 %v962, %v1054
      %v1056 = vpop.f32.mrb[0].mxu0
      %v1057 = vpop.f32.mrb[0].mxu0
      %v1058 = vadd.f32 %v962, %v1057
      %v1059 = vpop.f32.mrb[0].mxu0
      %1060 = vmatprep.mubr.bf16.mxu0 0
      %1061 = vmatmul.mubr.bf16.gmra.mrb[0].mxu0 %v686
      %v1062 = vpop.f32.mrb[0].mxu0
      %v1063 = vadd.f32 %v962, %v1062
      %v1064 = vpop.f32.mrb[0].mxu0
      %v1065 = vpop.f32.mrb[0].mxu0
      %v1066 = vadd.f32 %v962, %v1065
      %v1067 = vpop.f32.mrb[0].mxu0
      %1068 = vmatprep.mubr.bf16.mxu0 0
      %1069 = vmatmul.mubr.bf16.gmra.mrb[0].mxu0 %v687
      %v1070 = vpop.f32.mrb[0].mxu0
      %v1071 = vadd.f32 %v962, %v1070
      %v1072 = vpop.f32.mrb[0].mxu0
      %v1073 = vpop.f32.mrb[0].mxu0
      %v1074 = vadd.f32 %v962, %v1073
      %v1075 = vpop.f32.mrb[0].mxu0
      %1076 = vdwg.mxu0
      %v1077 = vmax.f32 %v1047, 0.0
      %v1078 = vmax.f32 %v1050, 0.0
      %v1079 = vmax.f32 %v1055, 0.0
      %v1080 = vmax.f32 %v1058, 0.0
      %v1081 = vmax.f32 %v1063, 0.0
      %v1082 = vmax.f32 %v1066, 0.0
      %v1083 = vmax.f32 %v1071, 0.0
      %v1084 = vmax.f32 %v1074, 0.0
      %v1085 = vand.u32 2147483647, %v1047
      %v1086 = vand.u32 2147483647, %v1050
      %v1087 = vand.u32 2147483647, %v1055
      %v1088 = vand.u32 2147483647, %v1058
      %v1089 = vand.u32 2147483647, %v1063
      %v1090 = vand.u32 2147483647, %v1066
      %v1091 = vand.u32 2147483647, %v1071
      %v1092 = vand.u32 2147483647, %v1074
      %v1093 = vsub.f32 0.0, %v1085
      %v1094 = vsub.f32 0.0, %v1086
      %v1095 = vsub.f32 0.0, %v1087
      %v1096 = vsub.f32 0.0, %v1088
      %v1097 = vsub.f32 0.0, %v1089
      %v1098 = vsub.f32 0.0, %v1090
      %v1099 = vsub.f32 0.0, %v1091
      %v1100 = vsub.f32 0.0, %v1092
      %v1101 = vmul.f32 %v1093, 1.442695
      %v1102 = vpow.pop %v1101
      %v1103 = vmul.f32 %v1094, 1.442695
      %v1104 = vpow.pop %v1103
      %v1105 = vmul.f32 %v1095, 1.442695
      %v1106 = vpow.pop %v1105
      %v1107 = vmul.f32 %v1096, 1.442695
      %v1108 = vpow.pop %v1107
      %v1109 = vmul.f32 %v1097, 1.442695
      %v1110 = vpow.pop %v1109
      %v1111 = vmul.f32 %v1098, 1.442695
      %v1112 = vpow.pop %v1111
      %v1113 = vmul.f32 %v1099, 1.442695
      %v1114 = vpow.pop %v1113
      %v1115 = vmul.f32 %v1100, 1.442695
      %v1116 = vpow.pop %v1115
      %v1117 = vadd.f32 %v1102, 1.0
      %v1118 = vlog2.pop %v1117
      %v1119 = vmul.f32 %v1118, 0.6931472
      %v1120 = vmul.f32 -0.5, %v1102
      %v1121 = vadd.f32 %v1120, 1.0
      %v1122 = vmul.f32 %v1121, %v1102
      %v1123 = vand.u32 2147483647, %v1102
      %vm1124 = vcmp.lt.f32.partialorder %v1123, 0.0004427343
      %v1125 = vsel %vm1124, %v1122, %v1119
      %v1126 = vadd.f32 %v1104, 1.0
      %v1127 = vlog2.pop %v1126
      %v1128 = vmul.f32 %v1127, 0.6931472
      %v1129 = vmul.f32 -0.5, %v1104
      %v1130 = vadd.f32 %v1129, 1.0
      %v1131 = vmul.f32 %v1130, %v1104
      %v1132 = vand.u32 2147483647, %v1104
      %vm1133 = vcmp.lt.f32.partialorder %v1132, 0.0004427343
      %v1134 = vsel %vm1133, %v1131, %v1128
      %v1135 = vadd.f32 %v1106, 1.0
      %v1136 = vlog2.pop %v1135
      %v1137 = vmul.f32 %v1136, 0.6931472
      %v1138 = vmul.f32 -0.5, %v1106
      %v1139 = vadd.f32 %v1138, 1.0
      %v1140 = vmul.f32 %v1139, %v1106
      %v1141 = vand.u32 2147483647, %v1106
      %vm1142 = vcmp.lt.f32.partialorder %v1141, 0.0004427343
      %v1143 = vsel %vm1142, %v1140, %v1137
      %v1144 = vadd.f32 %v1108, 1.0
      %v1145 = vlog2.pop %v1144
      %v1146 = vmul.f32 %v1145, 0.6931472
      %v1147 = vmul.f32 -0.5, %v1108
      %v1148 = vadd.f32 %v1147, 1.0
      %v1149 = vmul.f32 %v1148, %v1108
      %v1150 = vand.u32 2147483647, %v1108
      %vm1151 = vcmp.lt.f32.partialorder %v1150, 0.0004427343
      %v1152 = vsel %vm1151, %v1149, %v1146
      %v1153 = vadd.f32 %v1110, 1.0
      %v1154 = vlog2.pop %v1153
      %v1155 = vmul.f32 %v1154, 0.6931472
      %v1156 = vmul.f32 -0.5, %v1110
      %v1157 = vadd.f32 %v1156, 1.0
      %v1158 = vmul.f32 %v1157, %v1110
      %v1159 = vand.u32 2147483647, %v1110
      %vm1160 = vcmp.lt.f32.partialorder %v1159, 0.0004427343
      %v1161 = vsel %vm1160, %v1158, %v1155
      %v1162 = vadd.f32 %v1112, 1.0
      %v1163 = vlog2.pop %v1162
      %v1164 = vmul.f32 %v1163, 0.6931472
      %v1165 = vmul.f32 -0.5, %v1112
      %v1166 = vadd.f32 %v1165, 1.0
      %v1167 = vmul.f32 %v1166, %v1112
      %v1168 = vand.u32 2147483647, %v1112
      %vm1169 = vcmp.lt.f32.partialorder %v1168, 0.0004427343
      %v1170 = vsel %vm1169, %v1167, %v1164
      %v1171 = vadd.f32 %v1114, 1.0
      %v1172 = vlog2.pop %v1171
      %v1173 = vmul.f32 %v1172, 0.6931472
      %v1174 = vmul.f32 -0.5, %v1114
      %v1175 = vadd.f32 %v1174, 1.0
      %v1176 = vmul.f32 %v1175, %v1114
      %v1177 = vand.u32 2147483647, %v1114
      %vm1178 = vcmp.lt.f32.partialorder %v1177, 0.0004427343
      %v1179 = vsel %vm1178, %v1176, %v1173
      %v1180 = vadd.f32 %v1116, 1.0
      %v1181 = vlog2.pop %v1180
      %v1182 = vmul.f32 %v1181, 0.6931472
      %v1183 = vmul.f32 -0.5, %v1116
      %v1184 = vadd.f32 %v1183, 1.0
      %v1185 = vmul.f32 %v1184, %v1116
      %v1186 = vand.u32 2147483647, %v1116
      %vm1187 = vcmp.lt.f32.partialorder %v1186, 0.0004427343
      %v1188 = vsel %vm1187, %v1185, %v1182
      %v1189 = vadd.f32 %v1077, %v1125
      %v1190 = vadd.f32 %v1078, %v1134
      %v1191 = vadd.f32 %v1079, %v1143
      %v1192 = vadd.f32 %v1080, %v1152
      %v1193 = vadd.f32 %v1081, %v1161
      %v1194 = vadd.f32 %v1082, %v1170
      %v1195 = vadd.f32 %v1083, %v1179
      %v1196 = vadd.f32 %v1084, %v1188
      %v1197 = vtanh.pop %v1189
      %v1198 = vtanh.pop %v1190
      %v1199 = vtanh.pop %v1191
      %v1200 = vtanh.pop %v1192
      %v1201 = vtanh.pop %v1193
      %v1202 = vtanh.pop %v1194
      %v1203 = vtanh.pop %v1195
      %v1204 = vtanh.pop %v1196
      %v1205 = vmul.f32 %v1047, %v1197
      %v1206 = vmul.f32 %v1050, %v1198
      %v1207 = vmul.f32 %v1055, %v1199
      %v1208 = vmul.f32 %v1058, %v1200
      %v1209 = vmul.f32 %v1063, %v1201
      %v1210 = vmul.f32 %v1066, %v1202
      %v1211 = vmul.f32 %v1071, %v1203
      %v1212 = vmul.f32 %v1074, %v1204
      %v1213 = vld [vmem:[%s592] sm:$0xf]
      %v1214 = vld [vmem:[%s592 + $0x4] sm:$0xf]
      %v1215 = vld [vmem:[%s620] sm:$0xf]
      %v1216 = vld [vmem:[%s620 + $0x4] sm:$0xf]
      %v1219 = vunpack.c.l.b16 %v1213
      %v1220 = vunpack.c.l.b16 %v1214
      %v1221 = vpack.c.b16 %v1220, %v1219
      %1223 = vmatprep.subr.bf16.mxu0 0
      %1224 = vmatpush1.bf16.msra.mxu0 %v724
      %1225 = vmatprep.subr.bf16.mxu0 0
      %1226 = vmatpush1.bf16.msra.mxu0 %v725
      %1227 = vmatprep.subr.bf16.mxu0 0
      %1228 = vmatpush1.bf16.msra.mxu0 %v726
      %1229 = vmatprep.subr.bf16.mxu0 0
      %1230 = vmatpush1.bf16.msra.mxu0 %v727
      %1231 = vmatprep.subr.bf16.mxu0 0
      %1232 = vmatpush1.bf16.msra.mxu0 %v728
      %1233 = vmatprep.subr.bf16.mxu0 0
      %1234 = vmatpush1.bf16.msra.mxu0 %v729
      %1235 = vmatprep.subr.bf16.mxu0 0
      %1236 = vmatpush1.bf16.msra.mxu0 %v730
      %1237 = vmatprep.subr.bf16.mxu0 0
      %1238 = vmatpush1.bf16.msra.mxu0 %v731
      %1239 = vmatprep.subr.bf16.mxu0 0
      %1240 = vmatpush1.bf16.msra.mxu0 0
      %1241 = vmatprep.subr.bf16.mxu0 0
      %1242 = vmatpush1.bf16.msra.mxu0 0
      %1243 = vmatprep.subr.bf16.mxu0 0
      %1244 = vmatpush1.bf16.msra.mxu0 0
      %1245 = vmatprep.subr.bf16.mxu0 0
      %1246 = vmatpush1.bf16.msra.mxu0 0
      %1247 = vmatprep.subr.bf16.mxu0 0
      %1248 = vmatpush1.bf16.msra.mxu0 0
      %1249 = vmatprep.subr.bf16.mxu0 0
      %1250 = vmatpush1.bf16.msra.mxu0 0
      %1251 = vmatprep.subr.bf16.mxu0 0
      %1252 = vmatpush1.bf16.msra.mxu0 0
      %1253 = vmatprep.subr.bf16.mxu0 0
      %1254 = vmatpush1.bf16.msra.mxu0 0
      %1255 = vmatprep.mubr.bf16.mxu0 0
      %1256 = vmatmul.mubr.bf16.gmra.mrb[0].mxu0 %v1221
      %v1257 = vpop.f32.mrb[0].mxu0
      %v1258 = vadd.f32 %v666, %v1257
      %v1259 = vpop.f32.mrb[0].mxu0
      %v1260 = vpop.f32.mrb[0].mxu0
      %v1261 = vadd.f32 %v666, %v1260
      %v1262 = vpop.f32.mrb[0].mxu0
      %1263 = vdwg.mxu0
      %v1264 = vmax.f32 %v1258, 0.0
      %v1265 = vmax.f32 %v1261, 0.0
      %v1266 = vand.u32 2147483647, %v1258
      %v1267 = vand.u32 2147483647, %v1261
      %v1268 = vsub.f32 0.0, %v1266
      %v1269 = vsub.f32 0.0, %v1267
      %v1270 = vmul.f32 %v1268, 1.442695
      %v1271 = vpow.pop %v1270
      %v1272 = vmul.f32 %v1269, 1.442695
      %v1273 = vpow.pop %v1272
      %v1274 = vadd.f32 %v1271, 1.0
      %v1275 = vlog2.pop %v1274
      %v1276 = vmul.f32 %v1275, 0.6931472
      %v1277 = vmul.f32 -0.5, %v1271
      %v1278 = vadd.f32 %v1277, 1.0
      %v1279 = vmul.f32 %v1278, %v1271
      %v1280 = vand.u32 2147483647, %v1271
      %vm1281 = vcmp.lt.f32.partialorder %v1280, 0.0004427343
      %v1282 = vsel %vm1281, %v1279, %v1276
      %v1283 = vadd.f32 %v1273, 1.0
      %v1284 = vlog2.pop %v1283
      %v1285 = vmul.f32 %v1284, 0.6931472
      %v1286 = vmul.f32 -0.5, %v1273
      %v1287 = vadd.f32 %v1286, 1.0
      %v1288 = vmul.f32 %v1287, %v1273
      %v1289 = vand.u32 2147483647, %v1273
      %vm1290 = vcmp.lt.f32.partialorder %v1289, 0.0004427343
      %v1291 = vsel %vm1290, %v1288, %v1285
      %v1292 = vadd.f32 %v1264, %v1282
      %v1293 = vadd.f32 %v1265, %v1291
      %v1294 = vtanh.pop %v1292
      %v1295 = vtanh.pop %v1293
      %v1296 = vmul.f32 %v1258, %v1294
      %v1297 = vmul.f32 %v1261, %v1295
      %v1300 = vunpack.c.l.b16 %v1215
      %v1301 = vunpack.c.l.b16 %v1216
      %v1302 = vpack.c.b16 %v1301, %v1300
      %1304 = vmatprep.subr.bf16.mxu0 0
      %1305 = vmatpush1.bf16.msra.mxu0 %v724
      %1306 = vmatprep.subr.bf16.mxu0 0
      %1307 = vmatpush1.bf16.msra.mxu0 %v725
      %1308 = vmatprep.subr.bf16.mxu0 0
      %1309 = vmatpush1.bf16.msra.mxu0 %v726
      %1310 = vmatprep.subr.bf16.mxu0 0
      %1311 = vmatpush1.bf16.msra.mxu0 %v727
      %1312 = vmatprep.subr.bf16.mxu0 0
      %1313 = vmatpush1.bf16.msra.mxu0 %v728
      %1314 = vmatprep.subr.bf16.mxu0 0
      %1315 = vmatpush1.bf16.msra.mxu0 %v729
      %1316 = vmatprep.subr.bf16.mxu0 0
      %1317 = vmatpush1.bf16.msra.mxu0 %v730
      %1318 = vmatprep.subr.bf16.mxu0 0
      %1319 = vmatpush1.bf16.msra.mxu0 %v731
      %1320 = vmatprep.subr.bf16.mxu0 0
      %1321 = vmatpush1.bf16.msra.mxu0 0
      %1322 = vmatprep.subr.bf16.mxu0 0
      %1323 = vmatpush1.bf16.msra.mxu0 0
      %1324 = vmatprep.subr.bf16.mxu0 0
      %1325 = vmatpush1.bf16.msra.mxu0 0
      %1326 = vmatprep.subr.bf16.mxu0 0
      %1327 = vmatpush1.bf16.msra.mxu0 0
      %1328 = vmatprep.subr.bf16.mxu0 0
      %1329 = vmatpush1.bf16.msra.mxu0 0
      %1330 = vmatprep.subr.bf16.mxu0 0
      %1331 = vmatpush1.bf16.msra.mxu0 0
      %1332 = vmatprep.subr.bf16.mxu0 0
      %1333 = vmatpush1.bf16.msra.mxu0 0
      %1334 = vmatprep.subr.bf16.mxu0 0
      %1335 = vmatpush1.bf16.msra.mxu0 0
      %1336 = vmatprep.mubr.bf16.mxu0 0
      %1337 = vmatmul.mubr.bf16.gmra.mrb[0].mxu0 %v1302
      %v1338 = vpop.f32.mrb[0].mxu0
      %v1339 = vadd.f32 %v666, %v1338
      %v1340 = vpop.f32.mrb[0].mxu0
      %v1341 = vpop.f32.mrb[0].mxu0
      %v1342 = vadd.f32 %v666, %v1341
      %v1343 = vpop.f32.mrb[0].mxu0
      %1344 = vdwg.mxu0
      %v1345 = vmax.f32 %v1339, 0.0
      %v1346 = vmax.f32 %v1342, 0.0
      %v1347 = vand.u32 2147483647, %v1339
      %v1348 = vand.u32 2147483647, %v1342
      %v1349 = vsub.f32 0.0, %v1347
      %v1350 = vsub.f32 0.0, %v1348
      %v1351 = vmul.f32 %v1349, 1.442695
      %v1352 = vpow.pop %v1351
      %v1353 = vmul.f32 %v1350, 1.442695
      %v1354 = vpow.pop %v1353
      %v1355 = vadd.f32 %v1352, 1.0
      %v1356 = vlog2.pop %v1355
      %v1357 = vmul.f32 %v1356, 0.6931472
      %v1358 = vmul.f32 -0.5, %v1352
      %v1359 = vadd.f32 %v1358, 1.0
      %v1360 = vmul.f32 %v1359, %v1352
      %v1361 = vand.u32 2147483647, %v1352
      %vm1362 = vcmp.lt.f32.partialorder %v1361, 0.0004427343
      %v1363 = vsel %vm1362, %v1360, %v1357
      %v1364 = vadd.f32 %v1354, 1.0
      %v1365 = vlog2.pop %v1364
      %v1366 = vmul.f32 %v1365, 0.6931472
      %v1367 = vmul.f32 -0.5, %v1354
      %v1368 = vadd.f32 %v1367, 1.0
      %v1369 = vmul.f32 %v1368, %v1354
      %v1370 = vand.u32 2147483647, %v1354
      %vm1371 = vcmp.lt.f32.partialorder %v1370, 0.0004427343
      %v1372 = vsel %vm1371, %v1369, %v1366
      %v1373 = vadd.f32 %v1345, %v1363
      %v1374 = vadd.f32 %v1346, %v1372
      %v1375 = vtanh.pop %v1373
      %v1376 = vtanh.pop %v1374
      %v1377 = vmul.f32 %v1339, %v1375
      %v1378 = vmul.f32 %v1342, %v1376
      %p1379 = scmp.gt.s32.totalorder %s30, 0
      %s1380 = scalar_select %p1379, 1, 0
      %s1381 = scvt.s32.f32 %s1380
      %v1382 = vstv %s1381
      %v1383 = vmul.f32 %v1296, %v1382
      %v1384 = vmul.f32 %v1297, %v1382
      %p1385 = scmp.lt.s32.totalorder %s30, 3
      %s1386 = scalar_select %p1385, 1, 0
      %s1387 = scvt.s32.f32 %s1386
      %v1388 = vstv %s1387
      %v1389 = vmul.f32 %v1377, %v1388
      %v1390 = vmul.f32 %v1378, %v1388
      %1391 = vst [vmem:[#allocation2] sm:$0x1] 0.0
      %1392 = vst [vmem:[#allocation2 + $0x18] sm:$0x1] 0.0
      %1393 = vst [vmem:[#allocation2 + $0x30] sm:$0x1] 0.0
      %1394 = vst [vmem:[#allocation2 + $0x48] sm:$0x1] 0.0
      %1395 = vst [vmem:[#allocation2 + $0x60] sm:$0x1] 0.0
      %1396 = vst [vmem:[#allocation2 + $0x78] sm:$0x1] 0.0
      %1397 = vst [vmem:[#allocation2 + $0x11] sm:$0x1] 0.0
      %1398 = vst [vmem:[#allocation2 + $0x29] sm:$0x1] 0.0
      %1399 = vst [vmem:[#allocation2 + $0x41] sm:$0x1] 0.0
      %1400 = vst [vmem:[#allocation2 + $0x59] sm:$0x1] 0.0
      %1401 = vst [vmem:[#allocation2 + $0x71] sm:$0x1] 0.0
      %1402 = vst [vmem:[#allocation2 + $0x89] sm:$0x1] 0.0
      %1403 = vst [vmem:[#allocation2 + $0x1] sm:$0xff] %v1383
      %1404 = vst [vmem:[#allocation2 + $0x9] sm:$0xff] %v1384
      %s1405 = scalar_lea.vmem [#allocation2], 24
      %1406 = vst [vmem:[%s1405 + $0x1] sm:$0xff] %v933
      %1407 = vst [vmem:[%s1405 + $0x9] sm:$0xff] %v934
      %1408 = vst [vmem:[%s1405 + $0x19] sm:$0xff] %v935
      %1409 = vst [vmem:[%s1405 + $0x21] sm:$0xff] %v936
      %1410 = vst [vmem:[%s1405 + $0x31] sm:$0xff] %v937
      %1411 = vst [vmem:[%s1405 + $0x39] sm:$0xff] %v938
      %1412 = vst [vmem:[%s1405 + $0x49] sm:$0xff] %v939
      %1413 = vst [vmem:[%s1405 + $0x51] sm:$0xff] %v940
      %s1414 = scalar_lea.vmem [#allocation2], 120
      %1415 = vst [vmem:[%s1414 + $0x1] sm:$0xff] %v1389
      %1416 = vst [vmem:[%s1414 + $0x9] sm:$0xff] %v1390
      %v1417 = vld [vmem:[#allocation2] sm:$0xff]
      %v1418 = vld [vmem:[#allocation2 + $0x8] sm:$0xff]
      %v1419 = vld [vmem:[#allocation2 + $0x18] sm:$0xff]
      %v1420 = vld [vmem:[#allocation2 + $0x20] sm:$0xff]
      %v1421 = vld [vmem:[#allocation2 + $0x30] sm:$0xff]
      %v1422 = vld [vmem:[#allocation2 + $0x38] sm:$0xff]
      %v1423 = vld [vmem:[#allocation2 + $0x48] sm:$0xff]
      %v1424 = vld [vmem:[#allocation2 + $0x50] sm:$0xff]
      %v1425 = vld [vmem:[#allocation2 + $0x60] sm:$0xff]
      %v1426 = vld [vmem:[#allocation2 + $0x68] sm:$0xff]
      %v1427 = vld [vmem:[#allocation2 + $0x78] sm:$0xff]
      %v1428 = vld [vmem:[#allocation2 + $0x80] sm:$0xff]
      %v1429 = vpack.c.bf16 %v1418, %v1417
      %v1430 = vpack.c.bf16 %v1420, %v1419
      %v1431 = vpack.c.bf16 %v1422, %v1421
      %v1432 = vpack.c.bf16 %v1424, %v1423
      %v1433 = vpack.c.bf16 %v1426, %v1425
      %v1434 = vpack.c.bf16 %v1428, %v1427
      %v1435 = vld [vmem:[#allocation2 + $0x1] sm:$0xff]
      %v1436 = vld [vmem:[#allocation2 + $0x9] sm:$0xff]
      %v1437 = vld [vmem:[#allocation2 + $0x19] sm:$0xff]
      %v1438 = vld [vmem:[#allocation2 + $0x21] sm:$0xff]
      %v1439 = vld [vmem:[#allocation2 + $0x31] sm:$0xff]
      %v1440 = vld [vmem:[#allocation2 + $0x39] sm:$0xff]
      %v1441 = vld [vmem:[#allocation2 + $0x49] sm:$0xff]
      %v1442 = vld [vmem:[#allocation2 + $0x51] sm:$0xff]
      %v1443 = vld [vmem:[#allocation2 + $0x61] sm:$0xff]
      %v1444 = vld [vmem:[#allocation2 + $0x69] sm:$0xff]
      %v1445 = vld [vmem:[#allocation2 + $0x79] sm:$0xff]
      %v1446 = vld [vmem:[#allocation2 + $0x81] sm:$0xff]
      %v1447 = vpack.c.bf16 %v1436, %v1435
      %v1448 = vpack.c.bf16 %v1438, %v1437
      %v1449 = vpack.c.bf16 %v1440, %v1439
      %v1450 = vpack.c.bf16 %v1442, %v1441
      %v1451 = vpack.c.bf16 %v1444, %v1443
      %v1452 = vpack.c.bf16 %v1446, %v1445
      %v1453 = vld [vmem:[#allocation2 + $0x2] sm:$0xff]
      %v1454 = vld [vmem:[#allocation2 + $0xa] sm:$0xff]
      %v1455 = vld [vmem:[#allocation2 + $0x1a] sm:$0xff]
      %v1456 = vld [vmem:[#allocation2 + $0x22] sm:$0xff]
      %v1457 = vld [vmem:[#allocation2 + $0x32] sm:$0xff]
      %v1458 = vld [vmem:[#allocation2 + $0x3a] sm:$0xff]
      %v1459 = vld [vmem:[#allocation2 + $0x4a] sm:$0xff]
      %v1460 = vld [vmem:[#allocation2 + $0x52] sm:$0xff]
      %v1461 = vld [vmem:[#allocation2 + $0x62] sm:$0xff]
      %v1462 = vld [vmem:[#allocation2 + $0x6a] sm:$0xff]
      %v1463 = vld [vmem:[#allocation2 + $0x7a] sm:$0xff]
      %v1464 = vld [vmem:[#allocation2 + $0x82] sm:$0xff]
      %v1465 = vpack.c.bf16 %v1454, %v1453
      %v1466 = vpack.c.bf16 %v1456, %v1455
      %v1467 = vpack.c.bf16 %v1458, %v1457
      %v1468 = vpack.c.bf16 %v1460, %v1459
      %v1469 = vpack.c.bf16 %v1462, %v1461
      %v1470 = vpack.c.bf16 %v1464, %v1463
      %v1471 = vld [vmem:[%s7] sm:$0xf]
      %v1472 = vld [vmem:[%s7 + $0x4] sm:$0xf]
      %v1473 = vld [vmem:[%s7 + $0x8] sm:$0xf]
      %v1474 = vld [vmem:[%s7 + $0xc] sm:$0xf]
      %v1475 = vld [vmem:[%s7 + $0x10] sm:$0xf]
      %v1476 = vld [vmem:[%s7 + $0x14] sm:$0xf]
      %v1477 = vld [vmem:[%s7 + $0x18] sm:$0xf]
      %v1478 = vld [vmem:[%s7 + $0x1c] sm:$0xf]
      %v1479 = vld [vmem:[%s7 + $0x20] sm:$0xf]
      %v1480 = vld [vmem:[%s7 + $0x24] sm:$0xf]
      %v1481 = vld [vmem:[%s7 + $0x28] sm:$0xf]
      %v1482 = vld [vmem:[%s7 + $0x2c] sm:$0xf]
      %v1483 = vld [vmem:[%s7 + $0x30] sm:$0xf]
      %v1484 = vld [vmem:[%s7 + $0x34] sm:$0xf]
      %v1485 = vld [vmem:[%s7 + $0x38] sm:$0xf]
      %v1486 = vld [vmem:[%s7 + $0x3c] sm:$0xf]
      %v1487 = vld [vmem:[%s7 + $0x40] sm:$0xf]
      %v1488 = vld [vmem:[%s7 + $0x44] sm:$0xf]
      %v1489 = vld [vmem:[%s7 + $0x48] sm:$0xf]
      %v1490 = vld [vmem:[%s7 + $0x4c] sm:$0xf]
      %v1491 = vld [vmem:[%s7 + $0x50] sm:$0xf]
      %v1492 = vld [vmem:[%s7 + $0x54] sm:$0xf]
      %v1493 = vld [vmem:[%s7 + $0x58] sm:$0xf]
      %v1494 = vld [vmem:[%s7 + $0x5c] sm:$0xf]
      %v1495 = vld [vmem:[%s7 + $0x60] sm:$0xf]
      %v1496 = vld [vmem:[%s7 + $0x64] sm:$0xf]
      %v1497 = vld [vmem:[%s7 + $0x68] sm:$0xf]
      %v1498 = vld [vmem:[%s7 + $0x6c] sm:$0xf]
      %v1499 = vld [vmem:[%s7 + $0x70] sm:$0xf]
      %v1500 = vld [vmem:[%s7 + $0x74] sm:$0xf]
      %v1501 = vld [vmem:[%s7 + $0x78] sm:$0xf]
      %v1502 = vld [vmem:[%s7 + $0x7c] sm:$0xf]
      %v1503 = vld [vmem:[%s7 + $0x80] sm:$0xf]
      %v1504 = vld [vmem:[%s7 + $0x84] sm:$0xf]
      %v1505 = vld [vmem:[%s7 + $0x88] sm:$0xf]
      %v1506 = vld [vmem:[%s7 + $0x8c] sm:$0xf]
      %v1507 = vld [vmem:[%s7 + $0x90] sm:$0xf]
      %v1508 = vld [vmem:[%s7 + $0x94] sm:$0xf]
      %v1509 = vld [vmem:[%s7 + $0x98] sm:$0xf]
      %v1510 = vld [vmem:[%s7 + $0x9c] sm:$0xf]
      %v1511 = vld [vmem:[%s7 + $0xa0] sm:$0xf]
      %v1512 = vld [vmem:[%s7 + $0xa4] sm:$0xf]
      %v1513 = vld [vmem:[%s7 + $0xa8] sm:$0xf]
      %v1514 = vld [vmem:[%s7 + $0xac] sm:$0xf]
      %v1515 = vld [vmem:[%s7 + $0xb0] sm:$0xf]
      %v1516 = vld [vmem:[%s7 + $0xb4] sm:$0xf]
      %v1517 = vld [vmem:[%s7 + $0xb8] sm:$0xf]
      %v1518 = vld [vmem:[%s7 + $0xbc] sm:$0xf]
      %s1519 = scalar_lea.vmem %s7, 192
      %v1520 = vld [vmem:[%s1519] sm:$0xf]
      %v1521 = vld [vmem:[%s1519 + $0x4] sm:$0xf]
      %v1522 = vld [vmem:[%s1519 + $0x8] sm:$0xf]
      %v1523 = vld [vmem:[%s1519 + $0xc] sm:$0xf]
      %v1524 = vld [vmem:[%s1519 + $0x10] sm:$0xf]
      %v1525 = vld [vmem:[%s1519 + $0x14] sm:$0xf]
      %v1526 = vld [vmem:[%s1519 + $0x18] sm:$0xf]
      %v1527 = vld [vmem:[%s1519 + $0x1c] sm:$0xf]
      %v1528 = vld [vmem:[%s1519 + $0x20] sm:$0xf]
      %v1529 = vld [vmem:[%s1519 + $0x24] sm:$0xf]
      %v1530 = vld [vmem:[%s1519 + $0x28] sm:$0xf]
      %v1531 = vld [vmem:[%s1519 + $0x2c] sm:$0xf]
      %v1532 = vld [vmem:[%s1519 + $0x30] sm:$0xf]
      %v1533 = vld [vmem:[%s1519 + $0x34] sm:$0xf]
      %v1534 = vld [vmem:[%s1519 + $0x38] sm:$0xf]
      %v1535 = vld [vmem:[%s1519 + $0x3c] sm:$0xf]
      %v1536 = vld [vmem:[%s1519 + $0x40] sm:$0xf]
      %v1537 = vld [vmem:[%s1519 + $0x44] sm:$0xf]
      %v1538 = vld [vmem:[%s1519 + $0x48] sm:$0xf]
      %v1539 = vld [vmem:[%s1519 + $0x4c] sm:$0xf]
      %v1540 = vld [vmem:[%s1519 + $0x50] sm:$0xf]
      %v1541 = vld [vmem:[%s1519 + $0x54] sm:$0xf]
      %v1542 = vld [vmem:[%s1519 + $0x58] sm:$0xf]
      %v1543 = vld [vmem:[%s1519 + $0x5c] sm:$0xf]
      %v1544 = vld [vmem:[%s1519 + $0x60] sm:$0xf]
      %v1545 = vld [vmem:[%s1519 + $0x64] sm:$0xf]
      %v1546 = vld [vmem:[%s1519 + $0x68] sm:$0xf]
      %v1547 = vld [vmem:[%s1519 + $0x6c] sm:$0xf]
      %v1548 = vld [vmem:[%s1519 + $0x70] sm:$0xf]
      %v1549 = vld [vmem:[%s1519 + $0x74] sm:$0xf]
      %v1550 = vld [vmem:[%s1519 + $0x78] sm:$0xf]
      %v1551 = vld [vmem:[%s1519 + $0x7c] sm:$0xf]
      %v1552 = vld [vmem:[%s1519 + $0x80] sm:$0xf]
      %v1553 = vld [vmem:[%s1519 + $0x84] sm:$0xf]
      %v1554 = vld [vmem:[%s1519 + $0x88] sm:$0xf]
      %v1555 = vld [vmem:[%s1519 + $0x8c] sm:$0xf]
      %v1556 = vld [vmem:[%s1519 + $0x90] sm:$0xf]
      %v1557 = vld [vmem:[%s1519 + $0x94] sm:$0xf]
      %v1558 = vld [vmem:[%s1519 + $0x98] sm:$0xf]
      %v1559 = vld [vmem:[%s1519 + $0x9c] sm:$0xf]
      %v1560 = vld [vmem:[%s1519 + $0xa0] sm:$0xf]
      %v1561 = vld [vmem:[%s1519 + $0xa4] sm:$0xf]
      %v1562 = vld [vmem:[%s1519 + $0xa8] sm:$0xf]
      %v1563 = vld [vmem:[%s1519 + $0xac] sm:$0xf]
      %v1564 = vld [vmem:[%s1519 + $0xb0] sm:$0xf]
      %v1565 = vld [vmem:[%s1519 + $0xb4] sm:$0xf]
      %v1566 = vld [vmem:[%s1519 + $0xb8] sm:$0xf]
      %v1567 = vld [vmem:[%s1519 + $0xbc] sm:$0xf]
      %v1616 = vunpack.c.l.b16 %v1520
      %v1617 = vunpack.c.l.b16 %v1521
      %v1618 = vunpack.c.l.b16 %v1522
      %v1619 = vunpack.c.l.b16 %v1523
      %v1620 = vunpack.c.l.b16 %v1524
      %v1621 = vunpack.c.l.b16 %v1525
      %v1622 = vunpack.c.l.b16 %v1526
      %v1623 = vunpack.c.l.b16 %v1527
      %v1624 = vunpack.c.l.b16 %v1528
      %v1625 = vunpack.c.l.b16 %v1529
      %v1626 = vunpack.c.l.b16 %v1530
      %v1627 = vunpack.c.l.b16 %v1531
      %v1628 = vunpack.c.l.b16 %v1532
      %v1629 = vunpack.c.l.b16 %v1533
      %v1630 = vunpack.c.l.b16 %v1534
      %v1631 = vunpack.c.l.b16 %v1535
      %v1632 = vunpack.c.l.b16 %v1536
      %v1633 = vunpack.c.l.b16 %v1537
      %v1634 = vunpack.c.l.b16 %v1538
      %v1635 = vunpack.c.l.b16 %v1539
      %v1636 = vunpack.c.l.b16 %v1540
      %v1637 = vunpack.c.l.b16 %v1541
      %v1638 = vunpack.c.l.b16 %v1542
      %v1639 = vunpack.c.l.b16 %v1543
      %v1640 = vunpack.c.l.b16 %v1544
      %v1641 = vunpack.c.l.b16 %v1545
      %v1642 = vunpack.c.l.b16 %v1546
      %v1643 = vunpack.c.l.b16 %v1547
      %v1644 = vunpack.c.l.b16 %v1548
      %v1645 = vunpack.c.l.b16 %v1549
      %v1646 = vunpack.c.l.b16 %v1550
      %v1647 = vunpack.c.l.b16 %v1551
      %v1648 = vunpack.c.l.b16 %v1552
      %v1649 = vunpack.c.l.b16 %v1553
      %v1650 = vunpack.c.l.b16 %v1554
      %v1651 = vunpack.c.l.b16 %v1555
      %v1652 = vunpack.c.l.b16 %v1556
      %v1653 = vunpack.c.l.b16 %v1557
      %v1654 = vunpack.c.l.b16 %v1558
      %v1655 = vunpack.c.l.b16 %v1559
      %v1656 = vunpack.c.l.b16 %v1560
      %v1657 = vunpack.c.l.b16 %v1561
      %v1658 = vunpack.c.l.b16 %v1562
      %v1659 = vunpack.c.l.b16 %v1563
      %v1660 = vunpack.c.l.b16 %v1564
      %v1661 = vunpack.c.l.b16 %v1565
      %v1662 = vunpack.c.l.b16 %v1566
      %v1663 = vunpack.c.l.b16 %v1567
      %v1664 = vpack.c.b16 %v1617, %v1616
      %v1665 = vpack.c.b16 %v1619, %v1618
      %v1666 = vpack.c.b16 %v1621, %v1620
      %v1667 = vpack.c.b16 %v1623, %v1622
      %v1668 = vpack.c.b16 %v1625, %v1624
      %v1669 = vpack.c.b16 %v1627, %v1626
      %v1670 = vpack.c.b16 %v1629, %v1628
      %v1671 = vpack.c.b16 %v1631, %v1630
      %v1672 = vpack.c.b16 %v1633, %v1632
      %v1673 = vpack.c.b16 %v1635, %v1634
      %v1674 = vpack.c.b16 %v1637, %v1636
      %v1675 = vpack.c.b16 %v1639, %v1638
      %v1676 = vpack.c.b16 %v1641, %v1640
      %v1677 = vpack.c.b16 %v1643, %v1642
      %v1678 = vpack.c.b16 %v1645, %v1644
      %v1679 = vpack.c.b16 %v1647, %v1646
      %v1680 = vpack.c.b16 %v1649, %v1648
      %v1681 = vpack.c.b16 %v1651, %v1650
      %v1682 = vpack.c.b16 %v1653, %v1652
      %v1683 = vpack.c.b16 %v1655, %v1654
      %v1684 = vpack.c.b16 %v1657, %v1656
      %v1685 = vpack.c.b16 %v1659, %v1658
      %v1686 = vpack.c.b16 %v1661, %v1660
      %v1687 = vpack.c.b16 %v1663, %v1662
      %1712 = vmatprep.subr.bf16.mxu0 0
      %1713 = vmatpush1.bf16.msra.mxu0 %v1664
      %1714 = vmatprep.subr.bf16.mxu0 0
      %1715 = vmatpush1.bf16.msra.mxu0 %v1665
      %1716 = vmatprep.subr.bf16.mxu0 0
      %1717 = vmatpush1.bf16.msra.mxu0 %v1666
      %1718 = vmatprep.subr.bf16.mxu0 0
      %1719 = vmatpush1.bf16.msra.mxu0 %v1667
      %1720 = vmatprep.subr.bf16.mxu0 0
      %1721 = vmatpush1.bf16.msra.mxu0 %v1668
      %1722 = vmatprep.subr.bf16.mxu0 0
      %1723 = vmatpush1.bf16.msra.mxu0 %v1669
      %1724 = vmatprep.subr.bf16.mxu0 0
      %1725 = vmatpush1.bf16.msra.mxu0 %v1670
      %1726 = vmatprep.subr.bf16.mxu0 0
      %1727 = vmatpush1.bf16.msra.mxu0 %v1671
      %1728 = vmatprep.subr.bf16.mxu0 0
      %1729 = vmatpush1.bf16.msra.mxu0 %v1672
      %1730 = vmatprep.subr.bf16.mxu0 0
      %1731 = vmatpush1.bf16.msra.mxu0 %v1673
      %1732 = vmatprep.subr.bf16.mxu0 0
      %1733 = vmatpush1.bf16.msra.mxu0 %v1674
      %1734 = vmatprep.subr.bf16.mxu0 0
      %1735 = vmatpush1.bf16.msra.mxu0 %v1675
      %1736 = vmatprep.subr.bf16.mxu0 0
      %1737 = vmatpush1.bf16.msra.mxu0 %v1676
      %1738 = vmatprep.subr.bf16.mxu0 0
      %1739 = vmatpush1.bf16.msra.mxu0 %v1677
      %1740 = vmatprep.subr.bf16.mxu0 0
      %1741 = vmatpush1.bf16.msra.mxu0 %v1678
      %1742 = vmatprep.subr.bf16.mxu0 0
      %1743 = vmatpush1.bf16.msra.mxu0 %v1679
      %1744 = vmatprep.mubr.bf16.mxu0 %v1448
      %1745 = vmatmul.mubr.bf16.gmra.mrb[0].mxu0 %v1430
      %v1746 = vpop.f32.mrb[0].mxu0
      %v1747 = vadd.f32 0.0, %v1746
      %v1748 = vpop.f32.mrb[0].mxu0
      %v1749 = vpop.f32.mrb[0].mxu0
      %v1750 = vadd.f32 0.0, %v1749
      %v1751 = vpop.f32.mrb[0].mxu0
      %1752 = vmatprep.mubr.bf16.mxu0 %v1449
      %1753 = vmatmul.mubr.bf16.gmra.mrb[0].mxu0 %v1431
      %v1754 = vpop.f32.mrb[0].mxu0
      %v1755 = vadd.f32 0.0, %v1754
      %v1756 = vpop.f32.mrb[0].mxu0
      %v1757 = vpop.f32.mrb[0].mxu0
      %v1758 = vadd.f32 0.0, %v1757
      %v1759 = vpop.f32.mrb[0].mxu0
      %1760 = vmatprep.mubr.bf16.mxu0 %v1450
      %1761 = vmatmul.mubr.bf16.gmra.mrb[0].mxu0 %v1432
      %v1762 = vpop.f32.mrb[0].mxu0
      %v1763 = vadd.f32 0.0, %v1762
      %v1764 = vpop.f32.mrb[0].mxu0
      %v1765 = vpop.f32.mrb[0].mxu0
      %v1766 = vadd.f32 0.0, %v1765
      %v1767 = vpop.f32.mrb[0].mxu0
      %1768 = vmatprep.mubr.bf16.mxu0 %v1451
      %1769 = vmatmul.mubr.bf16.gmra.mrb[0].mxu0 %v1433
      %v1770 = vpop.f32.mrb[0].mxu0
      %v1771 = vadd.f32 0.0, %v1770
      %v1772 = vpop.f32.mrb[0].mxu0
      %v1773 = vpop.f32.mrb[0].mxu0
      %v1774 = vadd.f32 0.0, %v1773
      %v1775 = vpop.f32.mrb[0].mxu0
      %1776 = vdwg.mxu0
      %1777 = vmatprep.subr.bf16.mxu0 0
      %1778 = vmatpush1.bf16.msra.mxu0 %v1680
      %1779 = vmatprep.subr.bf16.mxu0 0
      %1780 = vmatpush1.bf16.msra.mxu0 %v1681
      %1781 = vmatprep.subr.bf16.mxu0 0
      %1782 = vmatpush1.bf16.msra.mxu0 %v1682
      %1783 = vmatprep.subr.bf16.mxu0 0
      %1784 = vmatpush1.bf16.msra.mxu0 %v1683
      %1785 = vmatprep.subr.bf16.mxu0 0
      %1786 = vmatpush1.bf16.msra.mxu0 %v1684
      %1787 = vmatprep.subr.bf16.mxu0 0
      %1788 = vmatpush1.bf16.msra.mxu0 %v1685
      %1789 = vmatprep.subr.bf16.mxu0 0
      %1790 = vmatpush1.bf16.msra.mxu0 %v1686
      %1791 = vmatprep.subr.bf16.mxu0 0
      %1792 = vmatpush1.bf16.msra.mxu0 %v1687
      %1793 = vmatprep.subr.bf16.mxu0 0
      %1794 = vmatpush1.bf16.msra.mxu0 0
      %1795 = vmatprep.subr.bf16.mxu0 0
      %1796 = vmatpush1.bf16.msra.mxu0 0
      %1797 = vmatprep.subr.bf16.mxu0 0
      %1798 = vmatpush1.bf16.msra.mxu0 0
      %1799 = vmatprep.subr.bf16.mxu0 0
      %1800 = vmatpush1.bf16.msra.mxu0 0
      %1801 = vmatprep.subr.bf16.mxu0 0
      %1802 = vmatpush1.bf16.msra.mxu0 0
      %1803 = vmatprep.subr.bf16.mxu0 0
      %1804 = vmatpush1.bf16.msra.mxu0 0
      %1805 = vmatprep.subr.bf16.mxu0 0
      %1806 = vmatpush1.bf16.msra.mxu0 0
      %1807 = vmatprep.subr.bf16.mxu0 0
      %1808 = vmatpush1.bf16.msra.mxu0 0
      %1809 = vmatprep.mubr.bf16.mxu0 0
      %1810 = vmatmul.mubr.bf16.gmra.mrb[0].mxu0 %v1466
      %v1811 = vpop.f32.mrb[0].mxu0
      %v1812 = vadd.f32 %v1747, %v1811
      %v1813 = vpop.f32.mrb[0].mxu0
      %v1814 = vpop.f32.mrb[0].mxu0
      %v1815 = vadd.f32 %v1750, %v1814
      %v1816 = vpop.f32.mrb[0].mxu0
      %1817 = vmatprep.mubr.bf16.mxu0 0
      %1818 = vmatmul.mubr.bf16.gmra.mrb[0].mxu0 %v1467
      %v1819 = vpop.f32.mrb[0].mxu0
      %v1820 = vadd.f32 %v1755, %v1819
      %v1821 = vpop.f32.mrb[0].mxu0
      %v1822 = vpop.f32.mrb[0].mxu0
      %v1823 = vadd.f32 %v1758, %v1822
      %v1824 = vpop.f32.mrb[0].mxu0
      %1825 = vmatprep.mubr.bf16.mxu0 0
      %1826 = vmatmul.mubr.bf16.gmra.mrb[0].mxu0 %v1468
      %v1827 = vpop.f32.mrb[0].mxu0
      %v1828 = vadd.f32 %v1763, %v1827
      %v1829 = vpop.f32.mrb[0].mxu0
      %v1830 = vpop.f32.mrb[0].mxu0
      %v1831 = vadd.f32 %v1766, %v1830
      %v1832 = vpop.f32.mrb[0].mxu0
      %1833 = vmatprep.mubr.bf16.mxu0 0
      %1834 = vmatmul.mubr.bf16.gmra.mrb[0].mxu0 %v1469
      %v1835 = vpop.f32.mrb[0].mxu0
      %v1836 = vadd.f32 %v1771, %v1835
      %v1837 = vpop.f32.mrb[0].mxu0
      %v1838 = vpop.f32.mrb[0].mxu0
      %v1839 = vadd.f32 %v1774, %v1838
      %v1840 = vpop.f32.mrb[0].mxu0
      %1841 = vdwg.mxu0
      %v1890 = vunpack.c.l.b16 %v1471
      %v1891 = vunpack.c.l.b16 %v1472
      %v1892 = vunpack.c.l.b16 %v1473
      %v1893 = vunpack.c.l.b16 %v1474
      %v1894 = vunpack.c.l.b16 %v1475
      %v1895 = vunpack.c.l.b16 %v1476
      %v1896 = vunpack.c.l.b16 %v1477
      %v1897 = vunpack.c.l.b16 %v1478
      %v1898 = vunpack.c.l.b16 %v1479
      %v1899 = vunpack.c.l.b16 %v1480
      %v1900 = vunpack.c.l.b16 %v1481
      %v1901 = vunpack.c.l.b16 %v1482
      %v1902 = vunpack.c.l.b16 %v1483
      %v1903 = vunpack.c.l.b16 %v1484
      %v1904 = vunpack.c.l.b16 %v1485
      %v1905 = vunpack.c.l.b16 %v1486
      %v1906 = vunpack.c.l.b16 %v1487
      %v1907 = vunpack.c.l.b16 %v1488
      %v1908 = vunpack.c.l.b16 %v1489
      %v1909 = vunpack.c.l.b16 %v1490
      %v1910 = vunpack.c.l.b16 %v1491
      %v1911 = vunpack.c.l.b16 %v1492
      %v1912 = vunpack.c.l.b16 %v1493
      %v1913 = vunpack.c.l.b16 %v1494
      %v1914 = vunpack.c.l.b16 %v1495
      %v1915 = vunpack.c.l.b16 %v1496
      %v1916 = vunpack.c.l.b16 %v1497
      %v1917 = vunpack.c.l.b16 %v1498
      %v1918 = vunpack.c.l.b16 %v1499
      %v1919 = vunpack.c.l.b16 %v1500
      %v1920 = vunpack.c.l.b16 %v1501
      %v1921 = vunpack.c.l.b16 %v1502
      %v1922 = vunpack.c.l.b16 %v1503
      %v1923 = vunpack.c.l.b16 %v1504
      %v1924 = vunpack.c.l.b16 %v1505
      %v1925 = vunpack.c.l.b16 %v1506
      %v1926 = vunpack.c.l.b16 %v1507
      %v1927 = vunpack.c.l.b16 %v1508
      %v1928 = vunpack.c.l.b16 %v1509
      %v1929 = vunpack.c.l.b16 %v1510
      %v1930 = vunpack.c.l.b16 %v1511
      %v1931 = vunpack.c.l.b16 %v1512
      %v1932 = vunpack.c.l.b16 %v1513
      %v1933 = vunpack.c.l.b16 %v1514
      %v1934 = vunpack.c.l.b16 %v1515
      %v1935 = vunpack.c.l.b16 %v1516
      %v1936 = vunpack.c.l.b16 %v1517
      %v1937 = vunpack.c.l.b16 %v1518
      %v1938 = vpack.c.b16 %v1891, %v1890
      %v1939 = vpack.c.b16 %v1893, %v1892
      %v1940 = vpack.c.b16 %v1895, %v1894
      %v1941 = vpack.c.b16 %v1897, %v1896
      %v1942 = vpack.c.b16 %v1899, %v1898
      %v1943 = vpack.c.b16 %v1901, %v1900
      %v1944 = vpack.c.b16 %v1903, %v1902
      %v1945 = vpack.c.b16 %v1905, %v1904
      %v1946 = vpack.c.b16 %v1907, %v1906
      %v1947 = vpack.c.b16 %v1909, %v1908
      %v1948 = vpack.c.b16 %v1911, %v1910
      %v1949 = vpack.c.b16 %v1913, %v1912
      %v1950 = vpack.c.b16 %v1915, %v1914
      %v1951 = vpack.c.b16 %v1917, %v1916
      %v1952 = vpack.c.b16 %v1919, %v1918
      %v1953 = vpack.c.b16 %v1921, %v1920
      %v1954 = vpack.c.b16 %v1923, %v1922
      %v1955 = vpack.c.b16 %v1925, %v1924
      %v1956 = vpack.c.b16 %v1927, %v1926
      %v1957 = vpack.c.b16 %v1929, %v1928
      %v1958 = vpack.c.b16 %v1931, %v1930
      %v1959 = vpack.c.b16 %v1933, %v1932
      %v1960 = vpack.c.b16 %v1935, %v1934
      %v1961 = vpack.c.b16 %v1937, %v1936
      %1986 = vmatprep.subr.bf16.mxu0 0
      %1987 = vmatpush1.bf16.msra.mxu0 %v1938
      %1988 = vmatprep.subr.bf16.mxu0 0
      %1989 = vmatpush1.bf16.msra.mxu0 %v1939
      %1990 = vmatprep.subr.bf16.mxu0 0
      %1991 = vmatpush1.bf16.msra.mxu0 %v1940
      %1992 = vmatprep.subr.bf16.mxu0 0
      %1993 = vmatpush1.bf16.msra.mxu0 %v1941
      %1994 = vmatprep.subr.bf16.mxu0 0
      %1995 = vmatpush1.bf16.msra.mxu0 %v1942
      %1996 = vmatprep.subr.bf16.mxu0 0
      %1997 = vmatpush1.bf16.msra.mxu0 %v1943
      %1998 = vmatprep.subr.bf16.mxu0 0
      %1999 = vmatpush1.bf16.msra.mxu0 %v1944
      %2000 = vmatprep.subr.bf16.mxu0 0
      %2001 = vmatpush1.bf16.msra.mxu0 %v1945
      %2002 = vmatprep.subr.bf16.mxu0 0
      %2003 = vmatpush1.bf16.msra.mxu0 %v1946
      %2004 = vmatprep.subr.bf16.mxu0 0
      %2005 = vmatpush1.bf16.msra.mxu0 %v1947
      %2006 = vmatprep.subr.bf16.mxu0 0
      %2007 = vmatpush1.bf16.msra.mxu0 %v1948
      %2008 = vmatprep.subr.bf16.mxu0 0
      %2009 = vmatpush1.bf16.msra.mxu0 %v1949
      %2010 = vmatprep.subr.bf16.mxu0 0
      %2011 = vmatpush1.bf16.msra.mxu0 %v1950
      %2012 = vmatprep.subr.bf16.mxu0 0
      %2013 = vmatpush1.bf16.msra.mxu0 %v1951
      %2014 = vmatprep.subr.bf16.mxu0 0
      %2015 = vmatpush1.bf16.msra.mxu0 %v1952
      %2016 = vmatprep.subr.bf16.mxu0 0
      %2017 = vmatpush1.bf16.msra.mxu0 %v1953
      %2018 = vmatprep.mubr.bf16.mxu0 %v1447
      %2019 = vmatmul.mubr.bf16.gmra.mrb[0].mxu0 %v1429
      %v2020 = vpop.f32.mrb[0].mxu0
      %v2021 = vadd.f32 %v1812, %v2020
      %v2022 = vpop.f32.mrb[0].mxu0
      %v2023 = vpop.f32.mrb[0].mxu0
      %v2024 = vadd.f32 %v1815, %v2023
      %v2025 = vpop.f32.mrb[0].mxu0
      %2026 = vmatprep.mubr.bf16.mxu0 %v1448
      %2027 = vmatmul.mubr.bf16.gmra.mrb[0].mxu0 %v1430
      %v2028 = vpop.f32.mrb[0].mxu0
      %v2029 = vadd.f32 %v1820, %v2028
      %v2030 = vpop.f32.mrb[0].mxu0
      %v2031 = vpop.f32.mrb[0].mxu0
      %v2032 = vadd.f32 %v1823, %v2031
      %v2033 = vpop.f32.mrb[0].mxu0
      %2034 = vmatprep.mubr.bf16.mxu0 %v1449
      %2035 = vmatmul.mubr.bf16.gmra.mrb[0].mxu0 %v1431
      %v2036 = vpop.f32.mrb[0].mxu0
      %v2037 = vadd.f32 %v1828, %v2036
      %v2038 = vpop.f32.mrb[0].mxu0
      %v2039 = vpop.f32.mrb[0].mxu0
      %v2040 = vadd.f32 %v1831, %v2039
      %v2041 = vpop.f32.mrb[0].mxu0
      %2042 = vmatprep.mubr.bf16.mxu0 %v1450
      %2043 = vmatmul.mubr.bf16.gmra.mrb[0].mxu0 %v1432
      %v2044 = vpop.f32.mrb[0].mxu0
      %v2045 = vadd.f32 %v1836, %v2044
      %v2046 = vpop.f32.mrb[0].mxu0
      %v2047 = vpop.f32.mrb[0].mxu0
      %v2048 = vadd.f32 %v1839, %v2047
      %v2049 = vpop.f32.mrb[0].mxu0
      %2050 = vdwg.mxu0
      %2051 = vmatprep.subr.bf16.mxu0 0
      %2052 = vmatpush1.bf16.msra.mxu0 %v1954
      %2053 = vmatprep.subr.bf16.mxu0 0
      %2054 = vmatpush1.bf16.msra.mxu0 %v1955
      %2055 = vmatprep.subr.bf16.mxu0 0
      %2056 = vmatpush1.bf16.msra.mxu0 %v1956
      %2057 = vmatprep.subr.bf16.mxu0 0
      %2058 = vmatpush1.bf16.msra.mxu0 %v1957
      %2059 = vmatprep.subr.bf16.mxu0 0
      %2060 = vmatpush1.bf16.msra.mxu0 %v1958
      %2061 = vmatprep.subr.bf16.mxu0 0
      %2062 = vmatpush1.bf16.msra.mxu0 %v1959
      %2063 = vmatprep.subr.bf16.mxu0 0
      %2064 = vmatpush1.bf16.msra.mxu0 %v1960
      %2065 = vmatprep.subr.bf16.mxu0 0
      %2066 = vmatpush1.bf16.msra.mxu0 %v1961
      %2067 = vmatprep.subr.bf16.mxu0 0
      %2068 = vmatpush1.bf16.msra.mxu0 0
      %2069 = vmatprep.subr.bf16.mxu0 0
      %2070 = vmatpush1.bf16.msra.mxu0 0
      %2071 = vmatprep.subr.bf16.mxu0 0
      %2072 = vmatpush1.bf16.msra.mxu0 0
      %2073 = vmatprep.subr.bf16.mxu0 0
      %2074 = vmatpush1.bf16.msra.mxu0 0
      %2075 = vmatprep.subr.bf16.mxu0 0
      %2076 = vmatpush1.bf16.msra.mxu0 0
      %2077 = vmatprep.subr.bf16.mxu0 0
      %2078 = vmatpush1.bf16.msra.mxu0 0
      %2079 = vmatprep.subr.bf16.mxu0 0
      %2080 = vmatpush1.bf16.msra.mxu0 0
      %2081 = vmatprep.subr.bf16.mxu0 0
      %2082 = vmatpush1.bf16.msra.mxu0 0
      %2083 = vmatprep.mubr.bf16.mxu0 0
      %2084 = vmatmul.mubr.bf16.gmra.mrb[0].mxu0 %v1465
      %v2085 = vpop.f32.mrb[0].mxu0
      %v2086 = vadd.f32 %v2021, %v2085
      %v2087 = vpop.f32.mrb[0].mxu0
      %v2088 = vpop.f32.mrb[0].mxu0
      %v2089 = vadd.f32 %v2024, %v2088
      %v2090 = vpop.f32.mrb[0].mxu0
      %2091 = vmatprep.mubr.bf16.mxu0 0
      %2092 = vmatmul.mubr.bf16.gmra.mrb[0].mxu0 %v1466
      %v2093 = vpop.f32.mrb[0].mxu0
      %v2094 = vadd.f32 %v2029, %v2093
      %v2095 = vpop.f32.mrb[0].mxu0
      %v2096 = vpop.f32.mrb[0].mxu0
      %v2097 = vadd.f32 %v2032, %v2096
      %v2098 = vpop.f32.mrb[0].mxu0
      %2099 = vmatprep.mubr.bf16.mxu0 0
      %2100 = vmatmul.mubr.bf16.gmra.mrb[0].mxu0 %v1467
      %v2101 = vpop.f32.mrb[0].mxu0
      %v2102 = vadd.f32 %v2037, %v2101
      %v2103 = vpop.f32.mrb[0].mxu0
      %v2104 = vpop.f32.mrb[0].mxu0
      %v2105 = vadd.f32 %v2040, %v2104
      %v2106 = vpop.f32.mrb[0].mxu0
      %2107 = vmatprep.mubr.bf16.mxu0 0
      %2108 = vmatmul.mubr.bf16.gmra.mrb[0].mxu0 %v1468
      %v2109 = vpop.f32.mrb[0].mxu0
      %v2110 = vadd.f32 %v2045, %v2109
      %v2111 = vpop.f32.mrb[0].mxu0
      %v2112 = vpop.f32.mrb[0].mxu0
      %v2113 = vadd.f32 %v2048, %v2112
      %v2114 = vpop.f32.mrb[0].mxu0
      %2115 = vdwg.mxu0
      %s2116 = scalar_lea.vmem %s7, 384
      %v2117 = vld [vmem:[%s2116] sm:$0xf]
      %v2118 = vld [vmem:[%s2116 + $0x4] sm:$0xf]
      %v2119 = vld [vmem:[%s2116 + $0x8] sm:$0xf]
      %v2120 = vld [vmem:[%s2116 + $0xc] sm:$0xf]
      %v2121 = vld [vmem:[%s2116 + $0x10] sm:$0xf]
      %v2122 = vld [vmem:[%s2116 + $0x14] sm:$0xf]
      %v2123 = vld [vmem:[%s2116 + $0x18] sm:$0xf]
      %v2124 = vld [vmem:[%s2116 + $0x1c] sm:$0xf]
      %v2125 = vld [vmem:[%s2116 + $0x20] sm:$0xf]
      %v2126 = vld [vmem:[%s2116 + $0x24] sm:$0xf]
      %v2127 = vld [vmem:[%s2116 + $0x28] sm:$0xf]
      %v2128 = vld [vmem:[%s2116 + $0x2c] sm:$0xf]
      %v2129 = vld [vmem:[%s2116 + $0x30] sm:$0xf]
      %v2130 = vld [vmem:[%s2116 + $0x34] sm:$0xf]
      %v2131 = vld [vmem:[%s2116 + $0x38] sm:$0xf]
      %v2132 = vld [vmem:[%s2116 + $0x3c] sm:$0xf]
      %v2133 = vld [vmem:[%s2116 + $0x40] sm:$0xf]
      %v2134 = vld [vmem:[%s2116 + $0x44] sm:$0xf]
      %v2135 = vld [vmem:[%s2116 + $0x48] sm:$0xf]
      %v2136 = vld [vmem:[%s2116 + $0x4c] sm:$0xf]
      %v2137 = vld [vmem:[%s2116 + $0x50] sm:$0xf]
      %v2138 = vld [vmem:[%s2116 + $0x54] sm:$0xf]
      %v2139 = vld [vmem:[%s2116 + $0x58] sm:$0xf]
      %v2140 = vld [vmem:[%s2116 + $0x5c] sm:$0xf]
      %v2141 = vld [vmem:[%s2116 + $0x60] sm:$0xf]
      %v2142 = vld [vmem:[%s2116 + $0x64] sm:$0xf]
      %v2143 = vld [vmem:[%s2116 + $0x68] sm:$0xf]
      %v2144 = vld [vmem:[%s2116 + $0x6c] sm:$0xf]
      %v2145 = vld [vmem:[%s2116 + $0x70] sm:$0xf]
      %v2146 = vld [vmem:[%s2116 + $0x74] sm:$0xf]
      %v2147 = vld [vmem:[%s2116 + $0x78] sm:$0xf]
      %v2148 = vld [vmem:[%s2116 + $0x7c] sm:$0xf]
      %v2149 = vld [vmem:[%s2116 + $0x80] sm:$0xf]
      %v2150 = vld [vmem:[%s2116 + $0x84] sm:$0xf]
      %v2151 = vld [vmem:[%s2116 + $0x88] sm:$0xf]
      %v2152 = vld [vmem:[%s2116 + $0x8c] sm:$0xf]
      %v2153 = vld [vmem:[%s2116 + $0x90] sm:$0xf]
      %v2154 = vld [vmem:[%s2116 + $0x94] sm:$0xf]
      %v2155 = vld [vmem:[%s2116 + $0x98] sm:$0xf]
      %v2156 = vld [vmem:[%s2116 + $0x9c] sm:$0xf]
      %v2157 = vld [vmem:[%s2116 + $0xa0] sm:$0xf]
      %v2158 = vld [vmem:[%s2116 + $0xa4] sm:$0xf]
      %v2159 = vld [vmem:[%s2116 + $0xa8] sm:$0xf]
      %v2160 = vld [vmem:[%s2116 + $0xac] sm:$0xf]
      %v2161 = vld [vmem:[%s2116 + $0xb0] sm:$0xf]
      %v2162 = vld [vmem:[%s2116 + $0xb4] sm:$0xf]
      %v2163 = vld [vmem:[%s2116 + $0xb8] sm:$0xf]
      %v2164 = vld [vmem:[%s2116 + $0xbc] sm:$0xf]
      %v2213 = vunpack.c.l.b16 %v2117
      %v2214 = vunpack.c.l.b16 %v2118
      %v2215 = vunpack.c.l.b16 %v2119
      %v2216 = vunpack.c.l.b16 %v2120
      %v2217 = vunpack.c.l.b16 %v2121
      %v2218 = vunpack.c.l.b16 %v2122
      %v2219 = vunpack.c.l.b16 %v2123
      %v2220 = vunpack.c.l.b16 %v2124
      %v2221 = vunpack.c.l.b16 %v2125
      %v2222 = vunpack.c.l.b16 %v2126
      %v2223 = vunpack.c.l.b16 %v2127
      %v2224 = vunpack.c.l.b16 %v2128
      %v2225 = vunpack.c.l.b16 %v2129
      %v2226 = vunpack.c.l.b16 %v2130
      %v2227 = vunpack.c.l.b16 %v2131
      %v2228 = vunpack.c.l.b16 %v2132
      %v2229 = vunpack.c.l.b16 %v2133
      %v2230 = vunpack.c.l.b16 %v2134
      %v2231 = vunpack.c.l.b16 %v2135
      %v2232 = vunpack.c.l.b16 %v2136
      %v2233 = vunpack.c.l.b16 %v2137
      %v2234 = vunpack.c.l.b16 %v2138
      %v2235 = vunpack.c.l.b16 %v2139
      %v2236 = vunpack.c.l.b16 %v2140
      %v2237 = vunpack.c.l.b16 %v2141
      %v2238 = vunpack.c.l.b16 %v2142
      %v2239 = vunpack.c.l.b16 %v2143
      %v2240 = vunpack.c.l.b16 %v2144
      %v2241 = vunpack.c.l.b16 %v2145
      %v2242 = vunpack.c.l.b16 %v2146
      %v2243 = vunpack.c.l.b16 %v2147
      %v2244 = vunpack.c.l.b16 %v2148
      %v2245 = vunpack.c.l.b16 %v2149
      %v2246 = vunpack.c.l.b16 %v2150
      %v2247 = vunpack.c.l.b16 %v2151
      %v2248 = vunpack.c.l.b16 %v2152
      %v2249 = vunpack.c.l.b16 %v2153
      %v2250 = vunpack.c.l.b16 %v2154
      %v2251 = vunpack.c.l.b16 %v2155
      %v2252 = vunpack.c.l.b16 %v2156
      %v2253 = vunpack.c.l.b16 %v2157
      %v2254 = vunpack.c.l.b16 %v2158
      %v2255 = vunpack.c.l.b16 %v2159
      %v2256 = vunpack.c.l.b16 %v2160
      %v2257 = vunpack.c.l.b16 %v2161
      %v2258 = vunpack.c.l.b16 %v2162
      %v2259 = vunpack.c.l.b16 %v2163
      %v2260 = vunpack.c.l.b16 %v2164
      %v2261 = vpack.c.b16 %v2214, %v2213
      %v2262 = vpack.c.b16 %v2216, %v2215
      %v2263 = vpack.c.b16 %v2218, %v2217
      %v2264 = vpack.c.b16 %v2220, %v2219
      %v2265 = vpack.c.b16 %v2222, %v2221
      %v2266 = vpack.c.b16 %v2224, %v2223
      %v2267 = vpack.c.b16 %v2226, %v2225
      %v2268 = vpack.c.b16 %v2228, %v2227
      %v2269 = vpack.c.b16 %v2230, %v2229
      %v2270 = vpack.c.b16 %v2232, %v2231
      %v2271 = vpack.c.b16 %v2234, %v2233
      %v2272 = vpack.c.b16 %v2236, %v2235
      %v2273 = vpack.c.b16 %v2238, %v2237
      %v2274 = vpack.c.b16 %v2240, %v2239
      %v2275 = vpack.c.b16 %v2242, %v2241
      %v2276 = vpack.c.b16 %v2244, %v2243
      %v2277 = vpack.c.b16 %v2246, %v2245
      %v2278 = vpack.c.b16 %v2248, %v2247
      %v2279 = vpack.c.b16 %v2250, %v2249
      %v2280 = vpack.c.b16 %v2252, %v2251
      %v2281 = vpack.c.b16 %v2254, %v2253
      %v2282 = vpack.c.b16 %v2256, %v2255
      %v2283 = vpack.c.b16 %v2258, %v2257
      %v2284 = vpack.c.b16 %v2260, %v2259
      %2309 = vmatprep.subr.bf16.mxu0 0
      %2310 = vmatpush1.bf16.msra.mxu0 %v2261
      %2311 = vmatprep.subr.bf16.mxu0 0
      %2312 = vmatpush1.bf16.msra.mxu0 %v2262
      %2313 = vmatprep.subr.bf16.mxu0 0
      %2314 = vmatpush1.bf16.msra.mxu0 %v2263
      %2315 = vmatprep.subr.bf16.mxu0 0
      %2316 = vmatpush1.bf16.msra.mxu0 %v2264
      %2317 = vmatprep.subr.bf16.mxu0 0
      %2318 = vmatpush1.bf16.msra.mxu0 %v2265
      %2319 = vmatprep.subr.bf16.mxu0 0
      %2320 = vmatpush1.bf16.msra.mxu0 %v2266
      %2321 = vmatprep.subr.bf16.mxu0 0
      %2322 = vmatpush1.bf16.msra.mxu0 %v2267
      %2323 = vmatprep.subr.bf16.mxu0 0
      %2324 = vmatpush1.bf16.msra.mxu0 %v2268
      %2325 = vmatprep.subr.bf16.mxu0 0
      %2326 = vmatpush1.bf16.msra.mxu0 %v2269
      %2327 = vmatprep.subr.bf16.mxu0 0
      %2328 = vmatpush1.bf16.msra.mxu0 %v2270
      %2329 = vmatprep.subr.bf16.mxu0 0
      %2330 = vmatpush1.bf16.msra.mxu0 %v2271
      %2331 = vmatprep.subr.bf16.mxu0 0
      %2332 = vmatpush1.bf16.msra.mxu0 %v2272
      %2333 = vmatprep.subr.bf16.mxu0 0
      %2334 = vmatpush1.bf16.msra.mxu0 %v2273
      %2335 = vmatprep.subr.bf16.mxu0 0
      %2336 = vmatpush1.bf16.msra.mxu0 %v2274
      %2337 = vmatprep.subr.bf16.mxu0 0
      %2338 = vmatpush1.bf16.msra.mxu0 %v2275
      %2339 = vmatprep.subr.bf16.mxu0 0
      %2340 = vmatpush1.bf16.msra.mxu0 %v2276
      %2341 = vmatprep.mubr.bf16.mxu0 %v1449
      %2342 = vmatmul.mubr.bf16.gmra.mrb[0].mxu0 %v1431
      %v2343 = vpop.f32.mrb[0].mxu0
      %v2344 = vadd.f32 0.0, %v2343
      %v2345 = vpop.f32.mrb[0].mxu0
      %v2346 = vpop.f32.mrb[0].mxu0
      %v2347 = vadd.f32 0.0, %v2346
      %v2348 = vpop.f32.mrb[0].mxu0
      %2349 = vmatprep.mubr.bf16.mxu0 %v1450
      %2350 = vmatmul.mubr.bf16.gmra.mrb[0].mxu0 %v1432
      %v2351 = vpop.f32.mrb[0].mxu0
      %v2352 = vadd.f32 0.0, %v2351
      %v2353 = vpop.f32.mrb[0].mxu0
      %v2354 = vpop.f32.mrb[0].mxu0
      %v2355 = vadd.f32 0.0, %v2354
      %v2356 = vpop.f32.mrb[0].mxu0
      %2357 = vmatprep.mubr.bf16.mxu0 %v1451
      %2358 = vmatmul.mubr.bf16.gmra.mrb[0].mxu0 %v1433
      %v2359 = vpop.f32.mrb[0].mxu0
      %v2360 = vadd.f32 0.0, %v2359
      %v2361 = vpop.f32.mrb[0].mxu0
      %v2362 = vpop.f32.mrb[0].mxu0
      %v2363 = vadd.f32 0.0, %v2362
      %v2364 = vpop.f32.mrb[0].mxu0
      %2365 = vmatprep.mubr.bf16.mxu0 %v1452
      %2366 = vmatmul.mubr.bf16.gmra.mrb[0].mxu0 %v1434
      %v2367 = vpop.f32.mrb[0].mxu0
      %v2368 = vadd.f32 0.0, %v2367
      %v2369 = vpop.f32.mrb[0].mxu0
      %v2370 = vpop.f32.mrb[0].mxu0
      %v2371 = vadd.f32 0.0, %v2370
      %v2372 = vpop.f32.mrb[0].mxu0
      %2373 = vdwg.mxu0
      %2374 = vmatprep.subr.bf16.mxu0 0
      %2375 = vmatpush1.bf16.msra.mxu0 %v2277
      %2376 = vmatprep.subr.bf16.mxu0 0
      %2377 = vmatpush1.bf16.msra.mxu0 %v2278
      %2378 = vmatprep.subr.bf16.mxu0 0
      %2379 = vmatpush1.bf16.msra.mxu0 %v2279
      %2380 = vmatprep.subr.bf16.mxu0 0
      %2381 = vmatpush1.bf16.msra.mxu0 %v2280
      %2382 = vmatprep.subr.bf16.mxu0 0
      %2383 = vmatpush1.bf16.msra.mxu0 %v2281
      %2384 = vmatprep.subr.bf16.mxu0 0
      %2385 = vmatpush1.bf16.msra.mxu0 %v2282
      %2386 = vmatprep.subr.bf16.mxu0 0
      %2387 = vmatpush1.bf16.msra.mxu0 %v2283
      %2388 = vmatprep.subr.bf16.mxu0 0
      %2389 = vmatpush1.bf16.msra.mxu0 %v2284
      %2390 = vmatprep.subr.bf16.mxu0 0
      %2391 = vmatpush1.bf16.msra.mxu0 0
      %2392 = vmatprep.subr.bf16.mxu0 0
      %2393 = vmatpush1.bf16.msra.mxu0 0
      %2394 = vmatprep.subr.bf16.mxu0 0
      %2395 = vmatpush1.bf16.msra.mxu0 0
      %2396 = vmatprep.subr.bf16.mxu0 0
      %2397 = vmatpush1.bf16.msra.mxu0 0
      %2398 = vmatprep.subr.bf16.mxu0 0
      %2399 = vmatpush1.bf16.msra.mxu0 0
      %2400 = vmatprep.subr.bf16.mxu0 0
      %2401 = vmatpush1.bf16.msra.mxu0 0
      %2402 = vmatprep.subr.bf16.mxu0 0
      %2403 = vmatpush1.bf16.msra.mxu0 0
      %2404 = vmatprep.subr.bf16.mxu0 0
      %2405 = vmatpush1.bf16.msra.mxu0 0
      %2406 = vmatprep.mubr.bf16.mxu0 0
      %2407 = vmatmul.mubr.bf16.gmra.mrb[0].mxu0 %v1467
      %v2408 = vpop.f32.mrb[0].mxu0
      %v2409 = vadd.f32 %v2344, %v2408
      %v2410 = vpop.f32.mrb[0].mxu0
      %v2411 = vpop.f32.mrb[0].mxu0
      %v2412 = vadd.f32 %v2347, %v2411
      %v2413 = vpop.f32.mrb[0].mxu0
      %2414 = vmatprep.mubr.bf16.mxu0 0
      %2415 = vmatmul.mubr.bf16.gmra.mrb[0].mxu0 %v1468
      %v2416 = vpop.f32.mrb[0].mxu0
      %v2417 = vadd.f32 %v2352, %v2416
      %v2418 = vpop.f32.mrb[0].mxu0
      %v2419 = vpop.f32.mrb[0].mxu0
      %v2420 = vadd.f32 %v2355, %v2419
      %v2421 = vpop.f32.mrb[0].mxu0
      %2422 = vmatprep.mubr.bf16.mxu0 0
      %2423 = vmatmul.mubr.bf16.gmra.mrb[0].mxu0 %v1469
      %v2424 = vpop.f32.mrb[0].mxu0
      %v2425 = vadd.f32 %v2360, %v2424
      %v2426 = vpop.f32.mrb[0].mxu0
      %v2427 = vpop.f32.mrb[0].mxu0
      %v2428 = vadd.f32 %v2363, %v2427
      %v2429 = vpop.f32.mrb[0].mxu0
      %2430 = vmatprep.mubr.bf16.mxu0 0
      %2431 = vmatmul.mubr.bf16.gmra.mrb[0].mxu0 %v1470
      %v2432 = vpop.f32.mrb[0].mxu0
      %v2433 = vadd.f32 %v2368, %v2432
      %v2434 = vpop.f32.mrb[0].mxu0
      %v2435 = vpop.f32.mrb[0].mxu0
      %v2436 = vadd.f32 %v2371, %v2435
      %v2437 = vpop.f32.mrb[0].mxu0
      %2438 = vdwg.mxu0
      %v2439 = vadd.f32 %v2086, %v2409
      %v2440 = vadd.f32 %v2089, %v2412
      %v2441 = vadd.f32 %v2094, %v2417
      %v2442 = vadd.f32 %v2097, %v2420
      %v2443 = vadd.f32 %v2102, %v2425
      %v2444 = vadd.f32 %v2105, %v2428
      %v2445 = vadd.f32 %v2110, %v2433
      %v2446 = vadd.f32 %v2113, %v2436
      %v2447 = vld [vmem:[%s8] sm:$0x1]
      %v2449 = vlaneseq
      %v2450 = vshrl.u32 %v2449, 7
      %v2451 = vsub.s32 0, %v2450
      %v2452 = vrot.slane %v2447, %v2451
      %v2454 = vadd.f32 %v2439, %v2452
      %v2455 = vadd.f32 %v2440, %v2452
      %v2456 = vadd.f32 %v2441, %v2452
      %v2457 = vadd.f32 %v2442, %v2452
      %v2458 = vadd.f32 %v2443, %v2452
      %v2459 = vadd.f32 %v2444, %v2452
      %v2460 = vadd.f32 %v2445, %v2452
      %v2461 = vadd.f32 %v2446, %v2452
      %v2462 = vmax.f32 %v2454, 0.0
      %v2463 = vmax.f32 %v2455, 0.0
      %v2464 = vmax.f32 %v2456, 0.0
      %v2465 = vmax.f32 %v2457, 0.0
      %v2466 = vmax.f32 %v2458, 0.0
      %v2467 = vmax.f32 %v2459, 0.0
      %v2468 = vmax.f32 %v2460, 0.0
      %v2469 = vmax.f32 %v2461, 0.0
      %v2470 = vand.u32 2147483647, %v2454
      %v2471 = vand.u32 2147483647, %v2455
      %v2472 = vand.u32 2147483647, %v2456
      %v2473 = vand.u32 2147483647, %v2457
      %v2474 = vand.u32 2147483647, %v2458
      %v2475 = vand.u32 2147483647, %v2459
      %v2476 = vand.u32 2147483647, %v2460
      %v2477 = vand.u32 2147483647, %v2461
      %v2478 = vsub.f32 0.0, %v2470
      %v2479 = vsub.f32 0.0, %v2471
      %v2480 = vsub.f32 0.0, %v2472
      %v2481 = vsub.f32 0.0, %v2473
      %v2482 = vsub.f32 0.0, %v2474
      %v2483 = vsub.f32 0.0, %v2475
      %v2484 = vsub.f32 0.0, %v2476
      %v2485 = vsub.f32 0.0, %v2477
      %v2486 = vmul.f32 %v2478, 1.442695
      %v2487 = vpow.pop %v2486
      %v2488 = vmul.f32 %v2479, 1.442695
      %v2489 = vpow.pop %v2488
      %v2490 = vmul.f32 %v2480, 1.442695
      %v2491 = vpow.pop %v2490
      %v2492 = vmul.f32 %v2481, 1.442695
      %v2493 = vpow.pop %v2492
      %v2494 = vmul.f32 %v2482, 1.442695
      %v2495 = vpow.pop %v2494
      %v2496 = vmul.f32 %v2483, 1.442695
      %v2497 = vpow.pop %v2496
      %v2498 = vmul.f32 %v2484, 1.442695
      %v2499 = vpow.pop %v2498
      %v2500 = vmul.f32 %v2485, 1.442695
      %v2501 = vpow.pop %v2500
      %v2502 = vadd.f32 %v2487, 1.0
      %v2503 = vlog2.pop %v2502
      %v2504 = vmul.f32 %v2503, 0.6931472
      %v2505 = vmul.f32 -0.5, %v2487
      %v2506 = vadd.f32 %v2505, 1.0
      %v2507 = vmul.f32 %v2506, %v2487
      %v2508 = vand.u32 2147483647, %v2487
      %vm2509 = vcmp.lt.f32.partialorder %v2508, 0.0004427343
      %v2510 = vsel %vm2509, %v2507, %v2504
      %v2511 = vadd.f32 %v2489, 1.0
      %v2512 = vlog2.pop %v2511
      %v2513 = vmul.f32 %v2512, 0.6931472
      %v2514 = vmul.f32 -0.5, %v2489
      %v2515 = vadd.f32 %v2514, 1.0
      %v2516 = vmul.f32 %v2515, %v2489
      %v2517 = vand.u32 2147483647, %v2489
      %vm2518 = vcmp.lt.f32.partialorder %v2517, 0.0004427343
      %v2519 = vsel %vm2518, %v2516, %v2513
      %v2520 = vadd.f32 %v2491, 1.0
      %v2521 = vlog2.pop %v2520
      %v2522 = vmul.f32 %v2521, 0.6931472
      %v2523 = vmul.f32 -0.5, %v2491
      %v2524 = vadd.f32 %v2523, 1.0
      %v2525 = vmul.f32 %v2524, %v2491
      %v2526 = vand.u32 2147483647, %v2491
      %vm2527 = vcmp.lt.f32.partialorder %v2526, 0.0004427343
      %v2528 = vsel %vm2527, %v2525, %v2522
      %v2529 = vadd.f32 %v2493, 1.0
      %v2530 = vlog2.pop %v2529
      %v2531 = vmul.f32 %v2530, 0.6931472
      %v2532 = vmul.f32 -0.5, %v2493
      %v2533 = vadd.f32 %v2532, 1.0
      %v2534 = vmul.f32 %v2533, %v2493
      %v2535 = vand.u32 2147483647, %v2493
      %vm2536 = vcmp.lt.f32.partialorder %v2535, 0.0004427343
      %v2537 = vsel %vm2536, %v2534, %v2531
      %v2538 = vadd.f32 %v2495, 1.0
      %v2539 = vlog2.pop %v2538
      %v2540 = vmul.f32 %v2539, 0.6931472
      %v2541 = vmul.f32 -0.5, %v2495
      %v2542 = vadd.f32 %v2541, 1.0
      %v2543 = vmul.f32 %v2542, %v2495
      %v2544 = vand.u32 2147483647, %v2495
      %vm2545 = vcmp.lt.f32.partialorder %v2544, 0.0004427343
      %v2546 = vsel %vm2545, %v2543, %v2540
      %v2547 = vadd.f32 %v2497, 1.0
      %v2548 = vlog2.pop %v2547
      %v2549 = vmul.f32 %v2548, 0.6931472
      %v2550 = vmul.f32 -0.5, %v2497
      %v2551 = vadd.f32 %v2550, 1.0
      %v2552 = vmul.f32 %v2551, %v2497
      %v2553 = vand.u32 2147483647, %v2497
      %vm2554 = vcmp.lt.f32.partialorder %v2553, 0.0004427343
      %v2555 = vsel %vm2554, %v2552, %v2549
      %v2556 = vadd.f32 %v2499, 1.0
      %v2557 = vlog2.pop %v2556
      %v2558 = vmul.f32 %v2557, 0.6931472
      %v2559 = vmul.f32 -0.5, %v2499
      %v2560 = vadd.f32 %v2559, 1.0
      %v2561 = vmul.f32 %v2560, %v2499
      %v2562 = vand.u32 2147483647, %v2499
      %vm2563 = vcmp.lt.f32.partialorder %v2562, 0.0004427343
      %v2564 = vsel %vm2563, %v2561, %v2558
      %v2565 = vadd.f32 %v2501, 1.0
      %v2566 = vlog2.pop %v2565
      %v2567 = vmul.f32 %v2566, 0.6931472
      %v2568 = vmul.f32 -0.5, %v2501
      %v2569 = vadd.f32 %v2568, 1.0
      %v2570 = vmul.f32 %v2569, %v2501
      %v2571 = vand.u32 2147483647, %v2501
      %vm2572 = vcmp.lt.f32.partialorder %v2571, 0.0004427343
      %v2573 = vsel %vm2572, %v2570, %v2567
      %v2574 = vadd.f32 %v2462, %v2510
      %v2575 = vadd.f32 %v2463, %v2519
      %v2576 = vadd.f32 %v2464, %v2528
      %v2577 = vadd.f32 %v2465, %v2537
      %v2578 = vadd.f32 %v2466, %v2546
      %v2579 = vadd.f32 %v2467, %v2555
      %v2580 = vadd.f32 %v2468, %v2564
      %v2581 = vadd.f32 %v2469, %v2573
      %v2582 = vtanh.pop %v2574
      %v2583 = vtanh.pop %v2575
      %v2584 = vtanh.pop %v2576
      %v2585 = vtanh.pop %v2577
      %v2586 = vtanh.pop %v2578
      %v2587 = vtanh.pop %v2579
      %v2588 = vtanh.pop %v2580
      %v2589 = vtanh.pop %v2581
      %v2590 = vmul.f32 %v2454, %v2582
      %v2591 = vmul.f32 %v2455, %v2583
      %v2592 = vmul.f32 %v2456, %v2584
      %v2593 = vmul.f32 %v2457, %v2585
      %v2594 = vmul.f32 %v2458, %v2586
      %v2595 = vmul.f32 %v2459, %v2587
      %v2596 = vmul.f32 %v2460, %v2588
      %v2597 = vmul.f32 %v2461, %v2589
      %v2598 = vpack.c.bf16 %v2591, %v2590
      %v2599 = vpack.c.bf16 %v2593, %v2592
      %v2600 = vpack.c.bf16 %v2595, %v2594
      %v2601 = vpack.c.bf16 %v2597, %v2596
      %v2602 = vld [vmem:[%s9] sm:$0xf]
      %v2603 = vld [vmem:[%s9 + $0x4] sm:$0xf]
      %v2604 = vld [vmem:[%s9 + $0x8] sm:$0xf]
      %v2605 = vld [vmem:[%s9 + $0xc] sm:$0xf]
      %v2606 = vld [vmem:[%s9 + $0x10] sm:$0xf]
      %v2607 = vld [vmem:[%s9 + $0x14] sm:$0xf]
      %v2608 = vld [vmem:[%s9 + $0x18] sm:$0xf]
      %v2609 = vld [vmem:[%s9 + $0x1c] sm:$0xf]
      %v2610 = vld [vmem:[%s9 + $0x20] sm:$0xf]
      %v2611 = vld [vmem:[%s9 + $0x24] sm:$0xf]
      %v2612 = vld [vmem:[%s9 + $0x28] sm:$0xf]
      %v2613 = vld [vmem:[%s9 + $0x2c] sm:$0xf]
      %v2614 = vld [vmem:[%s9 + $0x30] sm:$0xf]
      %v2615 = vld [vmem:[%s9 + $0x34] sm:$0xf]
      %v2616 = vld [vmem:[%s9 + $0x38] sm:$0xf]
      %v2617 = vld [vmem:[%s9 + $0x3c] sm:$0xf]
      %v2618 = vld [vmem:[%s10] sm:$0x1]
      %v2620 = vlaneseq
      %v2621 = vshrl.u32 %v2620, 7
      %v2622 = vsub.s32 0, %v2621
      %v2623 = vrot.slane %v2618, %v2622
      %v2641 = vunpack.c.l.b16 %v2602
      %v2642 = vunpack.c.l.b16 %v2603
      %v2643 = vunpack.c.l.b16 %v2604
      %v2644 = vunpack.c.l.b16 %v2605
      %v2645 = vunpack.c.l.b16 %v2606
      %v2646 = vunpack.c.l.b16 %v2607
      %v2647 = vunpack.c.l.b16 %v2608
      %v2648 = vunpack.c.l.b16 %v2609
      %v2649 = vunpack.c.l.b16 %v2610
      %v2650 = vunpack.c.l.b16 %v2611
      %v2651 = vunpack.c.l.b16 %v2612
      %v2652 = vunpack.c.l.b16 %v2613
      %v2653 = vunpack.c.l.b16 %v2614
      %v2654 = vunpack.c.l.b16 %v2615
      %v2655 = vunpack.c.l.b16 %v2616
      %v2656 = vunpack.c.l.b16 %v2617
      %v2657 = vpack.c.b16 %v2642, %v2641
      %v2658 = vpack.c.b16 %v2644, %v2643
      %v2659 = vpack.c.b16 %v2646, %v2645
      %v2660 = vpack.c.b16 %v2648, %v2647
      %v2661 = vpack.c.b16 %v2650, %v2649
      %v2662 = vpack.c.b16 %v2652, %v2651
      %v2663 = vpack.c.b16 %v2654, %v2653
      %v2664 = vpack.c.b16 %v2656, %v2655
      %2673 = vmatprep.subr.bf16.mxu0 0
      %2674 = vmatpush1.bf16.msra.mxu0 %v2657
      %2675 = vmatprep.subr.bf16.mxu0 0
      %2676 = vmatpush1.bf16.msra.mxu0 %v2658
      %2677 = vmatprep.subr.bf16.mxu0 0
      %2678 = vmatpush1.bf16.msra.mxu0 %v2659
      %2679 = vmatprep.subr.bf16.mxu0 0
      %2680 = vmatpush1.bf16.msra.mxu0 %v2660
      %2681 = vmatprep.subr.bf16.mxu0 0
      %2682 = vmatpush1.bf16.msra.mxu0 %v2661
      %2683 = vmatprep.subr.bf16.mxu0 0
      %2684 = vmatpush1.bf16.msra.mxu0 %v2662
      %2685 = vmatprep.subr.bf16.mxu0 0
      %2686 = vmatpush1.bf16.msra.mxu0 %v2663
      %2687 = vmatprep.subr.bf16.mxu0 0
      %2688 = vmatpush1.bf16.msra.mxu0 %v2664
      %2689 = vmatprep.subr.bf16.mxu0 0
      %2690 = vmatpush1.bf16.msra.mxu0 0
      %2691 = vmatprep.subr.bf16.mxu0 0
      %2692 = vmatpush1.bf16.msra.mxu0 0
      %2693 = vmatprep.subr.bf16.mxu0 0
      %2694 = vmatpush1.bf16.msra.mxu0 0
      %2695 = vmatprep.subr.bf16.mxu0 0
      %2696 = vmatpush1.bf16.msra.mxu0 0
      %2697 = vmatprep.subr.bf16.mxu0 0
      %2698 = vmatpush1.bf16.msra.mxu0 0
      %2699 = vmatprep.subr.bf16.mxu0 0
      %2700 = vmatpush1.bf16.msra.mxu0 0
      %2701 = vmatprep.subr.bf16.mxu0 0
      %2702 = vmatpush1.bf16.msra.mxu0 0
      %2703 = vmatprep.subr.bf16.mxu0 0
      %2704 = vmatpush1.bf16.msra.mxu0 0
      %2705 = vmatprep.mubr.bf16.mxu0 0
      %2706 = vmatmul.mubr.bf16.gmra.mrb[0].mxu0 %v2598
      %v2707 = vpop.f32.mrb[0].mxu0
      %v2708 = vadd.f32 %v2623, %v2707
      %v2709 = vpop.f32.mrb[0].mxu0
      %v2710 = vpop.f32.mrb[0].mxu0
      %v2711 = vadd.f32 %v2623, %v2710
      %v2712 = vpop.f32.mrb[0].mxu0
      %2713 = vmatprep.mubr.bf16.mxu0 0
      %2714 = vmatmul.mubr.bf16.gmra.mrb[0].mxu0 %v2599
      %v2715 = vpop.f32.mrb[0].mxu0
      %v2716 = vadd.f32 %v2623, %v2715
      %v2717 = vpop.f32.mrb[0].mxu0
      %v2718 = vpop.f32.mrb[0].mxu0
      %v2719 = vadd.f32 %v2623, %v2718
      %v2720 = vpop.f32.mrb[0].mxu0
      %2721 = vmatprep.mubr.bf16.mxu0 0
      %2722 = vmatmul.mubr.bf16.gmra.mrb[0].mxu0 %v2600
      %v2723 = vpop.f32.mrb[0].mxu0
      %v2724 = vadd.f32 %v2623, %v2723
      %v2725 = vpop.f32.mrb[0].mxu0
      %v2726 = vpop.f32.mrb[0].mxu0
      %v2727 = vadd.f32 %v2623, %v2726
      %v2728 = vpop.f32.mrb[0].mxu0
      %2729 = vmatprep.mubr.bf16.mxu0 0
      %2730 = vmatmul.mubr.bf16.gmra.mrb[0].mxu0 %v2601
      %v2731 = vpop.f32.mrb[0].mxu0
      %v2732 = vadd.f32 %v2623, %v2731
      %v2733 = vpop.f32.mrb[0].mxu0
      %v2734 = vpop.f32.mrb[0].mxu0
      %v2735 = vadd.f32 %v2623, %v2734
      %v2736 = vpop.f32.mrb[0].mxu0
      %2737 = vdwg.mxu0
      %v2738 = vadd.f32 %v933, %v2708
      %v2739 = vadd.f32 %v934, %v2711
      %v2740 = vadd.f32 %v935, %v2716
      %v2741 = vadd.f32 %v936, %v2719
      %v2742 = vadd.f32 %v937, %v2724
      %v2743 = vadd.f32 %v938, %v2727
      %v2744 = vadd.f32 %v939, %v2732
      %v2745 = vadd.f32 %v940, %v2735
      %v2746 = vmax.f32 %v2738, 0.0
      %v2747 = vmax.f32 %v2739, 0.0
      %v2748 = vmax.f32 %v2740, 0.0
      %v2749 = vmax.f32 %v2741, 0.0
      %v2750 = vmax.f32 %v2742, 0.0
      %v2751 = vmax.f32 %v2743, 0.0
      %v2752 = vmax.f32 %v2744, 0.0
      %v2753 = vmax.f32 %v2745, 0.0
      %v2754 = vand.u32 2147483647, %v2738
      %v2755 = vand.u32 2147483647, %v2739
      %v2756 = vand.u32 2147483647, %v2740
      %v2757 = vand.u32 2147483647, %v2741
      %v2758 = vand.u32 2147483647, %v2742
      %v2759 = vand.u32 2147483647, %v2743
      %v2760 = vand.u32 2147483647, %v2744
      %v2761 = vand.u32 2147483647, %v2745
      %v2762 = vsub.f32 0.0, %v2754
      %v2763 = vsub.f32 0.0, %v2755
      %v2764 = vsub.f32 0.0, %v2756
      %v2765 = vsub.f32 0.0, %v2757
      %v2766 = vsub.f32 0.0, %v2758
      %v2767 = vsub.f32 0.0, %v2759
      %v2768 = vsub.f32 0.0, %v2760
      %v2769 = vsub.f32 0.0, %v2761
      %v2770 = vmul.f32 %v2762, 1.442695
      %v2771 = vpow.pop %v2770
      %v2772 = vmul.f32 %v2763, 1.442695
      %v2773 = vpow.pop %v2772
      %v2774 = vmul.f32 %v2764, 1.442695
      %v2775 = vpow.pop %v2774
      %v2776 = vmul.f32 %v2765, 1.442695
      %v2777 = vpow.pop %v2776
      %v2778 = vmul.f32 %v2766, 1.442695
      %v2779 = vpow.pop %v2778
      %v2780 = vmul.f32 %v2767, 1.442695
      %v2781 = vpow.pop %v2780
      %v2782 = vmul.f32 %v2768, 1.442695
      %v2783 = vpow.pop %v2782
      %v2784 = vmul.f32 %v2769, 1.442695
      %v2785 = vpow.pop %v2784
      %v2786 = vadd.f32 %v2771, 1.0
      %v2787 = vlog2.pop %v2786
      %v2788 = vmul.f32 %v2787, 0.6931472
      %v2789 = vmul.f32 -0.5, %v2771
      %v2790 = vadd.f32 %v2789, 1.0
      %v2791 = vmul.f32 %v2790, %v2771
      %v2792 = vand.u32 2147483647, %v2771
      %vm2793 = vcmp.lt.f32.partialorder %v2792, 0.0004427343
      %v2794 = vsel %vm2793, %v2791, %v2788
      %v2795 = vadd.f32 %v2773, 1.0
      %v2796 = vlog2.pop %v2795
      %v2797 = vmul.f32 %v2796, 0.6931472
      %v2798 = vmul.f32 -0.5, %v2773
      %v2799 = vadd.f32 %v2798, 1.0
      %v2800 = vmul.f32 %v2799, %v2773
      %v2801 = vand.u32 2147483647, %v2773
      %vm2802 = vcmp.lt.f32.partialorder %v2801, 0.0004427343
      %v2803 = vsel %vm2802, %v2800, %v2797
      %v2804 = vadd.f32 %v2775, 1.0
      %v2805 = vlog2.pop %v2804
      %v2806 = vmul.f32 %v2805, 0.6931472
      %v2807 = vmul.f32 -0.5, %v2775
      %v2808 = vadd.f32 %v2807, 1.0
      %v2809 = vmul.f32 %v2808, %v2775
      %v2810 = vand.u32 2147483647, %v2775
      %vm2811 = vcmp.lt.f32.partialorder %v2810, 0.0004427343
      %v2812 = vsel %vm2811, %v2809, %v2806
      %v2813 = vadd.f32 %v2777, 1.0
      %v2814 = vlog2.pop %v2813
      %v2815 = vmul.f32 %v2814, 0.6931472
      %v2816 = vmul.f32 -0.5, %v2777
      %v2817 = vadd.f32 %v2816, 1.0
      %v2818 = vmul.f32 %v2817, %v2777
      %v2819 = vand.u32 2147483647, %v2777
      %vm2820 = vcmp.lt.f32.partialorder %v2819, 0.0004427343
      %v2821 = vsel %vm2820, %v2818, %v2815
      %v2822 = vadd.f32 %v2779, 1.0
      %v2823 = vlog2.pop %v2822
      %v2824 = vmul.f32 %v2823, 0.6931472
      %v2825 = vmul.f32 -0.5, %v2779
      %v2826 = vadd.f32 %v2825, 1.0
      %v2827 = vmul.f32 %v2826, %v2779
      %v2828 = vand.u32 2147483647, %v2779
      %vm2829 = vcmp.lt.f32.partialorder %v2828, 0.0004427343
      %v2830 = vsel %vm2829, %v2827, %v2824
      %v2831 = vadd.f32 %v2781, 1.0
      %v2832 = vlog2.pop %v2831
      %v2833 = vmul.f32 %v2832, 0.6931472
      %v2834 = vmul.f32 -0.5, %v2781
      %v2835 = vadd.f32 %v2834, 1.0
      %v2836 = vmul.f32 %v2835, %v2781
      %v2837 = vand.u32 2147483647, %v2781
      %vm2838 = vcmp.lt.f32.partialorder %v2837, 0.0004427343
      %v2839 = vsel %vm2838, %v2836, %v2833
      %v2840 = vadd.f32 %v2783, 1.0
      %v2841 = vlog2.pop %v2840
      %v2842 = vmul.f32 %v2841, 0.6931472
      %v2843 = vmul.f32 -0.5, %v2783
      %v2844 = vadd.f32 %v2843, 1.0
      %v2845 = vmul.f32 %v2844, %v2783
      %v2846 = vand.u32 2147483647, %v2783
      %vm2847 = vcmp.lt.f32.partialorder %v2846, 0.0004427343
      %v2848 = vsel %vm2847, %v2845, %v2842
      %v2849 = vadd.f32 %v2785, 1.0
      %v2850 = vlog2.pop %v2849
      %v2851 = vmul.f32 %v2850, 0.6931472
      %v2852 = vmul.f32 -0.5, %v2785
      %v2853 = vadd.f32 %v2852, 1.0
      %v2854 = vmul.f32 %v2853, %v2785
      %v2855 = vand.u32 2147483647, %v2785
      %vm2856 = vcmp.lt.f32.partialorder %v2855, 0.0004427343
      %v2857 = vsel %vm2856, %v2854, %v2851
      %v2858 = vadd.f32 %v2746, %v2794
      %v2859 = vadd.f32 %v2747, %v2803
      %v2860 = vadd.f32 %v2748, %v2812
      %v2861 = vadd.f32 %v2749, %v2821
      %v2862 = vadd.f32 %v2750, %v2830
      %v2863 = vadd.f32 %v2751, %v2839
      %v2864 = vadd.f32 %v2752, %v2848
      %v2865 = vadd.f32 %v2753, %v2857
      %v2866 = vtanh.pop %v2858
      %v2867 = vtanh.pop %v2859
      %v2868 = vtanh.pop %v2860
      %v2869 = vtanh.pop %v2861
      %v2870 = vtanh.pop %v2862
      %v2871 = vtanh.pop %v2863
      %v2872 = vtanh.pop %v2864
      %v2873 = vtanh.pop %v2865
      %v2874 = vmul.f32 %v2738, %v2866
      %v2875 = vmul.f32 %v2739, %v2867
      %v2876 = vmul.f32 %v2740, %v2868
      %v2877 = vmul.f32 %v2741, %v2869
      %v2878 = vmul.f32 %v2742, %v2870
      %v2879 = vmul.f32 %v2743, %v2871
      %v2880 = vmul.f32 %v2744, %v2872
      %v2881 = vmul.f32 %v2745, %v2873
      %v2882 = vpack.c.bf16 %v2875, %v2874
      %v2883 = vpack.c.bf16 %v2877, %v2876
      %v2884 = vpack.c.bf16 %v2879, %v2878
      %v2885 = vpack.c.bf16 %v2881, %v2880
      %v2886 = vld [vmem:[%s11] sm:$0xf]
      %v2887 = vld [vmem:[%s11 + $0x4] sm:$0xf]
      %v2888 = vld [vmem:[%s11 + $0x8] sm:$0xf]
      %v2889 = vld [vmem:[%s11 + $0xc] sm:$0xf]
      %v2890 = vld [vmem:[%s11 + $0x10] sm:$0xf]
      %v2891 = vld [vmem:[%s11 + $0x14] sm:$0xf]
      %v2892 = vld [vmem:[%s11 + $0x18] sm:$0xf]
      %v2893 = vld [vmem:[%s11 + $0x1c] sm:$0xf]
      %v2894 = vld [vmem:[%s11 + $0x20] sm:$0xf]
      %v2895 = vld [vmem:[%s11 + $0x24] sm:$0xf]
      %v2896 = vld [vmem:[%s11 + $0x28] sm:$0xf]
      %v2897 = vld [vmem:[%s11 + $0x2c] sm:$0xf]
      %v2898 = vld [vmem:[%s11 + $0x30] sm:$0xf]
      %v2899 = vld [vmem:[%s11 + $0x34] sm:$0xf]
      %v2900 = vld [vmem:[%s11 + $0x38] sm:$0xf]
      %v2901 = vld [vmem:[%s11 + $0x3c] sm:$0xf]
      %v2902 = vpack.c.bf16 %v1206, %v1205
      %v2903 = vpack.c.bf16 %v1208, %v1207
      %v2904 = vpack.c.bf16 %v1210, %v1209
      %v2905 = vpack.c.bf16 %v1212, %v1211
      %v2906 = vld [vmem:[%s12] sm:$0xf]
      %v2907 = vld [vmem:[%s12 + $0x4] sm:$0xf]
      %v2908 = vld [vmem:[%s12 + $0x8] sm:$0xf]
      %v2909 = vld [vmem:[%s12 + $0xc] sm:$0xf]
      %v2910 = vld [vmem:[%s12 + $0x10] sm:$0xf]
      %v2911 = vld [vmem:[%s12 + $0x14] sm:$0xf]
      %v2912 = vld [vmem:[%s12 + $0x18] sm:$0xf]
      %v2913 = vld [vmem:[%s12 + $0x1c] sm:$0xf]
      %v2914 = vld [vmem:[%s12 + $0x20] sm:$0xf]
      %v2915 = vld [vmem:[%s12 + $0x24] sm:$0xf]
      %v2916 = vld [vmem:[%s12 + $0x28] sm:$0xf]
      %v2917 = vld [vmem:[%s12 + $0x2c] sm:$0xf]
      %v2918 = vld [vmem:[%s12 + $0x30] sm:$0xf]
      %v2919 = vld [vmem:[%s12 + $0x34] sm:$0xf]
      %v2920 = vld [vmem:[%s12 + $0x38] sm:$0xf]
      %v2921 = vld [vmem:[%s12 + $0x3c] sm:$0xf]
      %v2938 = vunpack.c.l.b16 %v2906
      %v2939 = vunpack.c.l.b16 %v2907
      %v2940 = vunpack.c.l.b16 %v2908
      %v2941 = vunpack.c.l.b16 %v2909
      %v2942 = vunpack.c.l.b16 %v2910
      %v2943 = vunpack.c.l.b16 %v2911
      %v2944 = vunpack.c.l.b16 %v2912
      %v2945 = vunpack.c.l.b16 %v2913
      %v2946 = vunpack.c.l.b16 %v2914
      %v2947 = vunpack.c.l.b16 %v2915
      %v2948 = vunpack.c.l.b16 %v2916
      %v2949 = vunpack.c.l.b16 %v2917
      %v2950 = vunpack.c.l.b16 %v2918
      %v2951 = vunpack.c.l.b16 %v2919
      %v2952 = vunpack.c.l.b16 %v2920
      %v2953 = vunpack.c.l.b16 %v2921
      %v2954 = vpack.c.b16 %v2939, %v2938
      %v2955 = vpack.c.b16 %v2941, %v2940
      %v2956 = vpack.c.b16 %v2943, %v2942
      %v2957 = vpack.c.b16 %v2945, %v2944
      %v2958 = vpack.c.b16 %v2947, %v2946
      %v2959 = vpack.c.b16 %v2949, %v2948
      %v2960 = vpack.c.b16 %v2951, %v2950
      %v2961 = vpack.c.b16 %v2953, %v2952
      %2970 = vmatprep.subr.bf16.mxu0 0
      %2971 = vmatpush1.bf16.msra.mxu0 %v2954
      %2972 = vmatprep.subr.bf16.mxu0 0
      %2973 = vmatpush1.bf16.msra.mxu0 %v2955
      %2974 = vmatprep.subr.bf16.mxu0 0
      %2975 = vmatpush1.bf16.msra.mxu0 %v2956
      %2976 = vmatprep.subr.bf16.mxu0 0
      %2977 = vmatpush1.bf16.msra.mxu0 %v2957
      %2978 = vmatprep.subr.bf16.mxu0 0
      %2979 = vmatpush1.bf16.msra.mxu0 %v2958
      %2980 = vmatprep.subr.bf16.mxu0 0
      %2981 = vmatpush1.bf16.msra.mxu0 %v2959
      %2982 = vmatprep.subr.bf16.mxu0 0
      %2983 = vmatpush1.bf16.msra.mxu0 %v2960
      %2984 = vmatprep.subr.bf16.mxu0 0
      %2985 = vmatpush1.bf16.msra.mxu0 %v2961
      %2986 = vmatprep.subr.bf16.mxu0 0
      %2987 = vmatpush1.bf16.msra.mxu0 0
      %2988 = vmatprep.subr.bf16.mxu0 0
      %2989 = vmatpush1.bf16.msra.mxu0 0
      %2990 = vmatprep.subr.bf16.mxu0 0
      %2991 = vmatpush1.bf16.msra.mxu0 0
      %2992 = vmatprep.subr.bf16.mxu0 0
      %2993 = vmatpush1.bf16.msra.mxu0 0
      %2994 = vmatprep.subr.bf16.mxu0 0
      %2995 = vmatpush1.bf16.msra.mxu0 0
      %2996 = vmatprep.subr.bf16.mxu0 0
      %2997 = vmatpush1.bf16.msra.mxu0 0
      %2998 = vmatprep.subr.bf16.mxu0 0
      %2999 = vmatpush1.bf16.msra.mxu0 0
      %3000 = vmatprep.subr.bf16.mxu0 0
      %3001 = vmatpush1.bf16.msra.mxu0 0
      %3002 = vmatprep.mubr.bf16.mxu0 0
      %3003 = vmatmul.mubr.bf16.gmra.mrb[0].mxu0 %v2902
      %v3004 = vpop.f32.mrb[0].mxu0
      %v3005 = vadd.f32 0.0, %v3004
      %v3006 = vpop.f32.mrb[0].mxu0
      %v3007 = vpop.f32.mrb[0].mxu0
      %v3008 = vadd.f32 0.0, %v3007
      %v3009 = vpop.f32.mrb[0].mxu0
      %3010 = vmatprep.mubr.bf16.mxu0 0
      %3011 = vmatmul.mubr.bf16.gmra.mrb[0].mxu0 %v2903
      %v3012 = vpop.f32.mrb[0].mxu0
      %v3013 = vadd.f32 0.0, %v3012
      %v3014 = vpop.f32.mrb[0].mxu0
      %v3015 = vpop.f32.mrb[0].mxu0
      %v3016 = vadd.f32 0.0, %v3015
      %v3017 = vpop.f32.mrb[0].mxu0
      %3018 = vmatprep.mubr.bf16.mxu0 0
      %3019 = vmatmul.mubr.bf16.gmra.mrb[0].mxu0 %v2904
      %v3020 = vpop.f32.mrb[0].mxu0
      %v3021 = vadd.f32 0.0, %v3020
      %v3022 = vpop.f32.mrb[0].mxu0
      %v3023 = vpop.f32.mrb[0].mxu0
      %v3024 = vadd.f32 0.0, %v3023
      %v3025 = vpop.f32.mrb[0].mxu0
      %3026 = vmatprep.mubr.bf16.mxu0 0
      %3027 = vmatmul.mubr.bf16.gmra.mrb[0].mxu0 %v2905
      %v3028 = vpop.f32.mrb[0].mxu0
      %v3029 = vadd.f32 0.0, %v3028
      %v3030 = vpop.f32.mrb[0].mxu0
      %v3031 = vpop.f32.mrb[0].mxu0
      %v3032 = vadd.f32 0.0, %v3031
      %v3033 = vpop.f32.mrb[0].mxu0
      %3034 = vdwg.mxu0
      %v3051 = vunpack.c.l.b16 %v2886
      %v3052 = vunpack.c.l.b16 %v2887
      %v3053 = vunpack.c.l.b16 %v2888
      %v3054 = vunpack.c.l.b16 %v2889
      %v3055 = vunpack.c.l.b16 %v2890
      %v3056 = vunpack.c.l.b16 %v2891
      %v3057 = vunpack.c.l.b16 %v2892
      %v3058 = vunpack.c.l.b16 %v2893
      %v3059 = vunpack.c.l.b16 %v2894
      %v3060 = vunpack.c.l.b16 %v2895
      %v3061 = vunpack.c.l.b16 %v2896
      %v3062 = vunpack.c.l.b16 %v2897
      %v3063 = vunpack.c.l.b16 %v2898
      %v3064 = vunpack.c.l.b16 %v2899
      %v3065 = vunpack.c.l.b16 %v2900
      %v3066 = vunpack.c.l.b16 %v2901
      %v3067 = vpack.c.b16 %v3052, %v3051
      %v3068 = vpack.c.b16 %v3054, %v3053
      %v3069 = vpack.c.b16 %v3056, %v3055
      %v3070 = vpack.c.b16 %v3058, %v3057
      %v3071 = vpack.c.b16 %v3060, %v3059
      %v3072 = vpack.c.b16 %v3062, %v3061
      %v3073 = vpack.c.b16 %v3064, %v3063
      %v3074 = vpack.c.b16 %v3066, %v3065
      %3083 = vmatprep.subr.bf16.mxu0 0
      %3084 = vmatpush1.bf16.msra.mxu0 %v3067
      %3085 = vmatprep.subr.bf16.mxu0 0
      %3086 = vmatpush1.bf16.msra.mxu0 %v3068
      %3087 = vmatprep.subr.bf16.mxu0 0
      %3088 = vmatpush1.bf16.msra.mxu0 %v3069
      %3089 = vmatprep.subr.bf16.mxu0 0
      %3090 = vmatpush1.bf16.msra.mxu0 %v3070
      %3091 = vmatprep.subr.bf16.mxu0 0
      %3092 = vmatpush1.bf16.msra.mxu0 %v3071
      %3093 = vmatprep.subr.bf16.mxu0 0
      %3094 = vmatpush1.bf16.msra.mxu0 %v3072
      %3095 = vmatprep.subr.bf16.mxu0 0
      %3096 = vmatpush1.bf16.msra.mxu0 %v3073
      %3097 = vmatprep.subr.bf16.mxu0 0
      %3098 = vmatpush1.bf16.msra.mxu0 %v3074
      %3099 = vmatprep.subr.bf16.mxu0 0
      %3100 = vmatpush1.bf16.msra.mxu0 0
      %3101 = vmatprep.subr.bf16.mxu0 0
      %3102 = vmatpush1.bf16.msra.mxu0 0
      %3103 = vmatprep.subr.bf16.mxu0 0
      %3104 = vmatpush1.bf16.msra.mxu0 0
      %3105 = vmatprep.subr.bf16.mxu0 0
      %3106 = vmatpush1.bf16.msra.mxu0 0
      %3107 = vmatprep.subr.bf16.mxu0 0
      %3108 = vmatpush1.bf16.msra.mxu0 0
      %3109 = vmatprep.subr.bf16.mxu0 0
      %3110 = vmatpush1.bf16.msra.mxu0 0
      %3111 = vmatprep.subr.bf16.mxu0 0
      %3112 = vmatpush1.bf16.msra.mxu0 0
      %3113 = vmatprep.subr.bf16.mxu0 0
      %3114 = vmatpush1.bf16.msra.mxu0 0
      %3115 = vmatprep.mubr.bf16.mxu0 0
      %3116 = vmatmul.mubr.bf16.gmra.mrb[0].mxu0 %v2882
      %v3117 = vpop.f32.mrb[0].mxu0
      %v3118 = vadd.f32 %v3005, %v3117
      %v3119 = vpop.f32.mrb[0].mxu0
      %v3120 = vpop.f32.mrb[0].mxu0
      %v3121 = vadd.f32 %v3008, %v3120
      %v3122 = vpop.f32.mrb[0].mxu0
      %3123 = vmatprep.mubr.bf16.mxu0 0
      %3124 = vmatmul.mubr.bf16.gmra.mrb[0].mxu0 %v2883
      %v3125 = vpop.f32.mrb[0].mxu0
      %v3126 = vadd.f32 %v3013, %v3125
      %v3127 = vpop.f32.mrb[0].mxu0
      %v3128 = vpop.f32.mrb[0].mxu0
      %v3129 = vadd.f32 %v3016, %v3128
      %v3130 = vpop.f32.mrb[0].mxu0
      %3131 = vmatprep.mubr.bf16.mxu0 0
      %3132 = vmatmul.mubr.bf16.gmra.mrb[0].mxu0 %v2884
      %v3133 = vpop.f32.mrb[0].mxu0
      %v3134 = vadd.f32 %v3021, %v3133
      %v3135 = vpop.f32.mrb[0].mxu0
      %v3136 = vpop.f32.mrb[0].mxu0
      %v3137 = vadd.f32 %v3024, %v3136
      %v3138 = vpop.f32.mrb[0].mxu0
      %3139 = vmatprep.mubr.bf16.mxu0 0
      %3140 = vmatmul.mubr.bf16.gmra.mrb[0].mxu0 %v2885
      %v3141 = vpop.f32.mrb[0].mxu0
      %v3142 = vadd.f32 %v3029, %v3141
      %v3143 = vpop.f32.mrb[0].mxu0
      %v3144 = vpop.f32.mrb[0].mxu0
      %v3145 = vadd.f32 %v3032, %v3144
      %v3146 = vpop.f32.mrb[0].mxu0
      %3147 = vdwg.mxu0
      %v3148 = vld [vmem:[%s13] sm:$0x1]
      %v3150 = vlaneseq
      %v3151 = vshrl.u32 %v3150, 7
      %v3152 = vsub.s32 0, %v3151
      %v3153 = vrot.slane %v3148, %v3152
      %v3155 = vadd.f32 %v3118, %v3153
      %v3156 = vadd.f32 %v3121, %v3153
      %v3157 = vadd.f32 %v3126, %v3153
      %v3158 = vadd.f32 %v3129, %v3153
      %v3159 = vadd.f32 %v3134, %v3153
      %v3160 = vadd.f32 %v3137, %v3153
      %v3161 = vadd.f32 %v3142, %v3153
      %v3162 = vadd.f32 %v3145, %v3153
      %v3163 = vmax.f32 %v3155, 0.0
      %v3164 = vmax.f32 %v3156, 0.0
      %v3165 = vmax.f32 %v3157, 0.0
      %v3166 = vmax.f32 %v3158, 0.0
      %v3167 = vmax.f32 %v3159, 0.0
      %v3168 = vmax.f32 %v3160, 0.0
      %v3169 = vmax.f32 %v3161, 0.0
      %v3170 = vmax.f32 %v3162, 0.0
      %v3171 = vand.u32 2147483647, %v3155
      %v3172 = vand.u32 2147483647, %v3156
      %v3173 = vand.u32 2147483647, %v3157
      %v3174 = vand.u32 2147483647, %v3158
      %v3175 = vand.u32 2147483647, %v3159
      %v3176 = vand.u32 2147483647, %v3160
      %v3177 = vand.u32 2147483647, %v3161
      %v3178 = vand.u32 2147483647, %v3162
      %v3179 = vsub.f32 0.0, %v3171
      %v3180 = vsub.f32 0.0, %v3172
      %v3181 = vsub.f32 0.0, %v3173
      %v3182 = vsub.f32 0.0, %v3174
      %v3183 = vsub.f32 0.0, %v3175
      %v3184 = vsub.f32 0.0, %v3176
      %v3185 = vsub.f32 0.0, %v3177
      %v3186 = vsub.f32 0.0, %v3178
      %v3187 = vmul.f32 %v3179, 1.442695
      %v3188 = vpow.pop %v3187
      %v3189 = vmul.f32 %v3180, 1.442695
      %v3190 = vpow.pop %v3189
      %v3191 = vmul.f32 %v3181, 1.442695
      %v3192 = vpow.pop %v3191
      %v3193 = vmul.f32 %v3182, 1.442695
      %v3194 = vpow.pop %v3193
      %v3195 = vmul.f32 %v3183, 1.442695
      %v3196 = vpow.pop %v3195
      %v3197 = vmul.f32 %v3184, 1.442695
      %v3198 = vpow.pop %v3197
      %v3199 = vmul.f32 %v3185, 1.442695
      %v3200 = vpow.pop %v3199
      %v3201 = vmul.f32 %v3186, 1.442695
      %v3202 = vpow.pop %v3201
      %v3203 = vadd.f32 %v3188, 1.0
      %v3204 = vlog2.pop %v3203
      %v3205 = vmul.f32 %v3204, 0.6931472
      %v3206 = vmul.f32 -0.5, %v3188
      %v3207 = vadd.f32 %v3206, 1.0
      %v3208 = vmul.f32 %v3207, %v3188
      %v3209 = vand.u32 2147483647, %v3188
      %vm3210 = vcmp.lt.f32.partialorder %v3209, 0.0004427343
      %v3211 = vsel %vm3210, %v3208, %v3205
      %v3212 = vadd.f32 %v3190, 1.0
      %v3213 = vlog2.pop %v3212
      %v3214 = vmul.f32 %v3213, 0.6931472
      %v3215 = vmul.f32 -0.5, %v3190
      %v3216 = vadd.f32 %v3215, 1.0
      %v3217 = vmul.f32 %v3216, %v3190
      %v3218 = vand.u32 2147483647, %v3190
      %vm3219 = vcmp.lt.f32.partialorder %v3218, 0.0004427343
      %v3220 = vsel %vm3219, %v3217, %v3214
      %v3221 = vadd.f32 %v3192, 1.0
      %v3222 = vlog2.pop %v3221
      %v3223 = vmul.f32 %v3222, 0.6931472
      %v3224 = vmul.f32 -0.5, %v3192
      %v3225 = vadd.f32 %v3224, 1.0
      %v3226 = vmul.f32 %v3225, %v3192
      %v3227 = vand.u32 2147483647, %v3192
      %vm3228 = vcmp.lt.f32.partialorder %v3227, 0.0004427343
      %v3229 = vsel %vm3228, %v3226, %v3223
      %v3230 = vadd.f32 %v3194, 1.0
      %v3231 = vlog2.pop %v3230
      %v3232 = vmul.f32 %v3231, 0.6931472
      %v3233 = vmul.f32 -0.5, %v3194
      %v3234 = vadd.f32 %v3233, 1.0
      %v3235 = vmul.f32 %v3234, %v3194
      %v3236 = vand.u32 2147483647, %v3194
      %vm3237 = vcmp.lt.f32.partialorder %v3236, 0.0004427343
      %v3238 = vsel %vm3237, %v3235, %v3232
      %v3239 = vadd.f32 %v3196, 1.0
      %v3240 = vlog2.pop %v3239
      %v3241 = vmul.f32 %v3240, 0.6931472
      %v3242 = vmul.f32 -0.5, %v3196
      %v3243 = vadd.f32 %v3242, 1.0
      %v3244 = vmul.f32 %v3243, %v3196
      %v3245 = vand.u32 2147483647, %v3196
      %vm3246 = vcmp.lt.f32.partialorder %v3245, 0.0004427343
      %v3247 = vsel %vm3246, %v3244, %v3241
      %v3248 = vadd.f32 %v3198, 1.0
      %v3249 = vlog2.pop %v3248
      %v3250 = vmul.f32 %v3249, 0.6931472
      %v3251 = vmul.f32 -0.5, %v3198
      %v3252 = vadd.f32 %v3251, 1.0
      %v3253 = vmul.f32 %v3252, %v3198
      %v3254 = vand.u32 2147483647, %v3198
      %vm3255 = vcmp.lt.f32.partialorder %v3254, 0.0004427343
      %v3256 = vsel %vm3255, %v3253, %v3250
      %v3257 = vadd.f32 %v3200, 1.0
      %v3258 = vlog2.pop %v3257
      %v3259 = vmul.f32 %v3258, 0.6931472
      %v3260 = vmul.f32 -0.5, %v3200
      %v3261 = vadd.f32 %v3260, 1.0
      %v3262 = vmul.f32 %v3261, %v3200
      %v3263 = vand.u32 2147483647, %v3200
      %vm3264 = vcmp.lt.f32.partialorder %v3263, 0.0004427343
      %v3265 = vsel %vm3264, %v3262, %v3259
      %v3266 = vadd.f32 %v3202, 1.0
      %v3267 = vlog2.pop %v3266
      %v3268 = vmul.f32 %v3267, 0.6931472
      %v3269 = vmul.f32 -0.5, %v3202
      %v3270 = vadd.f32 %v3269, 1.0
      %v3271 = vmul.f32 %v3270, %v3202
      %v3272 = vand.u32 2147483647, %v3202
      %vm3273 = vcmp.lt.f32.partialorder %v3272, 0.0004427343
      %v3274 = vsel %vm3273, %v3271, %v3268
      %v3275 = vadd.f32 %v3163, %v3211
      %v3276 = vadd.f32 %v3164, %v3220
      %v3277 = vadd.f32 %v3165, %v3229
      %v3278 = vadd.f32 %v3166, %v3238
      %v3279 = vadd.f32 %v3167, %v3247
      %v3280 = vadd.f32 %v3168, %v3256
      %v3281 = vadd.f32 %v3169, %v3265
      %v3282 = vadd.f32 %v3170, %v3274
      %v3283 = vtanh.pop %v3275
      %v3284 = vtanh.pop %v3276
      %v3285 = vtanh.pop %v3277
      %v3286 = vtanh.pop %v3278
      %v3287 = vtanh.pop %v3279
      %v3288 = vtanh.pop %v3280
      %v3289 = vtanh.pop %v3281
      %v3290 = vtanh.pop %v3282
      %v3291 = vmul.f32 %v3155, %v3283
      %v3292 = vmul.f32 %v3156, %v3284
      %v3293 = vmul.f32 %v3157, %v3285
      %v3294 = vmul.f32 %v3158, %v3286
      %v3295 = vmul.f32 %v3159, %v3287
      %v3296 = vmul.f32 %v3160, %v3288
      %v3297 = vmul.f32 %v3161, %v3289
      %v3298 = vmul.f32 %v3162, %v3290
      %3299 = vst [vmem:[%s634] sm:$0xff] %v3291
      %3300 = vst [vmem:[%s634 + $0x8] sm:$0xff] %v3292
      %3301 = vst [vmem:[%s634 + $0x10] sm:$0xff] %v3293
      %3302 = vst [vmem:[%s634 + $0x18] sm:$0xff] %v3294
      %3303 = vst [vmem:[%s634 + $0x20] sm:$0xff] %v3295
      %3304 = vst [vmem:[%s634 + $0x28] sm:$0xff] %v3296
      %3305 = vst [vmem:[%s634 + $0x30] sm:$0xff] %v3297
      %3306 = vst [vmem:[%s634 + $0x38] sm:$0xff] %v3298
      %s3307 = smul.u32 4, %s30
      %p3308 = scmp.lt.s32.totalorder %s29, 1
      %s3309 = scalar_select %p3308, %s29, 1
      %p3310 = scmp.lt.s32.totalorder %s3307, 15
      %s3311 = scalar_select %p3310, %s3307, 15
      %s3312 = smul.addr %s3311, 2
      %s3313 = smul.addr %s3309, 32
      %s3314 = sadd.s32 %s3312, %s3313
      %s3315 = smul.addr %s3314, 8
      %s3316 = scalar_lea.vmem %s14, %s3315
      // Predicated region
      $region77: #{bottleneck_csp_pallas.1} parent=75 // pred_check
        %p3317 = pneg %p388
      $region78: #{bottleneck_csp_pallas.1} parent=75 // pred_check_branch
        %3319 = sbr.rel (%p3317) target = $region80
      $region79: #{bottleneck_csp_pallas.1} parent=75 // pred_region
        %s3320 = smul.u32 4, %s30
      $region80: #{bottleneck_csp_pallas.1} parent=75 // pred_fallthru
        _
    $region76: #{bottleneck_csp_pallas.1} parent=5 // pred_fallthru
      _
    %p3321 = scmp.le.s32.totalorder 2, %s20
    // Predicated region
    $region81: #{bottleneck_csp_pallas.1} parent=5 // pred_check
      %p3322 = pneg %p3321
    $region82: #{bottleneck_csp_pallas.1} parent=5 // pred_check_branch
      %3324 = sbr.rel (%p3322) target = $region84
    $region83: #{bottleneck_csp_pallas.1} parent=5 // pred_region
      %s3325 = ssub.s32 %s20, 2
      // Predicated region
      $region85: #{bottleneck_csp_pallas.1} parent=83 // pred_check
        %p3326 = pneg %p394
      $region86: #{bottleneck_csp_pallas.1} parent=83 // pred_check_branch
        %3328 = sbr.rel (%p3326) target = $region88
      $region87: #{bottleneck_csp_pallas.1} parent=83 // pred_region
        %s3329 = smul.u32 4, %s32
        %p3330 = scmp.lt.s32.totalorder %s31, 1
        %s3331 = scalar_select %p3330, %s31, 1
        %p3332 = scmp.lt.s32.totalorder %s3329, 15
        %s3333 = scalar_select %p3332, %s3329, 15
        %s3334 = smul.addr %s3333, 2
        %s3335 = smul.addr %s3331, 32
        %s3336 = sadd.s32 %s3334, %s3335
        %s3337 = smul.addr %s3336, 8
        %s3338 = scalar_lea.vmem %s14, %s3337
      $region88: #{bottleneck_csp_pallas.1} parent=83 // pred_fallthru
        _
    $region84: #{bottleneck_csp_pallas.1} parent=5 // pred_fallthru
      _
  $region6: #{bottleneck_csp_pallas.1} parent=0 // loop_footer
    %s24 = sadd.s32 1, %s20
  $region7: #{bottleneck_csp_pallas.1} parent=0 // loop_footer_branch
    %19 = sbr.rel target = $region3
  $region8: #{bottleneck_csp_pallas.1} parent=0 // loop_exit
    _

</llo_original>
